<compile_context>
chip_gen: v7x
topology: tpu7x:2x2x1
jax: 0.10.0
libtpu: 0.0.40
codegen_flags: <defaults>
</compile_context>

<pallas_src>
import functools

import jax
import jax.numpy as jnp
from jax import lax
from jax.experimental import pallas as pl
from jax.experimental.pallas import tpu as pltpu


# ---------------------------------------------------------------------------
# LSTM cell math (PyTorch gate order: i, f, g, o); weights stored as (in, 4H)
# ---------------------------------------------------------------------------
def _sigmoid(x):
    return 1.0 / (1.0 + jnp.exp(-x))


def _lstm_cell(x, h, c, w_ih, w_hh, b, H):
    gates = (jnp.dot(x, w_ih, preferred_element_type=jnp.float32)
             + jnp.dot(h, w_hh, preferred_element_type=jnp.float32)
             + b)                                     # (rows, 4H)
    i_g = _sigmoid(gates[:, 0 * H:1 * H])
    f_g = _sigmoid(gates[:, 1 * H:2 * H])
    g_g = jnp.tanh(gates[:, 2 * H:3 * H])
    o_g = _sigmoid(gates[:, 3 * H:4 * H])
    c_new = f_g * c + i_g * g_g
    h_new = o_g * jnp.tanh(c_new)
    return h_new, c_new


# ---------------------------------------------------------------------------
# fused encoder (grid over time chunks) + decoder (at the last grid step)
# ---------------------------------------------------------------------------
def _seq2seq_kernel(H, T_CHUNK, B, MAX_DEC,
                    lens_smem,                      # (B,) int32, SMEM prefetch
                    src_ref, lens_v_ref, x0_ref,
                    w_ih_e_ref, w_hh_e_ref, b_e_ref,
                    w_ih_d_ref, w_hh_d_ref, b_d_ref,
                    out_ref,
                    h_scr, c_scr):
    t_blk = pl.program_id(0)

    @pl.when(t_blk == 0)
    def _():
        h_scr[...] = jnp.zeros_like(h_scr)
        c_scr[...] = jnp.zeros_like(c_scr)

    # ---------------- encoder: T_CHUNK time steps of this src block ---------
    base_t = t_blk * T_CHUNK
    lens_v = lens_v_ref[...]                        # (B, 1) int32
    w_ih_e = w_ih_e_ref[...]
    w_hh_e = w_hh_e_ref[...]
    b_e = b_e_ref[...]

    h = h_scr[...]
    c = c_scr[...]
    for i in range(T_CHUNK):                        # static, fully unrolled
        x_t = src_ref[i]                            # (B, I)
        h_new, c_new = _lstm_cell(x_t, h, c, w_ih_e, w_hh_e, b_e, H)
        # packed-sequence semantics: freeze state once t >= length[b]
        m = (base_t + i) < lens_v                   # (B, 1) bool
        h = jnp.where(m, h_new, h)
        c = jnp.where(m, c_new, c)
    h_scr[...] = h
    c_scr[...] = c

    # ---------------- decoder: only once the encoder state is final ---------
    @pl.when(t_blk == pl.num_programs(0) - 1)
    def _():
        w_ih_d = w_ih_d_ref[...]
        w_hh_d = w_hh_d_ref[...]
        b_d = b_d_ref[...]
        row_ids = lax.broadcasted_iota(jnp.int32, (B, 1), 0)

        cur0 = x0_ref[...].astype(jnp.float32)      # tgt[0, 0, :], (1, H)
        out0 = jnp.zeros((B, H), jnp.float32)

        def per_elem(j, carry):
            cur, out_acc = carry
            L = lens_smem[j]                        # scalar length from SMEM
            sel = row_ids == j                      # (B, 1) one-hot row select
            hj = jnp.sum(jnp.where(sel, h, 0.0), axis=0, keepdims=True)
            cj = jnp.sum(jnp.where(sel, c, 0.0), axis=0, keepdims=True)

            def step(i, st):
                cur, hj, cj, oj = st
                h_new, c_new = _lstm_cell(cur, hj, cj, w_ih_d, w_hh_d, b_d, H)
                act = i < L                         # first L steps are real
                last = i == L - 1                   # output = final step's h
                feed = i < L - 1                    # feed-back only inside loop
                hj = jnp.where(act, h_new, hj)
                cj = jnp.where(act, c_new, cj)
                oj = jnp.where(last, h_new, oj)
                cur = jnp.where(feed, h_new, cur)
                return cur, hj, cj, oj

            cur, _, _, oj = lax.fori_loop(
                0, MAX_DEC, step,
                (cur, hj, cj, jnp.zeros((1, H), jnp.float32)),
                unroll=True)
            out_acc = jnp.where(sel, oj, out_acc)   # scatter row j
            return cur, out_acc                     # cur carries across j

        _, out_final = lax.fori_loop(0, B, per_elem, (cur0, out0))
        out_ref[...] = out_final.astype(out_ref.dtype)


def seq2seq_lstm_forward(src, tgt, lengths, params, t_chunk=16):
    w_ih_e, w_hh_e, b_e, w_ih_d, w_hh_d, b_d = params
    S, B, I = src.shape
    H4 = w_ih_e.shape[1]
    H = H4 // 4
    t_chunk = min(t_chunk, S)
    num_chunks = pl.cdiv(S, t_chunk)

    lens_i32 = lengths.astype(jnp.int32)            # -> SMEM (scalar prefetch)
    lens_v = lens_i32.reshape(B, 1)                 # -> VMEM (vector mask)
    x0 = tgt[0, 0][None, :]                         # only tgt[0,0,:] is used

    kernel = functools.partial(_seq2seq_kernel, H, t_chunk, B, S)

    flops = 2 * S * B * (I + H) * H4 + 2 * B * S * (2 * H) * H4
    transcendentals = 10 * H * S * B
    bytes_accessed = (src.size * 4
                      + (w_ih_e.size + w_hh_e.size + b_e.size
                         + w_ih_d.size + w_hh_d.size + b_d.size) * 4
                      + (lens_i32.size + lens_v.size) * 4
                      + x0.size * 4 + B * H * 4)

    return pl.pallas_call(
        kernel,
        out_shape=jax.ShapeDtypeStruct((B, H), jnp.float32),
        grid_spec=pltpu.PrefetchScalarGridSpec(
            num_scalar_prefetch=1,                  # lengths -> SMEM
            grid=(num_chunks,),
            in_specs=[
                pl.BlockSpec((t_chunk, B, I), lambda t, lens: (t, 0, 0)),
                pl.BlockSpec((B, 1), lambda t, lens: (0, 0)),
                pl.BlockSpec((1, H), lambda t, lens: (0, 0)),
                pl.BlockSpec((I, H4), lambda t, lens: (0, 0)),
                pl.BlockSpec((H, H4), lambda t, lens: (0, 0)),
                pl.BlockSpec((1, H4), lambda t, lens: (0, 0)),
                pl.BlockSpec((H, H4), lambda t, lens: (0, 0)),
                pl.BlockSpec((H, H4), lambda t, lens: (0, 0)),
                pl.BlockSpec((1, H4), lambda t, lens: (0, 0)),
            ],
            out_specs=pl.BlockSpec((B, H), lambda t, lens: (0, 0)),
            scratch_shapes=[pltpu.VMEM((B, H), jnp.float32),
                            pltpu.VMEM((B, H), jnp.float32)],
        ),
        compiler_params=pltpu.CompilerParams(
            dimension_semantics=("arbitrary",)),    # true recurrence over time
        cost_estimate=pl.CostEstimate(
            flops=flops, transcendentals=transcendentals,
            bytes_accessed=bytes_accessed),
    )(lens_i32, src, lens_v, x0, w_ih_e, w_hh_e, b_e, w_ih_d, w_hh_d, b_d)


# ---------------------------------------------------------------------------
# parameter init (mimics nn.LSTM's U(-1/sqrt(H), 1/sqrt(H)); weights stored
# transposed as (in, 4H); b = b_ih + b_hh)
# ---------------------------------------------------------------------------
def init_params(key, input_size, hidden_size):
    H = hidden_size
    k = jax.random.split(key, 8)
    s = 1.0 / jnp.sqrt(H)
    w_ih_e = jax.random.uniform(k[0], (input_size, 4 * H), jnp.float32, -s, s)
    w_hh_e = jax.random.uniform(k[1], (H, 4 * H), jnp.float32, -s, s)
    b_e = (jax.random.uniform(k[2], (1, 4 * H), jnp.float32, -s, s)
           + jax.random.uniform(k[3], (1, 4 * H), jnp.float32, -s, s))
    # decoder LSTM: input=hidden_size, hidden=output_size (== hidden_size here)
    w_ih_d = jax.random.uniform(k[4], (H, 4 * H), jnp.float32, -s, s)
    w_hh_d = jax.random.uniform(k[5], (H, 4 * H), jnp.float32, -s, s)
    b_d = (jax.random.uniform(k[6], (1, 4 * H), jnp.float32, -s, s)
           + jax.random.uniform(k[7], (1, 4 * H), jnp.float32, -s, s))
    return w_ih_e, w_hh_e, b_e, w_ih_d, w_hh_d, b_d


# ---------------------------------------------------------------------------
# pure-JAX reference of the PyTorch forward (correctness check)
# ---------------------------------------------------------------------------
def _ref_cell(x, h, c, w_ih, w_hh, b, H):
    hp = jax.lax.Precision.HIGHEST
    gates = (jnp.dot(x, w_ih, precision=hp) + jnp.dot(h, w_hh, precision=hp) + b)
    i = jax.nn.sigmoid(gates[:, :H])
    f = jax.nn.sigmoid(gates[:, H:2 * H])
    g = jnp.tanh(gates[:, 2 * H:3 * H])
    o = jax.nn.sigmoid(gates[:, 3 * H:])
    c2 = f * c + i * g
    h2 = o * jnp.tanh(c2)
    return h2, c2


def reference_forward(src, tgt, lengths, params):
    w_ih_e, w_hh_e, b_e, w_ih_d, w_hh_d, b_d = params
    S, B, _ = src.shape
    H = w_hh_e.shape[0]
    lens = [int(v) for v in lengths]

    h = jnp.zeros((B, H), jnp.float32)
    c = jnp.zeros((B, H), jnp.float32)
    for t in range(S):
        h2, c2 = _ref_cell(src[t], h, c, w_ih_e, w_hh_e, b_e, H)
        m = jnp.array([[1.0] if t < L else [0.0] for L in lens], jnp.float32)
        h = m * h2 + (1.0 - m) * h
        c = m * c2 + (1.0 - m) * c

    cur = tgt[0, 0][None, :]
    outs = []
    for j in range(B):
        hj, cj = h[j:j + 1], c[j:j + 1]
        for _ in range(1, lens[j]):
            hj, cj = _ref_cell(cur, hj, cj, w_ih_d, w_hh_d, b_d, H)
            cur = hj
        h_last, _ = _ref_cell(cur, hj, cj, w_ih_d, w_hh_d, b_d, H)
        outs.append(h_last)                 # curr_input NOT updated here
    return jnp.concatenate(outs, axis=0)


if __name__ == "__main__":
    key = jax.random.PRNGKey(0)
    ks, kt, kp = jax.random.split(key, 3)

    S, B = 8, 2
    INPUT_SIZE = 32
    HIDDEN = 32        # output_size == hidden_size (required by the PyTorch
                       # module's decoder wiring); 4*HIDDEN = 128 => lane-dense

    src = jax.random.normal(ks, (S, B, INPUT_SIZE), jnp.float32)
    tgt = jax.random.normal(kt, (S, B, HIDDEN), jnp.float32)
    lengths = jnp.array([8, 5], jnp.int32)
    assert int(jnp.max(lengths)) <= S and int(jnp.min(lengths)) >= 1

    params = init_params(kp, INPUT_SIZE, HIDDEN)

    out = seq2seq_lstm_forward(src, tgt, lengths, params)
    out = jax.block_until_ready(out)

    ref = reference_forward(src, tgt, lengths, params)
    assert out.shape == (B, HIDDEN)
    assert jnp.allclose(out, ref, atol=2e-3, rtol=2e-3), (
        float(jnp.max(jnp.abs(out - ref))))

    print("KERNEL_OK")
</pallas_src>

<mosaic_0001>
module attributes {stable_mosaic.version = 11 : i64} {
  func.func @_seq2seq_kernel(%arg0: i32, %arg1: memref<2xi32, #tpu.memory_space<smem>>, %arg2: memref<8x2x32xf32, #tpu.memory_space<vmem>>, %arg3: memref<2x1xi32, #tpu.memory_space<vmem>>, %arg4: memref<1x32xf32, #tpu.memory_space<vmem>>, %arg5: memref<32x128xf32, #tpu.memory_space<vmem>>, %arg6: memref<32x128xf32, #tpu.memory_space<vmem>>, %arg7: memref<1x128xf32, #tpu.memory_space<vmem>>, %arg8: memref<32x128xf32, #tpu.memory_space<vmem>>, %arg9: memref<32x128xf32, #tpu.memory_space<vmem>>, %arg10: memref<1x128xf32, #tpu.memory_space<vmem>>, %arg11: memref<2x32xf32, #tpu.memory_space<vmem>>, %arg12: memref<2x32xf32, #tpu.memory_space<vmem>>, %arg13: memref<2x32xf32, #tpu.memory_space<vmem>>) attributes {dimension_semantics = [#tpu.dimension_semantics<arbitrary>], iteration_bounds = array<i64: 1>, scalar_prefetch = 1 : i64, scratch_operands = 2 : i64, tpu.core_type = #tpu.core_type<tc>, window_params = [{transform_indices = @transform_0, window_bounds = array<i64: 8, 2, 32>}, {pipeline_mode = #tpu.pipeline_mode<synchronous>, transform_indices = @transform_1, window_bounds = array<i64: 2, 1>}, {pipeline_mode = #tpu.pipeline_mode<synchronous>, transform_indices = @transform_2, window_bounds = array<i64: 1, 32>}, {pipeline_mode = #tpu.pipeline_mode<synchronous>, transform_indices = @transform_3, window_bounds = array<i64: 32, 128>}, {pipeline_mode = #tpu.pipeline_mode<synchronous>, transform_indices = @transform_4, window_bounds = array<i64: 32, 128>}, {pipeline_mode = #tpu.pipeline_mode<synchronous>, transform_indices = @transform_5, window_bounds = array<i64: 1, 128>}, {pipeline_mode = #tpu.pipeline_mode<synchronous>, transform_indices = @transform_6, window_bounds = array<i64: 32, 128>}, {pipeline_mode = #tpu.pipeline_mode<synchronous>, transform_indices = @transform_7, window_bounds = array<i64: 32, 128>}, {pipeline_mode = #tpu.pipeline_mode<synchronous>, transform_indices = @transform_8, window_bounds = array<i64: 1, 128>}, {pipeline_mode = #tpu.pipeline_mode<synchronous>, transform_indices = @transform_9, window_bounds = array<i64: 2, 32>}]} {
    %c0_i32 = arith.constant 0 : i32
    %0 = arith.cmpi eq, %arg0, %c0_i32 : i32
    %1 = arith.extui %0 : i1 to i32
    %c0_i32_0 = arith.constant 0 : i32
    %2 = arith.cmpi ne, %1, %c0_i32_0 : i32
    scf.if %2 {
      %cst_123 = arith.constant 0.000000e+00 : f32
      %391 = vector.broadcast %cst_123 : f32 to vector<2x32xf32>
      %c0_124 = arith.constant 0 : index
      %c0_125 = arith.constant 0 : index
      %392 = vector.load %arg12[%c0_124, %c0_125] : memref<2x32xf32, #tpu.memory_space<vmem>>, vector<2x32xf32>
      tpu.vector_store %arg12[%c0_124, %c0_125], %391 {strides = array<i32>} : memref<2x32xf32, #tpu.memory_space<vmem>>, vector<2x32xf32>,
      %cst_126 = arith.constant 0.000000e+00 : f32
      %393 = vector.broadcast %cst_126 : f32 to vector<2x32xf32>
      %c0_127 = arith.constant 0 : index
      %c0_128 = arith.constant 0 : index
      %394 = vector.load %arg13[%c0_127, %c0_128] : memref<2x32xf32, #tpu.memory_space<vmem>>, vector<2x32xf32>
      tpu.vector_store %arg13[%c0_127, %c0_128], %393 {strides = array<i32>} : memref<2x32xf32, #tpu.memory_space<vmem>>, vector<2x32xf32>,
    } else {
    }
    %c8_i32 = arith.constant 8 : i32
    %3 = arith.muli %arg0, %c8_i32 : i32
    %c0 = arith.constant 0 : index
    %c0_1 = arith.constant 0 : index
    %4 = vector.load %arg3[%c0, %c0_1] : memref<2x1xi32, #tpu.memory_space<vmem>>, vector<2x1xi32>
    %c0_2 = arith.constant 0 : index
    %c0_3 = arith.constant 0 : index
    %5 = vector.load %arg5[%c0_2, %c0_3] : memref<32x128xf32, #tpu.memory_space<vmem>>, vector<32x128xf32>
    %c0_4 = arith.constant 0 : index
    %c0_5 = arith.constant 0 : index
    %6 = vector.load %arg6[%c0_4, %c0_5] : memref<32x128xf32, #tpu.memory_space<vmem>>, vector<32x128xf32>
    %c0_6 = arith.constant 0 : index
    %c0_7 = arith.constant 0 : index
    %7 = vector.load %arg7[%c0_6, %c0_7] : memref<1x128xf32, #tpu.memory_space<vmem>>, vector<1x128xf32>
    %c0_8 = arith.constant 0 : index
    %c0_9 = arith.constant 0 : index
    %8 = vector.load %arg12[%c0_8, %c0_9] : memref<2x32xf32, #tpu.memory_space<vmem>>, vector<2x32xf32>
    %c0_10 = arith.constant 0 : index
    %c0_11 = arith.constant 0 : index
    %9 = vector.load %arg13[%c0_10, %c0_11] : memref<2x32xf32, #tpu.memory_space<vmem>>, vector<2x32xf32>
    %c0_12 = arith.constant 0 : index
    %c0_13 = arith.constant 0 : index
    %c0_14 = arith.constant 0 : index
    %10 = vector.load %arg2[%c0_12, %c0_13, %c0_14] : memref<8x2x32xf32, #tpu.memory_space<vmem>>, vector<1x2x32xf32>
    %11 = vector.shape_cast %10 : vector<1x2x32xf32> to vector<2x32xf32>
    %cst = arith.constant dense<0.000000e+00> : vector<2x128xf32>
    %12 = tpu.matmul %11, %5, %cst {dimension_numbers = #tpu.dot_dimension_numbers<[1], [0], [0], [1], [0, 0, 1, 1], [], []>} : vector<2x32xf32>, vector<32x128xf32>, vector<2x128xf32> -> vector<2x128xf32>
    %cst_15 = arith.constant dense<0.000000e+00> : vector<2x128xf32>
    %13 = tpu.matmul %8, %6, %cst_15 {dimension_numbers = #tpu.dot_dimension_numbers<[1], [0], [0], [1], [0, 0, 1, 1], [], []>} : vector<2x32xf32>, vector<32x128xf32>, vector<2x128xf32> -> vector<2x128xf32>
    %14 = arith.addf %12, %13 : vector<2x128xf32>
    %15 = vector.broadcast %7 : vector<1x128xf32> to vector<2x128xf32>
    %16 = arith.addf %14, %15 : vector<2x128xf32>
    %17 = vector.extract_strided_slice %16 {offsets = [0, 0], sizes = [2, 32], strides = [1, 1]} : vector<2x128xf32> to vector<2x32xf32>
    %cst_16 = arith.constant 0.000000e+00 : f32
    %18 = vector.broadcast %cst_16 : f32 to vector<2x32xf32>
    %19 = arith.subf %18, %17 : vector<2x32xf32>
    %20 = math.exp %19 : vector<2x32xf32>
    %cst_17 = arith.constant 1.000000e+00 : f32
    %21 = vector.broadcast %cst_17 : f32 to vector<2x32xf32>
    %22 = arith.addf %21, %20 : vector<2x32xf32>
    %cst_18 = arith.constant 1.000000e+00 : f32
    %23 = vector.broadcast %cst_18 : f32 to vector<2x32xf32>
    %24 = arith.divf %23, %22 : vector<2x32xf32>
    %25 = vector.extract_strided_slice %16 {offsets = [0, 32], sizes = [2, 32], strides = [1, 1]} : vector<2x128xf32> to vector<2x32xf32>
    %cst_19 = arith.constant 0.000000e+00 : f32
    %26 = vector.broadcast %cst_19 : f32 to vector<2x32xf32>
    %27 = arith.subf %26, %25 : vector<2x32xf32>
    %28 = math.exp %27 : vector<2x32xf32>
    %cst_20 = arith.constant 1.000000e+00 : f32
    %29 = vector.broadcast %cst_20 : f32 to vector<2x32xf32>
    %30 = arith.addf %29, %28 : vector<2x32xf32>
    %cst_21 = arith.constant 1.000000e+00 : f32
    %31 = vector.broadcast %cst_21 : f32 to vector<2x32xf32>
    %32 = arith.divf %31, %30 : vector<2x32xf32>
    %33 = vector.extract_strided_slice %16 {offsets = [0, 64], sizes = [2, 32], strides = [1, 1]} : vector<2x128xf32> to vector<2x32xf32>
    %34 = math.tanh %33 : vector<2x32xf32>
    %35 = vector.extract_strided_slice %16 {offsets = [0, 96], sizes = [2, 32], strides = [1, 1]} : vector<2x128xf32> to vector<2x32xf32>
    %cst_22 = arith.constant 0.000000e+00 : f32
    %36 = vector.broadcast %cst_22 : f32 to vector<2x32xf32>
    %37 = arith.subf %36, %35 : vector<2x32xf32>
    %38 = math.exp %37 : vector<2x32xf32>
    %cst_23 = arith.constant 1.000000e+00 : f32
    %39 = vector.broadcast %cst_23 : f32 to vector<2x32xf32>
    %40 = arith.addf %39, %38 : vector<2x32xf32>
    %cst_24 = arith.constant 1.000000e+00 : f32
    %41 = vector.broadcast %cst_24 : f32 to vector<2x32xf32>
    %42 = arith.divf %41, %40 : vector<2x32xf32>
    %43 = arith.mulf %32, %9 : vector<2x32xf32>
    %44 = arith.mulf %24, %34 : vector<2x32xf32>
    %45 = arith.addf %43, %44 : vector<2x32xf32>
    %46 = math.tanh %45 : vector<2x32xf32>
    %47 = arith.mulf %42, %46 : vector<2x32xf32>
    %c0_i32_25 = arith.constant 0 : i32
    %48 = arith.addi %3, %c0_i32_25 : i32
    %49 = vector.broadcast %48 : i32 to vector<2x1xi32>
    %50 = arith.cmpi slt, %49, %4 : vector<2x1xi32>
    %51 = vector.shape_cast %50 : vector<2x1xi1> to vector<2x1xi1>
    %52 = vector.broadcast %51 : vector<2x1xi1> to vector<2x32xi1>
    %53 = arith.select %52, %47, %8 : vector<2x32xi1>, vector<2x32xf32>
    %54 = vector.shape_cast %50 : vector<2x1xi1> to vector<2x1xi1>
    %55 = vector.broadcast %54 : vector<2x1xi1> to vector<2x32xi1>
    %56 = arith.select %55, %45, %9 : vector<2x32xi1>, vector<2x32xf32>
    %c1 = arith.constant 1 : index
    %c0_26 = arith.constant 0 : index
    %c0_27 = arith.constant 0 : index
    %57 = vector.load %arg2[%c1, %c0_26, %c0_27] : memref<8x2x32xf32, #tpu.memory_space<vmem>>, vector<1x2x32xf32>
    %58 = vector.shape_cast %57 : vector<1x2x32xf32> to vector<2x32xf32>
    %cst_28 = arith.constant dense<0.000000e+00> : vector<2x128xf32>
    %59 = tpu.matmul %58, %5, %cst_28 {dimension_numbers = #tpu.dot_dimension_numbers<[1], [0], [0], [1], [0, 0, 1, 1], [], []>} : vector<2x32xf32>, vector<32x128xf32>, vector<2x128xf32> -> vector<2x128xf32>
    %cst_29 = arith.constant dense<0.000000e+00> : vector<2x128xf32>
    %60 = tpu.matmul %53, %6, %cst_29 {dimension_numbers = #tpu.dot_dimension_numbers<[1], [0], [0], [1], [0, 0, 1, 1], [], []>} : vector<2x32xf32>, vector<32x128xf32>, vector<2x128xf32> -> vector<2x128xf32>
    %61 = arith.addf %59, %60 : vector<2x128xf32>
    %62 = vector.broadcast %7 : vector<1x128xf32> to vector<2x128xf32>
    %63 = arith.addf %61, %62 : vector<2x128xf32>
    %64 = vector.extract_strided_slice %63 {offsets = [0, 0], sizes = [2, 32], strides = [1, 1]} : vector<2x128xf32> to vector<2x32xf32>
    %cst_30 = arith.constant 0.000000e+00 : f32
    %65 = vector.broadcast %cst_30 : f32 to vector<2x32xf32>
    %66 = arith.subf %65, %64 : vector<2x32xf32>
    %67 = math.exp %66 : vector<2x32xf32>
    %cst_31 = arith.constant 1.000000e+00 : f32
    %68 = vector.broadcast %cst_31 : f32 to vector<2x32xf32>
    %69 = arith.addf %68, %67 : vector<2x32xf32>
    %cst_32 = arith.constant 1.000000e+00 : f32
    %70 = vector.broadcast %cst_32 : f32 to vector<2x32xf32>
    %71 = arith.divf %70, %69 : vector<2x32xf32>
    %72 = vector.extract_strided_slice %63 {offsets = [0, 32], sizes = [2, 32], strides = [1, 1]} : vector<2x128xf32> to vector<2x32xf32>
    %cst_33 = arith.constant 0.000000e+00 : f32
    %73 = vector.broadcast %cst_33 : f32 to vector<2x32xf32>
    %74 = arith.subf %73, %72 : vector<2x32xf32>
    %75 = math.exp %74 : vector<2x32xf32>
    %cst_34 = arith.constant 1.000000e+00 : f32
    %76 = vector.broadcast %cst_34 : f32 to vector<2x32xf32>
    %77 = arith.addf %76, %75 : vector<2x32xf32>
    %cst_35 = arith.constant 1.000000e+00 : f32
    %78 = vector.broadcast %cst_35 : f32 to vector<2x32xf32>
    %79 = arith.divf %78, %77 : vector<2x32xf32>
    %80 = vector.extract_strided_slice %63 {offsets = [0, 64], sizes = [2, 32], strides = [1, 1]} : vector<2x128xf32> to vector<2x32xf32>
    %81 = math.tanh %80 : vector<2x32xf32>
    %82 = vector.extract_strided_slice %63 {offsets = [0, 96], sizes = [2, 32], strides = [1, 1]} : vector<2x128xf32> to vector<2x32xf32>
    %cst_36 = arith.constant 0.000000e+00 : f32
    %83 = vector.broadcast %cst_36 : f32 to vector<2x32xf32>
    %84 = arith.subf %83, %82 : vector<2x32xf32>
    %85 = math.exp %84 : vector<2x32xf32>
    %cst_37 = arith.constant 1.000000e+00 : f32
    %86 = vector.broadcast %cst_37 : f32 to vector<2x32xf32>
    %87 = arith.addf %86, %85 : vector<2x32xf32>
    %cst_38 = arith.constant 1.000000e+00 : f32
    %88 = vector.broadcast %cst_38 : f32 to vector<2x32xf32>
    %89 = arith.divf %88, %87 : vector<2x32xf32>
    %90 = arith.mulf %79, %56 : vector<2x32xf32>
    %91 = arith.mulf %71, %81 : vector<2x32xf32>
    %92 = arith.addf %90, %91 : vector<2x32xf32>
    %93 = math.tanh %92 : vector<2x32xf32>
    %94 = arith.mulf %89, %93 : vector<2x32xf32>
    %c1_i32 = arith.constant 1 : i32
    %95 = arith.addi %3, %c1_i32 : i32
    %96 = vector.broadcast %95 : i32 to vector<2x1xi32>
    %97 = arith.cmpi slt, %96, %4 : vector<2x1xi32>
    %98 = vector.shape_cast %97 : vector<2x1xi1> to vector<2x1xi1>
    %99 = vector.broadcast %98 : vector<2x1xi1> to vector<2x32xi1>
    %100 = arith.select %99, %94, %53 : vector<2x32xi1>, vector<2x32xf32>
    %101 = vector.shape_cast %97 : vector<2x1xi1> to vector<2x1xi1>
    %102 = vector.broadcast %101 : vector<2x1xi1> to vector<2x32xi1>
    %103 = arith.select %102, %92, %56 : vector<2x32xi1>, vector<2x32xf32>
    %c2 = arith.constant 2 : index
    %c0_39 = arith.constant 0 : index
    %c0_40 = arith.constant 0 : index
    %104 = vector.load %arg2[%c2, %c0_39, %c0_40] : memref<8x2x32xf32, #tpu.memory_space<vmem>>, vector<1x2x32xf32>
    %105 = vector.shape_cast %104 : vector<1x2x32xf32> to vector<2x32xf32>
    %cst_41 = arith.constant dense<0.000000e+00> : vector<2x128xf32>
    %106 = tpu.matmul %105, %5, %cst_41 {dimension_numbers = #tpu.dot_dimension_numbers<[1], [0], [0], [1], [0, 0, 1, 1], [], []>} : vector<2x32xf32>, vector<32x128xf32>, vector<2x128xf32> -> vector<2x128xf32>
    %cst_42 = arith.constant dense<0.000000e+00> : vector<2x128xf32>
    %107 = tpu.matmul %100, %6, %cst_42 {dimension_numbers = #tpu.dot_dimension_numbers<[1], [0], [0], [1], [0, 0, 1, 1], [], []>} : vector<2x32xf32>, vector<32x128xf32>, vector<2x128xf32> -> vector<2x128xf32>
    %108 = arith.addf %106, %107 : vector<2x128xf32>
    %109 = vector.broadcast %7 : vector<1x128xf32> to vector<2x128xf32>
    %110 = arith.addf %108, %109 : vector<2x128xf32>
    %111 = vector.extract_strided_slice %110 {offsets = [0, 0], sizes = [2, 32], strides = [1, 1]} : vector<2x128xf32> to vector<2x32xf32>
    %cst_43 = arith.constant 0.000000e+00 : f32
    %112 = vector.broadcast %cst_43 : f32 to vector<2x32xf32>
    %113 = arith.subf %112, %111 : vector<2x32xf32>
    %114 = math.exp %113 : vector<2x32xf32>
    %cst_44 = arith.constant 1.000000e+00 : f32
    %115 = vector.broadcast %cst_44 : f32 to vector<2x32xf32>
    %116 = arith.addf %115, %114 : vector<2x32xf32>
    %cst_45 = arith.constant 1.000000e+00 : f32
    %117 = vector.broadcast %cst_45 : f32 to vector<2x32xf32>
    %118 = arith.divf %117, %116 : vector<2x32xf32>
    %119 = vector.extract_strided_slice %110 {offsets = [0, 32], sizes = [2, 32], strides = [1, 1]} : vector<2x128xf32> to vector<2x32xf32>
    %cst_46 = arith.constant 0.000000e+00 : f32
    %120 = vector.broadcast %cst_46 : f32 to vector<2x32xf32>
    %121 = arith.subf %120, %119 : vector<2x32xf32>
    %122 = math.exp %121 : vector<2x32xf32>
    %cst_47 = arith.constant 1.000000e+00 : f32
    %123 = vector.broadcast %cst_47 : f32 to vector<2x32xf32>
    %124 = arith.addf %123, %122 : vector<2x32xf32>
    %cst_48 = arith.constant 1.000000e+00 : f32
    %125 = vector.broadcast %cst_48 : f32 to vector<2x32xf32>
    %126 = arith.divf %125, %124 : vector<2x32xf32>
    %127 = vector.extract_strided_slice %110 {offsets = [0, 64], sizes = [2, 32], strides = [1, 1]} : vector<2x128xf32> to vector<2x32xf32>
    %128 = math.tanh %127 : vector<2x32xf32>
    %129 = vector.extract_strided_slice %110 {offsets = [0, 96], sizes = [2, 32], strides = [1, 1]} : vector<2x128xf32> to vector<2x32xf32>
    %cst_49 = arith.constant 0.000000e+00 : f32
    %130 = vector.broadcast %cst_49 : f32 to vector<2x32xf32>
    %131 = arith.subf %130, %129 : vector<2x32xf32>
    %132 = math.exp %131 : vector<2x32xf32>
    %cst_50 = arith.constant 1.000000e+00 : f32
    %133 = vector.broadcast %cst_50 : f32 to vector<2x32xf32>
    %134 = arith.addf %133, %132 : vector<2x32xf32>
    %cst_51 = arith.constant 1.000000e+00 : f32
    %135 = vector.broadcast %cst_51 : f32 to vector<2x32xf32>
    %136 = arith.divf %135, %134 : vector<2x32xf32>
    %137 = arith.mulf %126, %103 : vector<2x32xf32>
    %138 = arith.mulf %118, %128 : vector<2x32xf32>
    %139 = arith.addf %137, %138 : vector<2x32xf32>
    %140 = math.tanh %139 : vector<2x32xf32>
    %141 = arith.mulf %136, %140 : vector<2x32xf32>
    %c2_i32 = arith.constant 2 : i32
    %142 = arith.addi %3, %c2_i32 : i32
    %143 = vector.broadcast %142 : i32 to vector<2x1xi32>
    %144 = arith.cmpi slt, %143, %4 : vector<2x1xi32>
    %145 = vector.shape_cast %144 : vector<2x1xi1> to vector<2x1xi1>
    %146 = vector.broadcast %145 : vector<2x1xi1> to vector<2x32xi1>
    %147 = arith.select %146, %141, %100 : vector<2x32xi1>, vector<2x32xf32>
    %148 = vector.shape_cast %144 : vector<2x1xi1> to vector<2x1xi1>
    %149 = vector.broadcast %148 : vector<2x1xi1> to vector<2x32xi1>
    %150 = arith.select %149, %139, %103 : vector<2x32xi1>, vector<2x32xf32>
    %c3 = arith.constant 3 : index
    %c0_52 = arith.constant 0 : index
    %c0_53 = arith.constant 0 : index
    %151 = vector.load %arg2[%c3, %c0_52, %c0_53] : memref<8x2x32xf32, #tpu.memory_space<vmem>>, vector<1x2x32xf32>
    %152 = vector.shape_cast %151 : vector<1x2x32xf32> to vector<2x32xf32>
    %cst_54 = arith.constant dense<0.000000e+00> : vector<2x128xf32>
    %153 = tpu.matmul %152, %5, %cst_54 {dimension_numbers = #tpu.dot_dimension_numbers<[1], [0], [0], [1], [0, 0, 1, 1], [], []>} : vector<2x32xf32>, vector<32x128xf32>, vector<2x128xf32> -> vector<2x128xf32>
    %cst_55 = arith.constant dense<0.000000e+00> : vector<2x128xf32>
    %154 = tpu.matmul %147, %6, %cst_55 {dimension_numbers = #tpu.dot_dimension_numbers<[1], [0], [0], [1], [0, 0, 1, 1], [], []>} : vector<2x32xf32>, vector<32x128xf32>, vector<2x128xf32> -> vector<2x128xf32>
    %155 = arith.addf %153, %154 : vector<2x128xf32>
    %156 = vector.broadcast %7 : vector<1x128xf32> to vector<2x128xf32>
    %157 = arith.addf %155, %156 : vector<2x128xf32>
    %158 = vector.extract_strided_slice %157 {offsets = [0, 0], sizes = [2, 32], strides = [1, 1]} : vector<2x128xf32> to vector<2x32xf32>
    %cst_56 = arith.constant 0.000000e+00 : f32
    %159 = vector.broadcast %cst_56 : f32 to vector<2x32xf32>
    %160 = arith.subf %159, %158 : vector<2x32xf32>
    %161 = math.exp %160 : vector<2x32xf32>
    %cst_57 = arith.constant 1.000000e+00 : f32
    %162 = vector.broadcast %cst_57 : f32 to vector<2x32xf32>
    %163 = arith.addf %162, %161 : vector<2x32xf32>
    %cst_58 = arith.constant 1.000000e+00 : f32
    %164 = vector.broadcast %cst_58 : f32 to vector<2x32xf32>
    %165 = arith.divf %164, %163 : vector<2x32xf32>
    %166 = vector.extract_strided_slice %157 {offsets = [0, 32], sizes = [2, 32], strides = [1, 1]} : vector<2x128xf32> to vector<2x32xf32>
    %cst_59 = arith.constant 0.000000e+00 : f32
    %167 = vector.broadcast %cst_59 : f32 to vector<2x32xf32>
    %168 = arith.subf %167, %166 : vector<2x32xf32>
    %169 = math.exp %168 : vector<2x32xf32>
    %cst_60 = arith.constant 1.000000e+00 : f32
    %170 = vector.broadcast %cst_60 : f32 to vector<2x32xf32>
    %171 = arith.addf %170, %169 : vector<2x32xf32>
    %cst_61 = arith.constant 1.000000e+00 : f32
    %172 = vector.broadcast %cst_61 : f32 to vector<2x32xf32>
    %173 = arith.divf %172, %171 : vector<2x32xf32>
    %174 = vector.extract_strided_slice %157 {offsets = [0, 64], sizes = [2, 32], strides = [1, 1]} : vector<2x128xf32> to vector<2x32xf32>
    %175 = math.tanh %174 : vector<2x32xf32>
    %176 = vector.extract_strided_slice %157 {offsets = [0, 96], sizes = [2, 32], strides = [1, 1]} : vector<2x128xf32> to vector<2x32xf32>
    %cst_62 = arith.constant 0.000000e+00 : f32
    %177 = vector.broadcast %cst_62 : f32 to vector<2x32xf32>
    %178 = arith.subf %177, %176 : vector<2x32xf32>
    %179 = math.exp %178 : vector<2x32xf32>
    %cst_63 = arith.constant 1.000000e+00 : f32
    %180 = vector.broadcast %cst_63 : f32 to vector<2x32xf32>
    %181 = arith.addf %180, %179 : vector<2x32xf32>
    %cst_64 = arith.constant 1.000000e+00 : f32
    %182 = vector.broadcast %cst_64 : f32 to vector<2x32xf32>
    %183 = arith.divf %182, %181 : vector<2x32xf32>
    %184 = arith.mulf %173, %150 : vector<2x32xf32>
    %185 = arith.mulf %165, %175 : vector<2x32xf32>
    %186 = arith.addf %184, %185 : vector<2x32xf32>
    %187 = math.tanh %186 : vector<2x32xf32>
    %188 = arith.mulf %183, %187 : vector<2x32xf32>
    %c3_i32 = arith.constant 3 : i32
    %189 = arith.addi %3, %c3_i32 : i32
    %190 = vector.broadcast %189 : i32 to vector<2x1xi32>
    %191 = arith.cmpi slt, %190, %4 : vector<2x1xi32>
    %192 = vector.shape_cast %191 : vector<2x1xi1> to vector<2x1xi1>
    %193 = vector.broadcast %192 : vector<2x1xi1> to vector<2x32xi1>
    %194 = arith.select %193, %188, %147 : vector<2x32xi1>, vector<2x32xf32>
    %195 = vector.shape_cast %191 : vector<2x1xi1> to vector<2x1xi1>
    %196 = vector.broadcast %195 : vector<2x1xi1> to vector<2x32xi1>
    %197 = arith.select %196, %186, %150 : vector<2x32xi1>, vector<2x32xf32>
    %c4 = arith.constant 4 : index
    %c0_65 = arith.constant 0 : index
    %c0_66 = arith.constant 0 : index
    %198 = vector.load %arg2[%c4, %c0_65, %c0_66] : memref<8x2x32xf32, #tpu.memory_space<vmem>>, vector<1x2x32xf32>
    %199 = vector.shape_cast %198 : vector<1x2x32xf32> to vector<2x32xf32>
    %cst_67 = arith.constant dense<0.000000e+00> : vector<2x128xf32>
    %200 = tpu.matmul %199, %5, %cst_67 {dimension_numbers = #tpu.dot_dimension_numbers<[1], [0], [0], [1], [0, 0, 1, 1], [], []>} : vector<2x32xf32>, vector<32x128xf32>, vector<2x128xf32> -> vector<2x128xf32>
    %cst_68 = arith.constant dense<0.000000e+00> : vector<2x128xf32>
    %201 = tpu.matmul %194, %6, %cst_68 {dimension_numbers = #tpu.dot_dimension_numbers<[1], [0], [0], [1], [0, 0, 1, 1], [], []>} : vector<2x32xf32>, vector<32x128xf32>, vector<2x128xf32> -> vector<2x128xf32>
    %202 = arith.addf %200, %201 : vector<2x128xf32>
    %203 = vector.broadcast %7 : vector<1x128xf32> to vector<2x128xf32>
    %204 = arith.addf %202, %203 : vector<2x128xf32>
    %205 = vector.extract_strided_slice %204 {offsets = [0, 0], sizes = [2, 32], strides = [1, 1]} : vector<2x128xf32> to vector<2x32xf32>
    %cst_69 = arith.constant 0.000000e+00 : f32
    %206 = vector.broadcast %cst_69 : f32 to vector<2x32xf32>
    %207 = arith.subf %206, %205 : vector<2x32xf32>
    %208 = math.exp %207 : vector<2x32xf32>
    %cst_70 = arith.constant 1.000000e+00 : f32
    %209 = vector.broadcast %cst_70 : f32 to vector<2x32xf32>
    %210 = arith.addf %209, %208 : vector<2x32xf32>
    %cst_71 = arith.constant 1.000000e+00 : f32
    %211 = vector.broadcast %cst_71 : f32 to vector<2x32xf32>
    %212 = arith.divf %211, %210 : vector<2x32xf32>
    %213 = vector.extract_strided_slice %204 {offsets = [0, 32], sizes = [2, 32], strides = [1, 1]} : vector<2x128xf32> to vector<2x32xf32>
    %cst_72 = arith.constant 0.000000e+00 : f32
    %214 = vector.broadcast %cst_72 : f32 to vector<2x32xf32>
    %215 = arith.subf %214, %213 : vector<2x32xf32>
    %216 = math.exp %215 : vector<2x32xf32>
    %cst_73 = arith.constant 1.000000e+00 : f32
    %217 = vector.broadcast %cst_73 : f32 to vector<2x32xf32>
    %218 = arith.addf %217, %216 : vector<2x32xf32>
    %cst_74 = arith.constant 1.000000e+00 : f32
    %219 = vector.broadcast %cst_74 : f32 to vector<2x32xf32>
    %220 = arith.divf %219, %218 : vector<2x32xf32>
    %221 = vector.extract_strided_slice %204 {offsets = [0, 64], sizes = [2, 32], strides = [1, 1]} : vector<2x128xf32> to vector<2x32xf32>
    %222 = math.tanh %221 : vector<2x32xf32>
    %223 = vector.extract_strided_slice %204 {offsets = [0, 96], sizes = [2, 32], strides = [1, 1]} : vector<2x128xf32> to vector<2x32xf32>
    %cst_75 = arith.constant 0.000000e+00 : f32
    %224 = vector.broadcast %cst_75 : f32 to vector<2x32xf32>
    %225 = arith.subf %224, %223 : vector<2x32xf32>
    %226 = math.exp %225 : vector<2x32xf32>
    %cst_76 = arith.constant 1.000000e+00 : f32
    %227 = vector.broadcast %cst_76 : f32 to vector<2x32xf32>
    %228 = arith.addf %227, %226 : vector<2x32xf32>
    %cst_77 = arith.constant 1.000000e+00 : f32
    %229 = vector.broadcast %cst_77 : f32 to vector<2x32xf32>
    %230 = arith.divf %229, %228 : vector<2x32xf32>
    %231 = arith.mulf %220, %197 : vector<2x32xf32>
    %232 = arith.mulf %212, %222 : vector<2x32xf32>
    %233 = arith.addf %231, %232 : vector<2x32xf32>
    %234 = math.tanh %233 : vector<2x32xf32>
    %235 = arith.mulf %230, %234 : vector<2x32xf32>
    %c4_i32 = arith.constant 4 : i32
    %236 = arith.addi %3, %c4_i32 : i32
    %237 = vector.broadcast %236 : i32 to vector<2x1xi32>
    %238 = arith.cmpi slt, %237, %4 : vector<2x1xi32>
    %239 = vector.shape_cast %238 : vector<2x1xi1> to vector<2x1xi1>
    %240 = vector.broadcast %239 : vector<2x1xi1> to vector<2x32xi1>
    %241 = arith.select %240, %235, %194 : vector<2x32xi1>, vector<2x32xf32>
    %242 = vector.shape_cast %238 : vector<2x1xi1> to vector<2x1xi1>
    %243 = vector.broadcast %242 : vector<2x1xi1> to vector<2x32xi1>
    %244 = arith.select %243, %233, %197 : vector<2x32xi1>, vector<2x32xf32>
    %c5 = arith.constant 5 : index
    %c0_78 = arith.constant 0 : index
    %c0_79 = arith.constant 0 : index
    %245 = vector.load %arg2[%c5, %c0_78, %c0_79] : memref<8x2x32xf32, #tpu.memory_space<vmem>>, vector<1x2x32xf32>
    %246 = vector.shape_cast %245 : vector<1x2x32xf32> to vector<2x32xf32>
    %cst_80 = arith.constant dense<0.000000e+00> : vector<2x128xf32>
    %247 = tpu.matmul %246, %5, %cst_80 {dimension_numbers = #tpu.dot_dimension_numbers<[1], [0], [0], [1], [0, 0, 1, 1], [], []>} : vector<2x32xf32>, vector<32x128xf32>, vector<2x128xf32> -> vector<2x128xf32>
    %cst_81 = arith.constant dense<0.000000e+00> : vector<2x128xf32>
    %248 = tpu.matmul %241, %6, %cst_81 {dimension_numbers = #tpu.dot_dimension_numbers<[1], [0], [0], [1], [0, 0, 1, 1], [], []>} : vector<2x32xf32>, vector<32x128xf32>, vector<2x128xf32> -> vector<2x128xf32>
    %249 = arith.addf %247, %248 : vector<2x128xf32>
    %250 = vector.broadcast %7 : vector<1x128xf32> to vector<2x128xf32>
    %251 = arith.addf %249, %250 : vector<2x128xf32>
    %252 = vector.extract_strided_slice %251 {offsets = [0, 0], sizes = [2, 32], strides = [1, 1]} : vector<2x128xf32> to vector<2x32xf32>
    %cst_82 = arith.constant 0.000000e+00 : f32
    %253 = vector.broadcast %cst_82 : f32 to vector<2x32xf32>
    %254 = arith.subf %253, %252 : vector<2x32xf32>
    %255 = math.exp %254 : vector<2x32xf32>
    %cst_83 = arith.constant 1.000000e+00 : f32
    %256 = vector.broadcast %cst_83 : f32 to vector<2x32xf32>
    %257 = arith.addf %256, %255 : vector<2x32xf32>
    %cst_84 = arith.constant 1.000000e+00 : f32
    %258 = vector.broadcast %cst_84 : f32 to vector<2x32xf32>
    %259 = arith.divf %258, %257 : vector<2x32xf32>
    %260 = vector.extract_strided_slice %251 {offsets = [0, 32], sizes = [2, 32], strides = [1, 1]} : vector<2x128xf32> to vector<2x32xf32>
    %cst_85 = arith.constant 0.000000e+00 : f32
    %261 = vector.broadcast %cst_85 : f32 to vector<2x32xf32>
    %262 = arith.subf %261, %260 : vector<2x32xf32>
    %263 = math.exp %262 : vector<2x32xf32>
    %cst_86 = arith.constant 1.000000e+00 : f32
    %264 = vector.broadcast %cst_86 : f32 to vector<2x32xf32>
    %265 = arith.addf %264, %263 : vector<2x32xf32>
    %cst_87 = arith.constant 1.000000e+00 : f32
    %266 = vector.broadcast %cst_87 : f32 to vector<2x32xf32>
    %267 = arith.divf %266, %265 : vector<2x32xf32>
    %268 = vector.extract_strided_slice %251 {offsets = [0, 64], sizes = [2, 32], strides = [1, 1]} : vector<2x128xf32> to vector<2x32xf32>
    %269 = math.tanh %268 : vector<2x32xf32>
    %270 = vector.extract_strided_slice %251 {offsets = [0, 96], sizes = [2, 32], strides = [1, 1]} : vector<2x128xf32> to vector<2x32xf32>
    %cst_88 = arith.constant 0.000000e+00 : f32
    %271 = vector.broadcast %cst_88 : f32 to vector<2x32xf32>
    %272 = arith.subf %271, %270 : vector<2x32xf32>
    %273 = math.exp %272 : vector<2x32xf32>
    %cst_89 = arith.constant 1.000000e+00 : f32
    %274 = vector.broadcast %cst_89 : f32 to vector<2x32xf32>
    %275 = arith.addf %274, %273 : vector<2x32xf32>
    %cst_90 = arith.constant 1.000000e+00 : f32
    %276 = vector.broadcast %cst_90 : f32 to vector<2x32xf32>
    %277 = arith.divf %276, %275 : vector<2x32xf32>
    %278 = arith.mulf %267, %244 : vector<2x32xf32>
    %279 = arith.mulf %259, %269 : vector<2x32xf32>
    %280 = arith.addf %278, %279 : vector<2x32xf32>
    %281 = math.tanh %280 : vector<2x32xf32>
    %282 = arith.mulf %277, %281 : vector<2x32xf32>
    %c5_i32 = arith.constant 5 : i32
    %283 = arith.addi %3, %c5_i32 : i32
    %284 = vector.broadcast %283 : i32 to vector<2x1xi32>
    %285 = arith.cmpi slt, %284, %4 : vector<2x1xi32>
    %286 = vector.shape_cast %285 : vector<2x1xi1> to vector<2x1xi1>
    %287 = vector.broadcast %286 : vector<2x1xi1> to vector<2x32xi1>
    %288 = arith.select %287, %282, %241 : vector<2x32xi1>, vector<2x32xf32>
    %289 = vector.shape_cast %285 : vector<2x1xi1> to vector<2x1xi1>
    %290 = vector.broadcast %289 : vector<2x1xi1> to vector<2x32xi1>
    %291 = arith.select %290, %280, %244 : vector<2x32xi1>, vector<2x32xf32>
    %c6 = arith.constant 6 : index
    %c0_91 = arith.constant 0 : index
    %c0_92 = arith.constant 0 : index
    %292 = vector.load %arg2[%c6, %c0_91, %c0_92] : memref<8x2x32xf32, #tpu.memory_space<vmem>>, vector<1x2x32xf32>
    %293 = vector.shape_cast %292 : vector<1x2x32xf32> to vector<2x32xf32>
    %cst_93 = arith.constant dense<0.000000e+00> : vector<2x128xf32>
    %294 = tpu.matmul %293, %5, %cst_93 {dimension_numbers = #tpu.dot_dimension_numbers<[1], [0], [0], [1], [0, 0, 1, 1], [], []>} : vector<2x32xf32>, vector<32x128xf32>, vector<2x128xf32> -> vector<2x128xf32>
    %cst_94 = arith.constant dense<0.000000e+00> : vector<2x128xf32>
    %295 = tpu.matmul %288, %6, %cst_94 {dimension_numbers = #tpu.dot_dimension_numbers<[1], [0], [0], [1], [0, 0, 1, 1], [], []>} : vector<2x32xf32>, vector<32x128xf32>, vector<2x128xf32> -> vector<2x128xf32>
    %296 = arith.addf %294, %295 : vector<2x128xf32>
    %297 = vector.broadcast %7 : vector<1x128xf32> to vector<2x128xf32>
    %298 = arith.addf %296, %297 : vector<2x128xf32>
    %299 = vector.extract_strided_slice %298 {offsets = [0, 0], sizes = [2, 32], strides = [1, 1]} : vector<2x128xf32> to vector<2x32xf32>
    %cst_95 = arith.constant 0.000000e+00 : f32
    %300 = vector.broadcast %cst_95 : f32 to vector<2x32xf32>
    %301 = arith.subf %300, %299 : vector<2x32xf32>
    %302 = math.exp %301 : vector<2x32xf32>
    %cst_96 = arith.constant 1.000000e+00 : f32
    %303 = vector.broadcast %cst_96 : f32 to vector<2x32xf32>
    %304 = arith.addf %303, %302 : vector<2x32xf32>
    %cst_97 = arith.constant 1.000000e+00 : f32
    %305 = vector.broadcast %cst_97 : f32 to vector<2x32xf32>
    %306 = arith.divf %305, %304 : vector<2x32xf32>
    %307 = vector.extract_strided_slice %298 {offsets = [0, 32], sizes = [2, 32], strides = [1, 1]} : vector<2x128xf32> to vector<2x32xf32>
    %cst_98 = arith.constant 0.000000e+00 : f32
    %308 = vector.broadcast %cst_98 : f32 to vector<2x32xf32>
    %309 = arith.subf %308, %307 : vector<2x32xf32>
    %310 = math.exp %309 : vector<2x32xf32>
    %cst_99 = arith.constant 1.000000e+00 : f32
    %311 = vector.broadcast %cst_99 : f32 to vector<2x32xf32>
    %312 = arith.addf %311, %310 : vector<2x32xf32>
    %cst_100 = arith.constant 1.000000e+00 : f32
    %313 = vector.broadcast %cst_100 : f32 to vector<2x32xf32>
    %314 = arith.divf %313, %312 : vector<2x32xf32>
    %315 = vector.extract_strided_slice %298 {offsets = [0, 64], sizes = [2, 32], strides = [1, 1]} : vector<2x128xf32> to vector<2x32xf32>
    %316 = math.tanh %315 : vector<2x32xf32>
    %317 = vector.extract_strided_slice %298 {offsets = [0, 96], sizes = [2, 32], strides = [1, 1]} : vector<2x128xf32> to vector<2x32xf32>
    %cst_101 = arith.constant 0.000000e+00 : f32
    %318 = vector.broadcast %cst_101 : f32 to vector<2x32xf32>
    %319 = arith.subf %318, %317 : vector<2x32xf32>
    %320 = math.exp %319 : vector<2x32xf32>
    %cst_102 = arith.constant 1.000000e+00 : f32
    %321 = vector.broadcast %cst_102 : f32 to vector<2x32xf32>
    %322 = arith.addf %321, %320 : vector<2x32xf32>
    %cst_103 = arith.constant 1.000000e+00 : f32
    %323 = vector.broadcast %cst_103 : f32 to vector<2x32xf32>
    %324 = arith.divf %323, %322 : vector<2x32xf32>
    %325 = arith.mulf %314, %291 : vector<2x32xf32>
    %326 = arith.mulf %306, %316 : vector<2x32xf32>
    %327 = arith.addf %325, %326 : vector<2x32xf32>
    %328 = math.tanh %327 : vector<2x32xf32>
    %329 = arith.mulf %324, %328 : vector<2x32xf32>
    %c6_i32 = arith.constant 6 : i32
    %330 = arith.addi %3, %c6_i32 : i32
    %331 = vector.broadcast %330 : i32 to vector<2x1xi32>
    %332 = arith.cmpi slt, %331, %4 : vector<2x1xi32>
    %333 = vector.shape_cast %332 : vector<2x1xi1> to vector<2x1xi1>
    %334 = vector.broadcast %333 : vector<2x1xi1> to vector<2x32xi1>
    %335 = arith.select %334, %329, %288 : vector<2x32xi1>, vector<2x32xf32>
    %336 = vector.shape_cast %332 : vector<2x1xi1> to vector<2x1xi1>
    %337 = vector.broadcast %336 : vector<2x1xi1> to vector<2x32xi1>
    %338 = arith.select %337, %327, %291 : vector<2x32xi1>, vector<2x32xf32>
    %c7 = arith.constant 7 : index
    %c0_104 = arith.constant 0 : index
    %c0_105 = arith.constant 0 : index
    %339 = vector.load %arg2[%c7, %c0_104, %c0_105] : memref<8x2x32xf32, #tpu.memory_space<vmem>>, vector<1x2x32xf32>
    %340 = vector.shape_cast %339 : vector<1x2x32xf32> to vector<2x32xf32>
    %cst_106 = arith.constant dense<0.000000e+00> : vector<2x128xf32>
    %341 = tpu.matmul %340, %5, %cst_106 {dimension_numbers = #tpu.dot_dimension_numbers<[1], [0], [0], [1], [0, 0, 1, 1], [], []>} : vector<2x32xf32>, vector<32x128xf32>, vector<2x128xf32> -> vector<2x128xf32>
    %cst_107 = arith.constant dense<0.000000e+00> : vector<2x128xf32>
    %342 = tpu.matmul %335, %6, %cst_107 {dimension_numbers = #tpu.dot_dimension_numbers<[1], [0], [0], [1], [0, 0, 1, 1], [], []>} : vector<2x32xf32>, vector<32x128xf32>, vector<2x128xf32> -> vector<2x128xf32>
    %343 = arith.addf %341, %342 : vector<2x128xf32>
    %344 = vector.broadcast %7 : vector<1x128xf32> to vector<2x128xf32>
    %345 = arith.addf %343, %344 : vector<2x128xf32>
    %346 = vector.extract_strided_slice %345 {offsets = [0, 0], sizes = [2, 32], strides = [1, 1]} : vector<2x128xf32> to vector<2x32xf32>
    %cst_108 = arith.constant 0.000000e+00 : f32
    %347 = vector.broadcast %cst_108 : f32 to vector<2x32xf32>
    %348 = arith.subf %347, %346 : vector<2x32xf32>
    %349 = math.exp %348 : vector<2x32xf32>
    %cst_109 = arith.constant 1.000000e+00 : f32
    %350 = vector.broadcast %cst_109 : f32 to vector<2x32xf32>
    %351 = arith.addf %350, %349 : vector<2x32xf32>
    %cst_110 = arith.constant 1.000000e+00 : f32
    %352 = vector.broadcast %cst_110 : f32 to vector<2x32xf32>
    %353 = arith.divf %352, %351 : vector<2x32xf32>
    %354 = vector.extract_strided_slice %345 {offsets = [0, 32], sizes = [2, 32], strides = [1, 1]} : vector<2x128xf32> to vector<2x32xf32>
    %cst_111 = arith.constant 0.000000e+00 : f32
    %355 = vector.broadcast %cst_111 : f32 to vector<2x32xf32>
    %356 = arith.subf %355, %354 : vector<2x32xf32>
    %357 = math.exp %356 : vector<2x32xf32>
    %cst_112 = arith.constant 1.000000e+00 : f32
    %358 = vector.broadcast %cst_112 : f32 to vector<2x32xf32>
    %359 = arith.addf %358, %357 : vector<2x32xf32>
    %cst_113 = arith.constant 1.000000e+00 : f32
    %360 = vector.broadcast %cst_113 : f32 to vector<2x32xf32>
    %361 = arith.divf %360, %359 : vector<2x32xf32>
    %362 = vector.extract_strided_slice %345 {offsets = [0, 64], sizes = [2, 32], strides = [1, 1]} : vector<2x128xf32> to vector<2x32xf32>
    %363 = math.tanh %362 : vector<2x32xf32>
    %364 = vector.extract_strided_slice %345 {offsets = [0, 96], sizes = [2, 32], strides = [1, 1]} : vector<2x128xf32> to vector<2x32xf32>
    %cst_114 = arith.constant 0.000000e+00 : f32
    %365 = vector.broadcast %cst_114 : f32 to vector<2x32xf32>
    %366 = arith.subf %365, %364 : vector<2x32xf32>
    %367 = math.exp %366 : vector<2x32xf32>
    %cst_115 = arith.constant 1.000000e+00 : f32
    %368 = vector.broadcast %cst_115 : f32 to vector<2x32xf32>
    %369 = arith.addf %368, %367 : vector<2x32xf32>
    %cst_116 = arith.constant 1.000000e+00 : f32
    %370 = vector.broadcast %cst_116 : f32 to vector<2x32xf32>
    %371 = arith.divf %370, %369 : vector<2x32xf32>
    %372 = arith.mulf %361, %338 : vector<2x32xf32>
    %373 = arith.mulf %353, %363 : vector<2x32xf32>
    %374 = arith.addf %372, %373 : vector<2x32xf32>
    %375 = math.tanh %374 : vector<2x32xf32>
    %376 = arith.mulf %371, %375 : vector<2x32xf32>
    %c7_i32 = arith.constant 7 : i32
    %377 = arith.addi %3, %c7_i32 : i32
    %378 = vector.broadcast %377 : i32 to vector<2x1xi32>
    %379 = arith.cmpi slt, %378, %4 : vector<2x1xi32>
    %380 = vector.shape_cast %379 : vector<2x1xi1> to vector<2x1xi1>
    %381 = vector.broadcast %380 : vector<2x1xi1> to vector<2x32xi1>
    %382 = arith.select %381, %376, %335 : vector<2x32xi1>, vector<2x32xf32>
    %383 = vector.shape_cast %379 : vector<2x1xi1> to vector<2x1xi1>
    %384 = vector.broadcast %383 : vector<2x1xi1> to vector<2x32xi1>
    %385 = arith.select %384, %374, %338 : vector<2x32xi1>, vector<2x32xf32>
    %c0_117 = arith.constant 0 : index
    %c0_118 = arith.constant 0 : index
    %386 = vector.load %arg12[%c0_117, %c0_118] : memref<2x32xf32, #tpu.memory_space<vmem>>, vector<2x32xf32>
    tpu.vector_store %arg12[%c0_117, %c0_118], %382 {strides = array<i32>} : memref<2x32xf32, #tpu.memory_space<vmem>>, vector<2x32xf32>,
    %c0_119 = arith.constant 0 : index
    %c0_120 = arith.constant 0 : index
    %387 = vector.load %arg13[%c0_119, %c0_120] : memref<2x32xf32, #tpu.memory_space<vmem>>, vector<2x32xf32>
    tpu.vector_store %arg13[%c0_119, %c0_120], %385 {strides = array<i32>} : memref<2x32xf32, #tpu.memory_space<vmem>>, vector<2x32xf32>,
    %c0_i32_121 = arith.constant 0 : i32
    %388 = arith.cmpi eq, %arg0, %c0_i32_121 : i32
    %389 = arith.extui %388 : i1 to i32
    %c0_i32_122 = arith.constant 0 : i32
    %390 = arith.cmpi ne, %389, %c0_i32_122 : i32
    scf.if %390 {
      %c0_123 = arith.constant 0 : index
      %c0_124 = arith.constant 0 : index
      %391 = vector.load %arg8[%c0_123, %c0_124] : memref<32x128xf32, #tpu.memory_space<vmem>>, vector<32x128xf32>
      %c0_125 = arith.constant 0 : index
      %c0_126 = arith.constant 0 : index
      %392 = vector.load %arg9[%c0_125, %c0_126] : memref<32x128xf32, #tpu.memory_space<vmem>>, vector<32x128xf32>
      %c0_127 = arith.constant 0 : index
      %c0_128 = arith.constant 0 : index
      %393 = vector.load %arg10[%c0_127, %c0_128] : memref<1x128xf32, #tpu.memory_space<vmem>>, vector<1x128xf32>
      %394 = tpu.iota {dimensions = array<i32: 0>} : vector<2x1xi32>
      %c0_129 = arith.constant 0 : index
      %c0_130 = arith.constant 0 : index
      %395 = vector.load %arg4[%c0_129, %c0_130] : memref<1x32xf32, #tpu.memory_space<vmem>>, vector<1x32xf32>
      %cst_131 = arith.constant 0.000000e+00 : f32
      %396 = vector.broadcast %cst_131 : f32 to vector<2x32xf32>
      %c0_i32_132 = arith.constant 0 : i32
      %c2_i32_133 = arith.constant 2 : i32
      %397 = arith.addi %c0_i32_132, %c2_i32_133 : i32
      %c1_i32_134 = arith.constant 1 : i32
      %398:2 = scf.for %arg14 = %c0_i32_132 to %397 step %c1_i32_134 iter_args(%arg15 = %395, %arg16 = %396) -> (vector<1x32xf32>, vector<2x32xf32>)  : i32 {
        %400 = arith.index_cast %arg14 : i32 to index
        %401 = memref.load %arg1[%400] : memref<2xi32, #tpu.memory_space<smem>>
        %402 = vector.broadcast %arg14 : i32 to vector<2x1xi32>
        %403 = arith.cmpi eq, %394, %402 : vector<2x1xi32>
        %cst_138 = arith.constant 0.000000e+00 : f32
        %404 = vector.shape_cast %403 : vector<2x1xi1> to vector<2x1xi1>
        %405 = vector.broadcast %404 : vector<2x1xi1> to vector<2x32xi1>
        %406 = vector.broadcast %cst_138 : f32 to vector<2x32xf32>
        %407 = arith.select %405, %382, %406 : vector<2x32xi1>, vector<2x32xf32>
        %cst_139 = arith.constant dense<0.000000e+00> : vector<32xf32>
        %408 = vector.multi_reduction <add>, %407, %cst_139 [0] : vector<2x32xf32> to vector<32xf32>
        %409 = vector.shape_cast %408 : vector<32xf32> to vector<1x32xf32>
        %cst_140 = arith.constant 0.000000e+00 : f32
        %410 = vector.shape_cast %403 : vector<2x1xi1> to vector<2x1xi1>
        %411 = vector.broadcast %410 : vector<2x1xi1> to vector<2x32xi1>
        %412 = vector.broadcast %cst_140 : f32 to vector<2x32xf32>
        %413 = arith.select %411, %385, %412 : vector<2x32xi1>, vector<2x32xf32>
        %cst_141 = arith.constant dense<0.000000e+00> : vector<32xf32>
        %414 = vector.multi_reduction <add>, %413, %cst_141 [0] : vector<2x32xf32> to vector<32xf32>
        %415 = vector.shape_cast %414 : vector<32xf32> to vector<1x32xf32>
        %cst_142 = arith.constant 0.000000e+00 : f32
        %416 = vector.broadcast %cst_142 : f32 to vector<1x32xf32>
        %c0_i32_143 = arith.constant 0 : i32
        %cst_144 = arith.constant dense<0.000000e+00> : vector<1x128xf32>
        %417 = tpu.matmul %arg15, %391, %cst_144 {dimension_numbers = #tpu.dot_dimension_numbers<[1], [0], [0], [1], [0, 0, 1, 1], [], []>} : vector<1x32xf32>, vector<32x128xf32>, vector<1x128xf32> -> vector<1x128xf32>
        %cst_145 = arith.constant dense<0.000000e+00> : vector<1x128xf32>
        %418 = tpu.matmul %409, %392, %cst_145 {dimension_numbers = #tpu.dot_dimension_numbers<[1], [0], [0], [1], [0, 0, 1, 1], [], []>} : vector<1x32xf32>, vector<32x128xf32>, vector<1x128xf32> -> vector<1x128xf32>
        %419 = arith.addf %417, %418 : vector<1x128xf32>
        %420 = arith.addf %419, %393 : vector<1x128xf32>
        %421 = vector.extract_strided_slice %420 {offsets = [0, 0], sizes = [1, 32], strides = [1, 1]} : vector<1x128xf32> to vector<1x32xf32>
        %cst_146 = arith.constant 0.000000e+00 : f32
        %422 = vector.broadcast %cst_146 : f32 to vector<1x32xf32>
        %423 = arith.subf %422, %421 : vector<1x32xf32>
        %424 = math.exp %423 : vector<1x32xf32>
        %cst_147 = arith.constant 1.000000e+00 : f32
        %425 = vector.broadcast %cst_147 : f32 to vector<1x32xf32>
        %426 = arith.addf %425, %424 : vector<1x32xf32>
        %cst_148 = arith.constant 1.000000e+00 : f32
        %427 = vector.broadcast %cst_148 : f32 to vector<1x32xf32>
        %428 = arith.divf %427, %426 : vector<1x32xf32>
        %429 = vector.extract_strided_slice %420 {offsets = [0, 32], sizes = [1, 32], strides = [1, 1]} : vector<1x128xf32> to vector<1x32xf32>
        %cst_149 = arith.constant 0.000000e+00 : f32
        %430 = vector.broadcast %cst_149 : f32 to vector<1x32xf32>
        %431 = arith.subf %430, %429 : vector<1x32xf32>
        %432 = math.exp %431 : vector<1x32xf32>
        %cst_150 = arith.constant 1.000000e+00 : f32
        %433 = vector.broadcast %cst_150 : f32 to vector<1x32xf32>
        %434 = arith.addf %433, %432 : vector<1x32xf32>
        %cst_151 = arith.constant 1.000000e+00 : f32
        %435 = vector.broadcast %cst_151 : f32 to vector<1x32xf32>
        %436 = arith.divf %435, %434 : vector<1x32xf32>
        %437 = vector.extract_strided_slice %420 {offsets = [0, 64], sizes = [1, 32], strides = [1, 1]} : vector<1x128xf32> to vector<1x32xf32>
        %438 = math.tanh %437 : vector<1x32xf32>
        %439 = vector.extract_strided_slice %420 {offsets = [0, 96], sizes = [1, 32], strides = [1, 1]} : vector<1x128xf32> to vector<1x32xf32>
        %cst_152 = arith.constant 0.000000e+00 : f32
        %440 = vector.broadcast %cst_152 : f32 to vector<1x32xf32>
        %441 = arith.subf %440, %439 : vector<1x32xf32>
        %442 = math.exp %441 : vector<1x32xf32>
        %cst_153 = arith.constant 1.000000e+00 : f32
        %443 = vector.broadcast %cst_153 : f32 to vector<1x32xf32>
        %444 = arith.addf %443, %442 : vector<1x32xf32>
        %cst_154 = arith.constant 1.000000e+00 : f32
        %445 = vector.broadcast %cst_154 : f32 to vector<1x32xf32>
        %446 = arith.divf %445, %444 : vector<1x32xf32>
        %447 = arith.mulf %436, %415 : vector<1x32xf32>
        %448 = arith.mulf %428, %438 : vector<1x32xf32>
        %449 = arith.addf %447, %448 : vector<1x32xf32>
        %450 = math.tanh %449 : vector<1x32xf32>
        %451 = arith.mulf %446, %450 : vector<1x32xf32>
        %452 = arith.cmpi slt, %c0_i32_143, %401 : i32
        %c1_i32_155 = arith.constant 1 : i32
        %453 = arith.subi %401, %c1_i32_155 : i32
        %454 = arith.cmpi eq, %c0_i32_143, %453 : i32
        %c1_i32_156 = arith.constant 1 : i32
        %455 = arith.subi %401, %c1_i32_156 : i32
        %456 = arith.cmpi slt, %c0_i32_143, %455 : i32
        %457 = arith.select %452, %451, %409 : vector<1x32xf32>
        %458 = arith.select %452, %449, %415 : vector<1x32xf32>
        %459 = arith.select %454, %451, %416 : vector<1x32xf32>
        %460 = arith.select %456, %451, %arg15 : vector<1x32xf32>
        %c1_i32_157 = arith.constant 1 : i32
        %cst_158 = arith.constant dense<0.000000e+00> : vector<1x128xf32>
        %461 = tpu.matmul %460, %391, %cst_158 {dimension_numbers = #tpu.dot_dimension_numbers<[1], [0], [0], [1], [0, 0, 1, 1], [], []>} : vector<1x32xf32>, vector<32x128xf32>, vector<1x128xf32> -> vector<1x128xf32>
        %cst_159 = arith.constant dense<0.000000e+00> : vector<1x128xf32>
        %462 = tpu.matmul %457, %392, %cst_159 {dimension_numbers = #tpu.dot_dimension_numbers<[1], [0], [0], [1], [0, 0, 1, 1], [], []>} : vector<1x32xf32>, vector<32x128xf32>, vector<1x128xf32> -> vector<1x128xf32>
        %463 = arith.addf %461, %462 : vector<1x128xf32>
        %464 = arith.addf %463, %393 : vector<1x128xf32>
        %465 = vector.extract_strided_slice %464 {offsets = [0, 0], sizes = [1, 32], strides = [1, 1]} : vector<1x128xf32> to vector<1x32xf32>
        %cst_160 = arith.constant 0.000000e+00 : f32
        %466 = vector.broadcast %cst_160 : f32 to vector<1x32xf32>
        %467 = arith.subf %466, %465 : vector<1x32xf32>
        %468 = math.exp %467 : vector<1x32xf32>
        %cst_161 = arith.constant 1.000000e+00 : f32
        %469 = vector.broadcast %cst_161 : f32 to vector<1x32xf32>
        %470 = arith.addf %469, %468 : vector<1x32xf32>
        %cst_162 = arith.constant 1.000000e+00 : f32
        %471 = vector.broadcast %cst_162 : f32 to vector<1x32xf32>
        %472 = arith.divf %471, %470 : vector<1x32xf32>
        %473 = vector.extract_strided_slice %464 {offsets = [0, 32], sizes = [1, 32], strides = [1, 1]} : vector<1x128xf32> to vector<1x32xf32>
        %cst_163 = arith.constant 0.000000e+00 : f32
        %474 = vector.broadcast %cst_163 : f32 to vector<1x32xf32>
        %475 = arith.subf %474, %473 : vector<1x32xf32>
        %476 = math.exp %475 : vector<1x32xf32>
        %cst_164 = arith.constant 1.000000e+00 : f32
        %477 = vector.broadcast %cst_164 : f32 to vector<1x32xf32>
        %478 = arith.addf %477, %476 : vector<1x32xf32>
        %cst_165 = arith.constant 1.000000e+00 : f32
        %479 = vector.broadcast %cst_165 : f32 to vector<1x32xf32>
        %480 = arith.divf %479, %478 : vector<1x32xf32>
        %481 = vector.extract_strided_slice %464 {offsets = [0, 64], sizes = [1, 32], strides = [1, 1]} : vector<1x128xf32> to vector<1x32xf32>
        %482 = math.tanh %481 : vector<1x32xf32>
        %483 = vector.extract_strided_slice %464 {offsets = [0, 96], sizes = [1, 32], strides = [1, 1]} : vector<1x128xf32> to vector<1x32xf32>
        %cst_166 = arith.constant 0.000000e+00 : f32
        %484 = vector.broadcast %cst_166 : f32 to vector<1x32xf32>
        %485 = arith.subf %484, %483 : vector<1x32xf32>
        %486 = math.exp %485 : vector<1x32xf32>
        %cst_167 = arith.constant 1.000000e+00 : f32
        %487 = vector.broadcast %cst_167 : f32 to vector<1x32xf32>
        %488 = arith.addf %487, %486 : vector<1x32xf32>
        %cst_168 = arith.constant 1.000000e+00 : f32
        %489 = vector.broadcast %cst_168 : f32 to vector<1x32xf32>
        %490 = arith.divf %489, %488 : vector<1x32xf32>
        %491 = arith.mulf %480, %458 : vector<1x32xf32>
        %492 = arith.mulf %472, %482 : vector<1x32xf32>
        %493 = arith.addf %491, %492 : vector<1x32xf32>
        %494 = math.tanh %493 : vector<1x32xf32>
        %495 = arith.mulf %490, %494 : vector<1x32xf32>
        %496 = arith.cmpi slt, %c1_i32_157, %401 : i32
        %c1_i32_169 = arith.constant 1 : i32
        %497 = arith.subi %401, %c1_i32_169 : i32
        %498 = arith.cmpi eq, %c1_i32_157, %497 : i32
        %c1_i32_170 = arith.constant 1 : i32
        %499 = arith.subi %401, %c1_i32_170 : i32
        %500 = arith.cmpi slt, %c1_i32_157, %499 : i32
        %501 = arith.select %496, %495, %457 : vector<1x32xf32>
        %502 = arith.select %496, %493, %458 : vector<1x32xf32>
        %503 = arith.select %498, %495, %459 : vector<1x32xf32>
        %504 = arith.select %500, %495, %460 : vector<1x32xf32>
        %c2_i32_171 = arith.constant 2 : i32
        %cst_172 = arith.constant dense<0.000000e+00> : vector<1x128xf32>
        %505 = tpu.matmul %504, %391, %cst_172 {dimension_numbers = #tpu.dot_dimension_numbers<[1], [0], [0], [1], [0, 0, 1, 1], [], []>} : vector<1x32xf32>, vector<32x128xf32>, vector<1x128xf32> -> vector<1x128xf32>
        %cst_173 = arith.constant dense<0.000000e+00> : vector<1x128xf32>
        %506 = tpu.matmul %501, %392, %cst_173 {dimension_numbers = #tpu.dot_dimension_numbers<[1], [0], [0], [1], [0, 0, 1, 1], [], []>} : vector<1x32xf32>, vector<32x128xf32>, vector<1x128xf32> -> vector<1x128xf32>
        %507 = arith.addf %505, %506 : vector<1x128xf32>
        %508 = arith.addf %507, %393 : vector<1x128xf32>
        %509 = vector.extract_strided_slice %508 {offsets = [0, 0], sizes = [1, 32], strides = [1, 1]} : vector<1x128xf32> to vector<1x32xf32>
        %cst_174 = arith.constant 0.000000e+00 : f32
        %510 = vector.broadcast %cst_174 : f32 to vector<1x32xf32>
        %511 = arith.subf %510, %509 : vector<1x32xf32>
        %512 = math.exp %511 : vector<1x32xf32>
        %cst_175 = arith.constant 1.000000e+00 : f32
        %513 = vector.broadcast %cst_175 : f32 to vector<1x32xf32>
        %514 = arith.addf %513, %512 : vector<1x32xf32>
        %cst_176 = arith.constant 1.000000e+00 : f32
        %515 = vector.broadcast %cst_176 : f32 to vector<1x32xf32>
        %516 = arith.divf %515, %514 : vector<1x32xf32>
        %517 = vector.extract_strided_slice %508 {offsets = [0, 32], sizes = [1, 32], strides = [1, 1]} : vector<1x128xf32> to vector<1x32xf32>
        %cst_177 = arith.constant 0.000000e+00 : f32
        %518 = vector.broadcast %cst_177 : f32 to vector<1x32xf32>
        %519 = arith.subf %518, %517 : vector<1x32xf32>
        %520 = math.exp %519 : vector<1x32xf32>
        %cst_178 = arith.constant 1.000000e+00 : f32
        %521 = vector.broadcast %cst_178 : f32 to vector<1x32xf32>
        %522 = arith.addf %521, %520 : vector<1x32xf32>
        %cst_179 = arith.constant 1.000000e+00 : f32
        %523 = vector.broadcast %cst_179 : f32 to vector<1x32xf32>
        %524 = arith.divf %523, %522 : vector<1x32xf32>
        %525 = vector.extract_strided_slice %508 {offsets = [0, 64], sizes = [1, 32], strides = [1, 1]} : vector<1x128xf32> to vector<1x32xf32>
        %526 = math.tanh %525 : vector<1x32xf32>
        %527 = vector.extract_strided_slice %508 {offsets = [0, 96], sizes = [1, 32], strides = [1, 1]} : vector<1x128xf32> to vector<1x32xf32>
        %cst_180 = arith.constant 0.000000e+00 : f32
        %528 = vector.broadcast %cst_180 : f32 to vector<1x32xf32>
        %529 = arith.subf %528, %527 : vector<1x32xf32>
        %530 = math.exp %529 : vector<1x32xf32>
        %cst_181 = arith.constant 1.000000e+00 : f32
        %531 = vector.broadcast %cst_181 : f32 to vector<1x32xf32>
        %532 = arith.addf %531, %530 : vector<1x32xf32>
        %cst_182 = arith.constant 1.000000e+00 : f32
        %533 = vector.broadcast %cst_182 : f32 to vector<1x32xf32>
        %534 = arith.divf %533, %532 : vector<1x32xf32>
        %535 = arith.mulf %524, %502 : vector<1x32xf32>
        %536 = arith.mulf %516, %526 : vector<1x32xf32>
        %537 = arith.addf %535, %536 : vector<1x32xf32>
        %538 = math.tanh %537 : vector<1x32xf32>
        %539 = arith.mulf %534, %538 : vector<1x32xf32>
        %540 = arith.cmpi slt, %c2_i32_171, %401 : i32
        %c1_i32_183 = arith.constant 1 : i32
        %541 = arith.subi %401, %c1_i32_183 : i32
        %542 = arith.cmpi eq, %c2_i32_171, %541 : i32
        %c1_i32_184 = arith.constant 1 : i32
        %543 = arith.subi %401, %c1_i32_184 : i32
        %544 = arith.cmpi slt, %c2_i32_171, %543 : i32
        %545 = arith.select %540, %539, %501 : vector<1x32xf32>
        %546 = arith.select %540, %537, %502 : vector<1x32xf32>
        %547 = arith.select %542, %539, %503 : vector<1x32xf32>
        %548 = arith.select %544, %539, %504 : vector<1x32xf32>
        %c3_i32_185 = arith.constant 3 : i32
        %cst_186 = arith.constant dense<0.000000e+00> : vector<1x128xf32>
        %549 = tpu.matmul %548, %391, %cst_186 {dimension_numbers = #tpu.dot_dimension_numbers<[1], [0], [0], [1], [0, 0, 1, 1], [], []>} : vector<1x32xf32>, vector<32x128xf32>, vector<1x128xf32> -> vector<1x128xf32>
        %cst_187 = arith.constant dense<0.000000e+00> : vector<1x128xf32>
        %550 = tpu.matmul %545, %392, %cst_187 {dimension_numbers = #tpu.dot_dimension_numbers<[1], [0], [0], [1], [0, 0, 1, 1], [], []>} : vector<1x32xf32>, vector<32x128xf32>, vector<1x128xf32> -> vector<1x128xf32>
        %551 = arith.addf %549, %550 : vector<1x128xf32>
        %552 = arith.addf %551, %393 : vector<1x128xf32>
        %553 = vector.extract_strided_slice %552 {offsets = [0, 0], sizes = [1, 32], strides = [1, 1]} : vector<1x128xf32> to vector<1x32xf32>
        %cst_188 = arith.constant 0.000000e+00 : f32
        %554 = vector.broadcast %cst_188 : f32 to vector<1x32xf32>
        %555 = arith.subf %554, %553 : vector<1x32xf32>
        %556 = math.exp %555 : vector<1x32xf32>
        %cst_189 = arith.constant 1.000000e+00 : f32
        %557 = vector.broadcast %cst_189 : f32 to vector<1x32xf32>
        %558 = arith.addf %557, %556 : vector<1x32xf32>
        %cst_190 = arith.constant 1.000000e+00 : f32
        %559 = vector.broadcast %cst_190 : f32 to vector<1x32xf32>
        %560 = arith.divf %559, %558 : vector<1x32xf32>
        %561 = vector.extract_strided_slice %552 {offsets = [0, 32], sizes = [1, 32], strides = [1, 1]} : vector<1x128xf32> to vector<1x32xf32>
        %cst_191 = arith.constant 0.000000e+00 : f32
        %562 = vector.broadcast %cst_191 : f32 to vector<1x32xf32>
        %563 = arith.subf %562, %561 : vector<1x32xf32>
        %564 = math.exp %563 : vector<1x32xf32>
        %cst_192 = arith.constant 1.000000e+00 : f32
        %565 = vector.broadcast %cst_192 : f32 to vector<1x32xf32>
        %566 = arith.addf %565, %564 : vector<1x32xf32>
        %cst_193 = arith.constant 1.000000e+00 : f32
        %567 = vector.broadcast %cst_193 : f32 to vector<1x32xf32>
        %568 = arith.divf %567, %566 : vector<1x32xf32>
        %569 = vector.extract_strided_slice %552 {offsets = [0, 64], sizes = [1, 32], strides = [1, 1]} : vector<1x128xf32> to vector<1x32xf32>
        %570 = math.tanh %569 : vector<1x32xf32>
        %571 = vector.extract_strided_slice %552 {offsets = [0, 96], sizes = [1, 32], strides = [1, 1]} : vector<1x128xf32> to vector<1x32xf32>
        %cst_194 = arith.constant 0.000000e+00 : f32
        %572 = vector.broadcast %cst_194 : f32 to vector<1x32xf32>
        %573 = arith.subf %572, %571 : vector<1x32xf32>
        %574 = math.exp %573 : vector<1x32xf32>
        %cst_195 = arith.constant 1.000000e+00 : f32
        %575 = vector.broadcast %cst_195 : f32 to vector<1x32xf32>
        %576 = arith.addf %575, %574 : vector<1x32xf32>
        %cst_196 = arith.constant 1.000000e+00 : f32
        %577 = vector.broadcast %cst_196 : f32 to vector<1x32xf32>
        %578 = arith.divf %577, %576 : vector<1x32xf32>
        %579 = arith.mulf %568, %546 : vector<1x32xf32>
        %580 = arith.mulf %560, %570 : vector<1x32xf32>
        %581 = arith.addf %579, %580 : vector<1x32xf32>
        %582 = math.tanh %581 : vector<1x32xf32>
        %583 = arith.mulf %578, %582 : vector<1x32xf32>
        %584 = arith.cmpi slt, %c3_i32_185, %401 : i32
        %c1_i32_197 = arith.constant 1 : i32
        %585 = arith.subi %401, %c1_i32_197 : i32
        %586 = arith.cmpi eq, %c3_i32_185, %585 : i32
        %c1_i32_198 = arith.constant 1 : i32
        %587 = arith.subi %401, %c1_i32_198 : i32
        %588 = arith.cmpi slt, %c3_i32_185, %587 : i32
        %589 = arith.select %584, %583, %545 : vector<1x32xf32>
        %590 = arith.select %584, %581, %546 : vector<1x32xf32>
        %591 = arith.select %586, %583, %547 : vector<1x32xf32>
        %592 = arith.select %588, %583, %548 : vector<1x32xf32>
        %c4_i32_199 = arith.constant 4 : i32
        %cst_200 = arith.constant dense<0.000000e+00> : vector<1x128xf32>
        %593 = tpu.matmul %592, %391, %cst_200 {dimension_numbers = #tpu.dot_dimension_numbers<[1], [0], [0], [1], [0, 0, 1, 1], [], []>} : vector<1x32xf32>, vector<32x128xf32>, vector<1x128xf32> -> vector<1x128xf32>
        %cst_201 = arith.constant dense<0.000000e+00> : vector<1x128xf32>
        %594 = tpu.matmul %589, %392, %cst_201 {dimension_numbers = #tpu.dot_dimension_numbers<[1], [0], [0], [1], [0, 0, 1, 1], [], []>} : vector<1x32xf32>, vector<32x128xf32>, vector<1x128xf32> -> vector<1x128xf32>
        %595 = arith.addf %593, %594 : vector<1x128xf32>
        %596 = arith.addf %595, %393 : vector<1x128xf32>
        %597 = vector.extract_strided_slice %596 {offsets = [0, 0], sizes = [1, 32], strides = [1, 1]} : vector<1x128xf32> to vector<1x32xf32>
        %cst_202 = arith.constant 0.000000e+00 : f32
        %598 = vector.broadcast %cst_202 : f32 to vector<1x32xf32>
        %599 = arith.subf %598, %597 : vector<1x32xf32>
        %600 = math.exp %599 : vector<1x32xf32>
        %cst_203 = arith.constant 1.000000e+00 : f32
        %601 = vector.broadcast %cst_203 : f32 to vector<1x32xf32>
        %602 = arith.addf %601, %600 : vector<1x32xf32>
        %cst_204 = arith.constant 1.000000e+00 : f32
        %603 = vector.broadcast %cst_204 : f32 to vector<1x32xf32>
        %604 = arith.divf %603, %602 : vector<1x32xf32>
        %605 = vector.extract_strided_slice %596 {offsets = [0, 32], sizes = [1, 32], strides = [1, 1]} : vector<1x128xf32> to vector<1x32xf32>
        %cst_205 = arith.constant 0.000000e+00 : f32
        %606 = vector.broadcast %cst_205 : f32 to vector<1x32xf32>
        %607 = arith.subf %606, %605 : vector<1x32xf32>
        %608 = math.exp %607 : vector<1x32xf32>
        %cst_206 = arith.constant 1.000000e+00 : f32
        %609 = vector.broadcast %cst_206 : f32 to vector<1x32xf32>
        %610 = arith.addf %609, %608 : vector<1x32xf32>
        %cst_207 = arith.constant 1.000000e+00 : f32
        %611 = vector.broadcast %cst_207 : f32 to vector<1x32xf32>
        %612 = arith.divf %611, %610 : vector<1x32xf32>
        %613 = vector.extract_strided_slice %596 {offsets = [0, 64], sizes = [1, 32], strides = [1, 1]} : vector<1x128xf32> to vector<1x32xf32>
        %614 = math.tanh %613 : vector<1x32xf32>
        %615 = vector.extract_strided_slice %596 {offsets = [0, 96], sizes = [1, 32], strides = [1, 1]} : vector<1x128xf32> to vector<1x32xf32>
        %cst_208 = arith.constant 0.000000e+00 : f32
        %616 = vector.broadcast %cst_208 : f32 to vector<1x32xf32>
        %617 = arith.subf %616, %615 : vector<1x32xf32>
        %618 = math.exp %617 : vector<1x32xf32>
        %cst_209 = arith.constant 1.000000e+00 : f32
        %619 = vector.broadcast %cst_209 : f32 to vector<1x32xf32>
        %620 = arith.addf %619, %618 : vector<1x32xf32>
        %cst_210 = arith.constant 1.000000e+00 : f32
        %621 = vector.broadcast %cst_210 : f32 to vector<1x32xf32>
        %622 = arith.divf %621, %620 : vector<1x32xf32>
        %623 = arith.mulf %612, %590 : vector<1x32xf32>
        %624 = arith.mulf %604, %614 : vector<1x32xf32>
        %625 = arith.addf %623, %624 : vector<1x32xf32>
        %626 = math.tanh %625 : vector<1x32xf32>
        %627 = arith.mulf %622, %626 : vector<1x32xf32>
        %628 = arith.cmpi slt, %c4_i32_199, %401 : i32
        %c1_i32_211 = arith.constant 1 : i32
        %629 = arith.subi %401, %c1_i32_211 : i32
        %630 = arith.cmpi eq, %c4_i32_199, %629 : i32
        %c1_i32_212 = arith.constant 1 : i32
        %631 = arith.subi %401, %c1_i32_212 : i32
        %632 = arith.cmpi slt, %c4_i32_199, %631 : i32
        %633 = arith.select %628, %627, %589 : vector<1x32xf32>
        %634 = arith.select %628, %625, %590 : vector<1x32xf32>
        %635 = arith.select %630, %627, %591 : vector<1x32xf32>
        %636 = arith.select %632, %627, %592 : vector<1x32xf32>
        %c5_i32_213 = arith.constant 5 : i32
        %cst_214 = arith.constant dense<0.000000e+00> : vector<1x128xf32>
        %637 = tpu.matmul %636, %391, %cst_214 {dimension_numbers = #tpu.dot_dimension_numbers<[1], [0], [0], [1], [0, 0, 1, 1], [], []>} : vector<1x32xf32>, vector<32x128xf32>, vector<1x128xf32> -> vector<1x128xf32>
        %cst_215 = arith.constant dense<0.000000e+00> : vector<1x128xf32>
        %638 = tpu.matmul %633, %392, %cst_215 {dimension_numbers = #tpu.dot_dimension_numbers<[1], [0], [0], [1], [0, 0, 1, 1], [], []>} : vector<1x32xf32>, vector<32x128xf32>, vector<1x128xf32> -> vector<1x128xf32>
        %639 = arith.addf %637, %638 : vector<1x128xf32>
        %640 = arith.addf %639, %393 : vector<1x128xf32>
        %641 = vector.extract_strided_slice %640 {offsets = [0, 0], sizes = [1, 32], strides = [1, 1]} : vector<1x128xf32> to vector<1x32xf32>
        %cst_216 = arith.constant 0.000000e+00 : f32
        %642 = vector.broadcast %cst_216 : f32 to vector<1x32xf32>
        %643 = arith.subf %642, %641 : vector<1x32xf32>
        %644 = math.exp %643 : vector<1x32xf32>
        %cst_217 = arith.constant 1.000000e+00 : f32
        %645 = vector.broadcast %cst_217 : f32 to vector<1x32xf32>
        %646 = arith.addf %645, %644 : vector<1x32xf32>
        %cst_218 = arith.constant 1.000000e+00 : f32
        %647 = vector.broadcast %cst_218 : f32 to vector<1x32xf32>
        %648 = arith.divf %647, %646 : vector<1x32xf32>
        %649 = vector.extract_strided_slice %640 {offsets = [0, 32], sizes = [1, 32], strides = [1, 1]} : vector<1x128xf32> to vector<1x32xf32>
        %cst_219 = arith.constant 0.000000e+00 : f32
        %650 = vector.broadcast %cst_219 : f32 to vector<1x32xf32>
        %651 = arith.subf %650, %649 : vector<1x32xf32>
        %652 = math.exp %651 : vector<1x32xf32>
        %cst_220 = arith.constant 1.000000e+00 : f32
        %653 = vector.broadcast %cst_220 : f32 to vector<1x32xf32>
        %654 = arith.addf %653, %652 : vector<1x32xf32>
        %cst_221 = arith.constant 1.000000e+00 : f32
        %655 = vector.broadcast %cst_221 : f32 to vector<1x32xf32>
        %656 = arith.divf %655, %654 : vector<1x32xf32>
        %657 = vector.extract_strided_slice %640 {offsets = [0, 64], sizes = [1, 32], strides = [1, 1]} : vector<1x128xf32> to vector<1x32xf32>
        %658 = math.tanh %657 : vector<1x32xf32>
        %659 = vector.extract_strided_slice %640 {offsets = [0, 96], sizes = [1, 32], strides = [1, 1]} : vector<1x128xf32> to vector<1x32xf32>
        %cst_222 = arith.constant 0.000000e+00 : f32
        %660 = vector.broadcast %cst_222 : f32 to vector<1x32xf32>
        %661 = arith.subf %660, %659 : vector<1x32xf32>
        %662 = math.exp %661 : vector<1x32xf32>
        %cst_223 = arith.constant 1.000000e+00 : f32
        %663 = vector.broadcast %cst_223 : f32 to vector<1x32xf32>
        %664 = arith.addf %663, %662 : vector<1x32xf32>
        %cst_224 = arith.constant 1.000000e+00 : f32
        %665 = vector.broadcast %cst_224 : f32 to vector<1x32xf32>
        %666 = arith.divf %665, %664 : vector<1x32xf32>
        %667 = arith.mulf %656, %634 : vector<1x32xf32>
        %668 = arith.mulf %648, %658 : vector<1x32xf32>
        %669 = arith.addf %667, %668 : vector<1x32xf32>
        %670 = math.tanh %669 : vector<1x32xf32>
        %671 = arith.mulf %666, %670 : vector<1x32xf32>
        %672 = arith.cmpi slt, %c5_i32_213, %401 : i32
        %c1_i32_225 = arith.constant 1 : i32
        %673 = arith.subi %401, %c1_i32_225 : i32
        %674 = arith.cmpi eq, %c5_i32_213, %673 : i32
        %c1_i32_226 = arith.constant 1 : i32
        %675 = arith.subi %401, %c1_i32_226 : i32
        %676 = arith.cmpi slt, %c5_i32_213, %675 : i32
        %677 = arith.select %672, %671, %633 : vector<1x32xf32>
        %678 = arith.select %672, %669, %634 : vector<1x32xf32>
        %679 = arith.select %674, %671, %635 : vector<1x32xf32>
        %680 = arith.select %676, %671, %636 : vector<1x32xf32>
        %c6_i32_227 = arith.constant 6 : i32
        %cst_228 = arith.constant dense<0.000000e+00> : vector<1x128xf32>
        %681 = tpu.matmul %680, %391, %cst_228 {dimension_numbers = #tpu.dot_dimension_numbers<[1], [0], [0], [1], [0, 0, 1, 1], [], []>} : vector<1x32xf32>, vector<32x128xf32>, vector<1x128xf32> -> vector<1x128xf32>
        %cst_229 = arith.constant dense<0.000000e+00> : vector<1x128xf32>
        %682 = tpu.matmul %677, %392, %cst_229 {dimension_numbers = #tpu.dot_dimension_numbers<[1], [0], [0], [1], [0, 0, 1, 1], [], []>} : vector<1x32xf32>, vector<32x128xf32>, vector<1x128xf32> -> vector<1x128xf32>
        %683 = arith.addf %681, %682 : vector<1x128xf32>
        %684 = arith.addf %683, %393 : vector<1x128xf32>
        %685 = vector.extract_strided_slice %684 {offsets = [0, 0], sizes = [1, 32], strides = [1, 1]} : vector<1x128xf32> to vector<1x32xf32>
        %cst_230 = arith.constant 0.000000e+00 : f32
        %686 = vector.broadcast %cst_230 : f32 to vector<1x32xf32>
        %687 = arith.subf %686, %685 : vector<1x32xf32>
        %688 = math.exp %687 : vector<1x32xf32>
        %cst_231 = arith.constant 1.000000e+00 : f32
        %689 = vector.broadcast %cst_231 : f32 to vector<1x32xf32>
        %690 = arith.addf %689, %688 : vector<1x32xf32>
        %cst_232 = arith.constant 1.000000e+00 : f32
        %691 = vector.broadcast %cst_232 : f32 to vector<1x32xf32>
        %692 = arith.divf %691, %690 : vector<1x32xf32>
        %693 = vector.extract_strided_slice %684 {offsets = [0, 32], sizes = [1, 32], strides = [1, 1]} : vector<1x128xf32> to vector<1x32xf32>
        %cst_233 = arith.constant 0.000000e+00 : f32
        %694 = vector.broadcast %cst_233 : f32 to vector<1x32xf32>
        %695 = arith.subf %694, %693 : vector<1x32xf32>
        %696 = math.exp %695 : vector<1x32xf32>
        %cst_234 = arith.constant 1.000000e+00 : f32
        %697 = vector.broadcast %cst_234 : f32 to vector<1x32xf32>
        %698 = arith.addf %697, %696 : vector<1x32xf32>
        %cst_235 = arith.constant 1.000000e+00 : f32
        %699 = vector.broadcast %cst_235 : f32 to vector<1x32xf32>
        %700 = arith.divf %699, %698 : vector<1x32xf32>
        %701 = vector.extract_strided_slice %684 {offsets = [0, 64], sizes = [1, 32], strides = [1, 1]} : vector<1x128xf32> to vector<1x32xf32>
        %702 = math.tanh %701 : vector<1x32xf32>
        %703 = vector.extract_strided_slice %684 {offsets = [0, 96], sizes = [1, 32], strides = [1, 1]} : vector<1x128xf32> to vector<1x32xf32>
        %cst_236 = arith.constant 0.000000e+00 : f32
        %704 = vector.broadcast %cst_236 : f32 to vector<1x32xf32>
        %705 = arith.subf %704, %703 : vector<1x32xf32>
        %706 = math.exp %705 : vector<1x32xf32>
        %cst_237 = arith.constant 1.000000e+00 : f32
        %707 = vector.broadcast %cst_237 : f32 to vector<1x32xf32>
        %708 = arith.addf %707, %706 : vector<1x32xf32>
        %cst_238 = arith.constant 1.000000e+00 : f32
        %709 = vector.broadcast %cst_238 : f32 to vector<1x32xf32>
        %710 = arith.divf %709, %708 : vector<1x32xf32>
        %711 = arith.mulf %700, %678 : vector<1x32xf32>
        %712 = arith.mulf %692, %702 : vector<1x32xf32>
        %713 = arith.addf %711, %712 : vector<1x32xf32>
        %714 = math.tanh %713 : vector<1x32xf32>
        %715 = arith.mulf %710, %714 : vector<1x32xf32>
        %716 = arith.cmpi slt, %c6_i32_227, %401 : i32
        %c1_i32_239 = arith.constant 1 : i32
        %717 = arith.subi %401, %c1_i32_239 : i32
        %718 = arith.cmpi eq, %c6_i32_227, %717 : i32
        %c1_i32_240 = arith.constant 1 : i32
        %719 = arith.subi %401, %c1_i32_240 : i32
        %720 = arith.cmpi slt, %c6_i32_227, %719 : i32
        %721 = arith.select %716, %715, %677 : vector<1x32xf32>
        %722 = arith.select %716, %713, %678 : vector<1x32xf32>
        %723 = arith.select %718, %715, %679 : vector<1x32xf32>
        %724 = arith.select %720, %715, %680 : vector<1x32xf32>
        %c7_i32_241 = arith.constant 7 : i32
        %cst_242 = arith.constant dense<0.000000e+00> : vector<1x128xf32>
        %725 = tpu.matmul %724, %391, %cst_242 {dimension_numbers = #tpu.dot_dimension_numbers<[1], [0], [0], [1], [0, 0, 1, 1], [], []>} : vector<1x32xf32>, vector<32x128xf32>, vector<1x128xf32> -> vector<1x128xf32>
        %cst_243 = arith.constant dense<0.000000e+00> : vector<1x128xf32>
        %726 = tpu.matmul %721, %392, %cst_243 {dimension_numbers = #tpu.dot_dimension_numbers<[1], [0], [0], [1], [0, 0, 1, 1], [], []>} : vector<1x32xf32>, vector<32x128xf32>, vector<1x128xf32> -> vector<1x128xf32>
        %727 = arith.addf %725, %726 : vector<1x128xf32>
        %728 = arith.addf %727, %393 : vector<1x128xf32>
        %729 = vector.extract_strided_slice %728 {offsets = [0, 0], sizes = [1, 32], strides = [1, 1]} : vector<1x128xf32> to vector<1x32xf32>
        %cst_244 = arith.constant 0.000000e+00 : f32
        %730 = vector.broadcast %cst_244 : f32 to vector<1x32xf32>
        %731 = arith.subf %730, %729 : vector<1x32xf32>
        %732 = math.exp %731 : vector<1x32xf32>
        %cst_245 = arith.constant 1.000000e+00 : f32
        %733 = vector.broadcast %cst_245 : f32 to vector<1x32xf32>
        %734 = arith.addf %733, %732 : vector<1x32xf32>
        %cst_246 = arith.constant 1.000000e+00 : f32
        %735 = vector.broadcast %cst_246 : f32 to vector<1x32xf32>
        %736 = arith.divf %735, %734 : vector<1x32xf32>
        %737 = vector.extract_strided_slice %728 {offsets = [0, 32], sizes = [1, 32], strides = [1, 1]} : vector<1x128xf32> to vector<1x32xf32>
        %cst_247 = arith.constant 0.000000e+00 : f32
        %738 = vector.broadcast %cst_247 : f32 to vector<1x32xf32>
        %739 = arith.subf %738, %737 : vector<1x32xf32>
        %740 = math.exp %739 : vector<1x32xf32>
        %cst_248 = arith.constant 1.000000e+00 : f32
        %741 = vector.broadcast %cst_248 : f32 to vector<1x32xf32>
        %742 = arith.addf %741, %740 : vector<1x32xf32>
        %cst_249 = arith.constant 1.000000e+00 : f32
        %743 = vector.broadcast %cst_249 : f32 to vector<1x32xf32>
        %744 = arith.divf %743, %742 : vector<1x32xf32>
        %745 = vector.extract_strided_slice %728 {offsets = [0, 64], sizes = [1, 32], strides = [1, 1]} : vector<1x128xf32> to vector<1x32xf32>
        %746 = math.tanh %745 : vector<1x32xf32>
        %747 = vector.extract_strided_slice %728 {offsets = [0, 96], sizes = [1, 32], strides = [1, 1]} : vector<1x128xf32> to vector<1x32xf32>
        %cst_250 = arith.constant 0.000000e+00 : f32
        %748 = vector.broadcast %cst_250 : f32 to vector<1x32xf32>
        %749 = arith.subf %748, %747 : vector<1x32xf32>
        %750 = math.exp %749 : vector<1x32xf32>
        %cst_251 = arith.constant 1.000000e+00 : f32
        %751 = vector.broadcast %cst_251 : f32 to vector<1x32xf32>
        %752 = arith.addf %751, %750 : vector<1x32xf32>
        %cst_252 = arith.constant 1.000000e+00 : f32
        %753 = vector.broadcast %cst_252 : f32 to vector<1x32xf32>
        %754 = arith.divf %753, %752 : vector<1x32xf32>
        %755 = arith.mulf %744, %722 : vector<1x32xf32>
        %756 = arith.mulf %736, %746 : vector<1x32xf32>
        %757 = arith.addf %755, %756 : vector<1x32xf32>
        %758 = math.tanh %757 : vector<1x32xf32>
        %759 = arith.mulf %754, %758 : vector<1x32xf32>
        %760 = arith.cmpi slt, %c7_i32_241, %401 : i32
        %c1_i32_253 = arith.constant 1 : i32
        %761 = arith.subi %401, %c1_i32_253 : i32
        %762 = arith.cmpi eq, %c7_i32_241, %761 : i32
        %c1_i32_254 = arith.constant 1 : i32
        %763 = arith.subi %401, %c1_i32_254 : i32
        %764 = arith.cmpi slt, %c7_i32_241, %763 : i32
        %765 = arith.select %760, %759, %721 : vector<1x32xf32>
        %766 = arith.select %760, %757, %722 : vector<1x32xf32>
        %767 = arith.select %762, %759, %723 : vector<1x32xf32>
        %768 = arith.select %764, %759, %724 : vector<1x32xf32>
        %c8_i32_255 = arith.constant 8 : i32
        %769 = vector.shape_cast %403 : vector<2x1xi1> to vector<2x1xi1>
        %770 = vector.broadcast %769 : vector<2x1xi1> to vector<2x32xi1>
        %771 = vector.shape_cast %767 : vector<1x32xf32> to vector<1x32xf32>
        %772 = vector.broadcast %771 : vector<1x32xf32> to vector<2x32xf32>
        %773 = arith.select %770, %772, %arg16 : vector<2x32xi1>, vector<2x32xf32>
        scf.yield %768, %773 : vector<1x32xf32>, vector<2x32xf32>
      }
      %c2_i32_135 = arith.constant 2 : i32
      %c0_136 = arith.constant 0 : index
      %c0_137 = arith.constant 0 : index
      %399 = vector.load %arg11[%c0_136, %c0_137] : memref<2x32xf32, #tpu.memory_space<vmem>>, vector<2x32xf32>
      tpu.vector_store %arg11[%c0_136, %c0_137], %398#1 {strides = array<i32>} : memref<2x32xf32, #tpu.memory_space<vmem>>, vector<2x32xf32>,
    } else {
    }
    return
  }
  func.func @transform_0(%arg0: i32, %arg1: memref<2xi32, #tpu.memory_space<smem>>) -> (i32, i32, i32) {
    %c0_i32 = arith.constant 0 : i32
    %c0_i32_0 = arith.constant 0 : i32
    %c0_i32_1 = arith.constant 0 : i32
    return %arg0, %c0_i32, %c0_i32_0 : i32, i32, i32
  }
  func.func @transform_1(%arg0: i32, %arg1: memref<2xi32, #tpu.memory_space<smem>>) -> (i32, i32) {
    %c0_i32 = arith.constant 0 : i32
    %c0_i32_0 = arith.constant 0 : i32
    %c0_i32_1 = arith.constant 0 : i32
    return %c0_i32, %c0_i32_0 : i32, i32
  }
  func.func @transform_2(%arg0: i32, %arg1: memref<2xi32, #tpu.memory_space<smem>>) -> (i32, i32) {
    %c0_i32 = arith.constant 0 : i32
    %c0_i32_0 = arith.constant 0 : i32
    %c0_i32_1 = arith.constant 0 : i32
    return %c0_i32, %c0_i32_0 : i32, i32
  }
  func.func @transform_3(%arg0: i32, %arg1: memref<2xi32, #tpu.memory_space<smem>>) -> (i32, i32) {
    %c0_i32 = arith.constant 0 : i32
    %c0_i32_0 = arith.constant 0 : i32
    %c0_i32_1 = arith.constant 0 : i32
    return %c0_i32, %c0_i32_0 : i32, i32
  }
  func.func @transform_4(%arg0: i32, %arg1: memref<2xi32, #tpu.memory_space<smem>>) -> (i32, i32) {
    %c0_i32 = arith.constant 0 : i32
    %c0_i32_0 = arith.constant 0 : i32
    %c0_i32_1 = arith.constant 0 : i32
    return %c0_i32, %c0_i32_0 : i32, i32
  }
  func.func @transform_5(%arg0: i32, %arg1: memref<2xi32, #tpu.memory_space<smem>>) -> (i32, i32) {
    %c0_i32 = arith.constant 0 : i32
    %c0_i32_0 = arith.constant 0 : i32
    %c0_i32_1 = arith.constant 0 : i32
    return %c0_i32, %c0_i32_0 : i32, i32
  }
  func.func @transform_6(%arg0: i32, %arg1: memref<2xi32, #tpu.memory_space<smem>>) -> (i32, i32) {
    %c0_i32 = arith.constant 0 : i32
    %c0_i32_0 = arith.constant 0 : i32
    %c0_i32_1 = arith.constant 0 : i32
    return %c0_i32, %c0_i32_0 : i32, i32
  }
  func.func @transform_7(%arg0: i32, %arg1: memref<2xi32, #tpu.memory_space<smem>>) -> (i32, i32) {
    %c0_i32 = arith.constant 0 : i32
    %c0_i32_0 = arith.constant 0 : i32
    %c0_i32_1 = arith.constant 0 : i32
    return %c0_i32, %c0_i32_0 : i32, i32
  }
  func.func @transform_8(%arg0: i32, %arg1: memref<2xi32, #tpu.memory_space<smem>>) -> (i32, i32) {
    %c0_i32 = arith.constant 0 : i32
    %c0_i32_0 = arith.constant 0 : i32
    %c0_i32_1 = arith.constant 0 : i32
    return %c0_i32, %c0_i32_0 : i32, i32
  }
  func.func @transform_9(%arg0: i32, %arg1: memref<2xi32, #tpu.memory_space<smem>>) -> (i32, i32) {
    %c0_i32 = arith.constant 0 : i32
    %c0_i32_0 = arith.constant 0 : i32
    %c0_i32_1 = arith.constant 0 : i32
    return %c0_i32, %c0_i32_0 : i32, i32
  }
}

</mosaic_0001>

<llo_original>
// kernel: tpu_custom_call.1
$region0: #{tpu_custom_call.1}
  #allocation0 [shape = 'u32[]', space=smem, size = 0x4, offset = 0x4, fixed_abs, tag = 'smem constant byte address 0x4 - core index']
  #allocation1 [shape = 'u32[144,128]{1,0:T(1,128)}', space=vmem, size = 0x12000, scoped, tag = 'internal scratch']
  #allocation2 [shape = 'f32[2,32]{1,0:T(2,128)}', space=vmem, size = 0x400, scoped, tag = 'scratch operand']
  #allocation3 [shape = 'f32[2,32]{1,0:T(2,128)}', space=vmem, size = 0x400, scoped, tag = 'scratch operand']
  #allocation4 [shape = 's32[1]{0}', space=sflag, size = 0x4, scoped, tag = 'scoped memory for tpu_custom_call.1']
  #allocation5 [shape = 'u8[512]{0}', space=smem, size = 0x200, scoped, tag = 'prefetched SMEM operand 0']
  %s0 = inlined_call_operand.vmem [shape: s32[2], index: 0, kind: input, shape index: {}]
  %s1 = inlined_call_operand.hbm [shape: f32[8,2,32], index: 1, kind: input, shape index: {}]
  %s2 = inlined_call_operand.vmem [shape: s32[2,1], index: 2, kind: input, shape index: {}]
  %s3 = inlined_call_operand.vmem [shape: f32[1,32], index: 3, kind: input, shape index: {}]
  %s4 = inlined_call_operand.hbm [shape: f32[32,128], index: 4, kind: input, shape index: {}]
  %s5 = inlined_call_operand.hbm [shape: f32[32,128], index: 5, kind: input, shape index: {}]
  %s6 = inlined_call_operand.hbm [shape: f32[1,128], index: 6, kind: input, shape index: {}]
  %s7 = inlined_call_operand.hbm [shape: f32[32,128], index: 7, kind: input, shape index: {}]
  %s8 = inlined_call_operand.vmem [shape: f32[32,128], index: 8, kind: input, shape index: {}]
  %s9 = inlined_call_operand.vmem [shape: f32[1,128], index: 9, kind: input, shape index: {}]
  %s10 = inlined_call_operand.hbm [shape: f32[2,32], index: 10, kind: output, shape index: {}]
  %s11 = sld [smem:[#allocation0]]
  $region81: #{tpu_custom_call.1} parent=0
    _
  %s13 = ssub.s32 1, %s11
  %s14 = scalar_select 0, %s13, %s11
  %s15 = sshll.u32 %s0, 4
  %s16 = int_to_ptr.vmem [resolvable:$true] %s15
  %18 = dma.vmem_to_smem %s16, 16, [#allocation5], [#allocation4]
  %19 = dma.done [#allocation4], 16
  %20 = sfence
  $region1: #{tpu_custom_call.1} parent=0
    #allocation6 [shape = 'u8[8192]{0}', space=vmem, size = 0x2000, scoped, tag = 'input window, operand 1, single buffered']
    #allocation7 [shape = 's32[1]{0}', space=sflag, size = 0x4, scoped, tag = 'scoped memory for tpu_custom_call.1']
    #allocation8 [shape = 's32[1]{0}', space=sflag, size = 0x4, scoped, tag = 'scoped memory for tpu_custom_call.1']
    #allocation9 [shape = 'u8[16384]{0}', space=vmem, size = 0x4000, scoped, tag = 'input window, operand 4, single buffered']
    #allocation10 [shape = 's32[1]{0}', space=sflag, size = 0x4, scoped, tag = 'scoped memory for tpu_custom_call.1']
    #allocation11 [shape = 'u8[16384]{0}', space=vmem, size = 0x4000, scoped, tag = 'input window, operand 5, single buffered']
    #allocation12 [shape = 'u8[512]{0}', space=vmem, size = 0x400, scoped, tag = 'input window, operand 6, single buffered']
    #allocation13 [shape = 's32[1]{0}', space=sflag, size = 0x4, scoped, tag = 'scoped memory for tpu_custom_call.1']
    #allocation14 [shape = 'u8[16384]{0}', space=vmem, size = 0x4000, scoped, tag = 'input window, operand 7, single buffered']
    #allocation15 [shape = 'u8[1024]{0}', space=vmem, size = 0x400, scoped, tag = 'output window, operand 0, single buffered']
    %21 = vsyncpa [#allocation7], 0
    %22 = vsyncpa [#allocation10], 0
    %23 = vsyncpa [#allocation13], 0
    %24 = vsyncpa [#allocation8], 0
    // Predicated region
    $region2: #{tpu_custom_call.1} parent=1 // pred_check
      _
    $region3: #{tpu_custom_call.1} parent=1 // pred_check_branch
      %26 = sbr.rel (0) target = $region5
    $region4: #{tpu_custom_call.1} parent=1 // pred_region
      %s28 = ssub.s32 256, 256
      %29 = vsyncadd [#allocation7], %s28
      %s30 = sshll.u32 [#allocation6], 4
      %s31 = int_to_ptr.vmem [resolvable:$true] %s30
      %36 = dma.hbm_to_vmem [thread:$0]  %s1, 256, %s31, [#allocation7], 32, 32, 2
    $region5: #{tpu_custom_call.1} parent=1 // pred_fallthru
      _
    // Predicated region
    $region6: #{tpu_custom_call.1} parent=1 // pred_check
      _
    $region7: #{tpu_custom_call.1} parent=1 // pred_check_branch
      %38 = sbr.rel (0) target = $region9
    $region8: #{tpu_custom_call.1} parent=1 // pred_region
      _
    $region9: #{tpu_custom_call.1} parent=1 // pred_fallthru
      _
    // Predicated region
    $region10: #{tpu_custom_call.1} parent=1 // pred_check
      _
    $region11: #{tpu_custom_call.1} parent=1 // pred_check_branch
      %40 = sbr.rel (0) target = $region13
    $region12: #{tpu_custom_call.1} parent=1 // pred_region
      _
    $region13: #{tpu_custom_call.1} parent=1 // pred_fallthru
      _
    // Predicated region
    $region14: #{tpu_custom_call.1} parent=1 // pred_check
      _
    $region15: #{tpu_custom_call.1} parent=1 // pred_check_branch
      %42 = sbr.rel (0) target = $region17
    $region16: #{tpu_custom_call.1} parent=1 // pred_region
      %s44 = ssub.s32 512, 512
      %45 = vsyncadd [#allocation10], %s44
      %s46 = sshll.u32 [#allocation9], 4
      %s47 = int_to_ptr.vmem [resolvable:$true] %s46
      %52 = dma.hbm_to_vmem [thread:$0]  %s4, 512, %s47, [#allocation10], 128, 128, 8
    $region17: #{tpu_custom_call.1} parent=1 // pred_fallthru
      _
    // Predicated region
    $region18: #{tpu_custom_call.1} parent=1 // pred_check
      _
    $region19: #{tpu_custom_call.1} parent=1 // pred_check_branch
      %54 = sbr.rel (0) target = $region21
    $region20: #{tpu_custom_call.1} parent=1 // pred_region
      %s56 = ssub.s32 512, 512
      %57 = vsyncadd [#allocation10], %s56
      %s58 = sshll.u32 [#allocation11], 4
      %s59 = int_to_ptr.vmem [resolvable:$true] %s58
      %64 = dma.hbm_to_vmem [thread:$0]  %s5, 512, %s59, [#allocation10], 128, 128, 8
    $region21: #{tpu_custom_call.1} parent=1 // pred_fallthru
      _
    // Predicated region
    $region22: #{tpu_custom_call.1} parent=1 // pred_check
      _
    $region23: #{tpu_custom_call.1} parent=1 // pred_check_branch
      %66 = sbr.rel (0) target = $region25
    $region24: #{tpu_custom_call.1} parent=1 // pred_region
      %s68 = ssub.s32 16, 16
      %69 = vsyncadd [#allocation13], %s68
      %s71 = sshll.u32 [#allocation12], 4
      %s72 = int_to_ptr.vmem [resolvable:$true] %s71
      %74 = dma.hbm_to_vmem [thread:$0]  %s6, 16, %s72, [#allocation13]
    $region25: #{tpu_custom_call.1} parent=1 // pred_fallthru
      _
    // Predicated region
    $region26: #{tpu_custom_call.1} parent=1 // pred_check
      _
    $region27: #{tpu_custom_call.1} parent=1 // pred_check_branch
      %76 = sbr.rel (0) target = $region29
    $region28: #{tpu_custom_call.1} parent=1 // pred_region
      %s78 = ssub.s32 512, 512
      %79 = vsyncadd [#allocation13], %s78
      %s80 = sshll.u32 [#allocation14], 4
      %s81 = int_to_ptr.vmem [resolvable:$true] %s80
      %86 = dma.hbm_to_vmem [thread:$0]  %s7, 512, %s81, [#allocation13], 128, 128, 8
    $region29: #{tpu_custom_call.1} parent=1 // pred_fallthru
      _
    // Predicated region
    $region30: #{tpu_custom_call.1} parent=1 // pred_check
      _
    $region31: #{tpu_custom_call.1} parent=1 // pred_check_branch
      %88 = sbr.rel (0) target = $region33
    $region32: #{tpu_custom_call.1} parent=1 // pred_region
      _
    $region33: #{tpu_custom_call.1} parent=1 // pred_fallthru
      _
    // Predicated region
    $region34: #{tpu_custom_call.1} parent=1 // pred_check
      _
    $region35: #{tpu_custom_call.1} parent=1 // pred_check_branch
      %90 = sbr.rel (0) target = $region37
    $region36: #{tpu_custom_call.1} parent=1 // pred_region
      _
    $region37: #{tpu_custom_call.1} parent=1 // pred_fallthru
      _
    // Predicated region
    $region38: #{tpu_custom_call.1} parent=1 // pred_check
      _
    $region39: #{tpu_custom_call.1} parent=1 // pred_check_branch
      %92 = sbr.rel (0) target = $region41
    $region40: #{tpu_custom_call.1} parent=1 // pred_region
      %93 = dma.done [#allocation7], 256
    $region41: #{tpu_custom_call.1} parent=1 // pred_fallthru
      _
    // Predicated region
    $region42: #{tpu_custom_call.1} parent=1 // pred_check
      _
    $region43: #{tpu_custom_call.1} parent=1 // pred_check_branch
      %95 = sbr.rel (0) target = $region45
    $region44: #{tpu_custom_call.1} parent=1 // pred_region
      %96 = dma.done [#allocation10], 512
    $region45: #{tpu_custom_call.1} parent=1 // pred_fallthru
      _
    // Predicated region
    $region46: #{tpu_custom_call.1} parent=1 // pred_check
      _
    $region47: #{tpu_custom_call.1} parent=1 // pred_check_branch
      %98 = sbr.rel (0) target = $region49
    $region48: #{tpu_custom_call.1} parent=1 // pred_region
      %99 = dma.done [#allocation10], 512
    $region49: #{tpu_custom_call.1} parent=1 // pred_fallthru
      _
    // Predicated region
    $region50: #{tpu_custom_call.1} parent=1 // pred_check
      _
    $region51: #{tpu_custom_call.1} parent=1 // pred_check_branch
      %101 = sbr.rel (0) target = $region53
    $region52: #{tpu_custom_call.1} parent=1 // pred_region
      %102 = dma.done [#allocation13], 16
    $region53: #{tpu_custom_call.1} parent=1 // pred_fallthru
      _
    // Predicated region
    $region54: #{tpu_custom_call.1} parent=1 // pred_check
      _
    $region55: #{tpu_custom_call.1} parent=1 // pred_check_branch
      %104 = sbr.rel (0) target = $region57
    $region56: #{tpu_custom_call.1} parent=1 // pred_region
      %105 = dma.done [#allocation13], 512
    $region57: #{tpu_custom_call.1} parent=1 // pred_fallthru
      _
    %p106 = scmp.eq.s32.totalorder 0, 0
    // Predicated region
    $region58: #{tpu_custom_call.1} parent=1 // pred_check
      %p107 = pneg %p106
    $region59: #{tpu_custom_call.1} parent=1 // pred_check_branch
      %109 = sbr.rel (%p107) target = $region61
    $region60: #{tpu_custom_call.1} parent=1 // pred_region
      %vm110 = vcmask 254976
      %111 = vst.msk [vmem:[#allocation2] sm:$0x3] %vm110, 0.0
      %112 = vst.msk [vmem:[#allocation3] sm:$0x3] %vm110, 0.0
    $region61: #{tpu_custom_call.1} parent=1 // pred_fallthru
      _
    %s113 = smul.u32 0, 8
    %v114 = vld [vmem:[%s2] sm:$0x3]
    %v115 = vld [vmem:[#allocation9] sm:$0xff]
    %v116 = vld [vmem:[#allocation9 + $0x8] sm:$0xff]
    %v117 = vld [vmem:[#allocation9 + $0x10] sm:$0xff]
    %v118 = vld [vmem:[#allocation9 + $0x18] sm:$0xff]
    %v119 = vld [vmem:[#allocation11] sm:$0xff]
    %v120 = vld [vmem:[#allocation11 + $0x8] sm:$0xff]
    %v121 = vld [vmem:[#allocation11 + $0x10] sm:$0xff]
    %v122 = vld [vmem:[#allocation11 + $0x18] sm:$0xff]
    %v123 = vld [vmem:[#allocation12] sm:$0x1]
    %v124 = vld [vmem:[#allocation2] sm:$0x3]
    %v125 = vld [vmem:[#allocation3] sm:$0x3]
    %v126 = vld [vmem:[#allocation6] sm:$0x3]
    %vm127 = vcmask 261120
    %v129 = vsel %vm127, %v124, 0
    %131 = vmatprep.subr.mxu0 0.0
    %132 = vmatpush1.msra.mxu0 %v119
    %133 = vmatprep.subr.mxu0 0.0
    %134 = vmatpush1.msra.mxu0 %v120
    %135 = vmatprep.subr.mxu0 0.0
    %136 = vmatpush1.msra.mxu0 %v121
    %137 = vmatprep.subr.mxu0 0.0
    %138 = vmatpush1.msra.mxu0 %v122
    %139 = vmatprep.subr.mxu0 0.0
    %140 = vmatpush1.msra.mxu0 0.0
    %141 = vmatprep.subr.mxu0 0.0
    %142 = vmatpush1.msra.mxu0 0.0
    %143 = vmatprep.subr.mxu0 0.0
    %144 = vmatpush1.msra.mxu0 0.0
    %145 = vmatprep.subr.mxu0 0.0
    %146 = vmatpush1.msra.mxu0 0.0
    %147 = vmatprep.subr.mxu0 0.0
    %148 = vmatpush1.msra.mxu0 0.0
    %149 = vmatprep.subr.mxu0 0.0
    %150 = vmatpush1.msra.mxu0 0.0
    %151 = vmatprep.subr.mxu0 0.0
    %152 = vmatpush1.msra.mxu0 0.0
    %153 = vmatprep.subr.mxu0 0.0
    %154 = vmatpush1.msra.mxu0 0.0
    %155 = vmatprep.subr.mxu0 0.0
    %156 = vmatpush1.msra.mxu0 0.0
    %157 = vmatprep.subr.mxu0 0.0
    %158 = vmatpush1.msra.mxu0 0.0
    %159 = vmatprep.subr.mxu0 0.0
    %160 = vmatpush1.msra.mxu0 0.0
    %161 = vmatprep.subr.mxu0 0.0
    %162 = vmatpush1.msra.mxu0 0.0
    %163 = vmatprep.subr.mxu0 0.0
    %164 = vmatpush1.msra.mxu0 0.0
    %165 = vmatprep.subr.mxu0 0.0
    %166 = vmatpush1.msra.mxu0 0.0
    %167 = vmatprep.subr.mxu0 0.0
    %168 = vmatpush1.msra.mxu0 0.0
    %169 = vmatprep.subr.mxu0 0.0
    %170 = vmatpush1.msra.mxu0 0.0
    %171 = vmatprep.subr.mxu0 0.0
    %172 = vmatpush1.msra.mxu0 0.0
    %173 = vmatprep.subr.mxu0 0.0
    %174 = vmatpush1.msra.mxu0 0.0
    %175 = vmatprep.subr.mxu0 0.0
    %176 = vmatpush1.msra.mxu0 0.0
    %177 = vmatprep.subr.mxu0 0.0
    %178 = vmatpush1.msra.mxu0 0.0
    %179 = vmatprep.subr.mxu0 0.0
    %180 = vmatpush1.msra.mxu0 0.0
    %181 = vmatprep.subr.mxu0 0.0
    %182 = vmatpush1.msra.mxu0 0.0
    %183 = vmatprep.subr.mxu0 0.0
    %184 = vmatpush1.msra.mxu0 0.0
    %185 = vmatprep.subr.mxu0 0.0
    %186 = vmatpush1.msra.mxu0 0.0
    %187 = vmatprep.subr.mxu0 0.0
    %188 = vmatpush1.msra.mxu0 0.0
    %189 = vmatprep.subr.mxu0 0.0
    %190 = vmatpush1.msra.mxu0 0.0
    %191 = vmatprep.subr.mxu0 0.0
    %192 = vmatpush1.msra.mxu0 0.0
    %193 = vmatprep.subr.mxu0 0.0
    %194 = vmatpush1.msra.mxu0 0.0
    %195 = vmatprep.mubr.f32.mxu0 0.0
    %196 = vmatmul.mubr.f32.gmra.mrb[0].mxu0 %v129
    %v197 = vpop.f32.mrb[0].mxu0
    %v198 = vadd.f32 0.0, %v197
    %v199 = vpop.f32.mrb[0].mxu0
    %200 = vdwg.mxu0
    %v202 = vsel %vm127, %v126, 0
    %204 = vmatprep.subr.mxu0 0.0
    %205 = vmatpush1.msra.mxu0 %v115
    %206 = vmatprep.subr.mxu0 0.0
    %207 = vmatpush1.msra.mxu0 %v116
    %208 = vmatprep.subr.mxu0 0.0
    %209 = vmatpush1.msra.mxu0 %v117
    %210 = vmatprep.subr.mxu0 0.0
    %211 = vmatpush1.msra.mxu0 %v118
    %212 = vmatprep.subr.mxu0 0.0
    %213 = vmatpush1.msra.mxu0 0.0
    %214 = vmatprep.subr.mxu0 0.0
    %215 = vmatpush1.msra.mxu0 0.0
    %216 = vmatprep.subr.mxu0 0.0
    %217 = vmatpush1.msra.mxu0 0.0
    %218 = vmatprep.subr.mxu0 0.0
    %219 = vmatpush1.msra.mxu0 0.0
    %220 = vmatprep.subr.mxu0 0.0
    %221 = vmatpush1.msra.mxu0 0.0
    %222 = vmatprep.subr.mxu0 0.0
    %223 = vmatpush1.msra.mxu0 0.0
    %224 = vmatprep.subr.mxu0 0.0
    %225 = vmatpush1.msra.mxu0 0.0
    %226 = vmatprep.subr.mxu0 0.0
    %227 = vmatpush1.msra.mxu0 0.0
    %228 = vmatprep.subr.mxu0 0.0
    %229 = vmatpush1.msra.mxu0 0.0
    %230 = vmatprep.subr.mxu0 0.0
    %231 = vmatpush1.msra.mxu0 0.0
    %232 = vmatprep.subr.mxu0 0.0
    %233 = vmatpush1.msra.mxu0 0.0
    %234 = vmatprep.subr.mxu0 0.0
    %235 = vmatpush1.msra.mxu0 0.0
    %236 = vmatprep.subr.mxu0 0.0
    %237 = vmatpush1.msra.mxu0 0.0
    %238 = vmatprep.subr.mxu0 0.0
    %239 = vmatpush1.msra.mxu0 0.0
    %240 = vmatprep.subr.mxu0 0.0
    %241 = vmatpush1.msra.mxu0 0.0
    %242 = vmatprep.subr.mxu0 0.0
    %243 = vmatpush1.msra.mxu0 0.0
    %244 = vmatprep.subr.mxu0 0.0
    %245 = vmatpush1.msra.mxu0 0.0
    %246 = vmatprep.subr.mxu0 0.0
    %247 = vmatpush1.msra.mxu0 0.0
    %248 = vmatprep.subr.mxu0 0.0
    %249 = vmatpush1.msra.mxu0 0.0
    %250 = vmatprep.subr.mxu0 0.0
    %251 = vmatpush1.msra.mxu0 0.0
    %252 = vmatprep.subr.mxu0 0.0
    %253 = vmatpush1.msra.mxu0 0.0
    %254 = vmatprep.subr.mxu0 0.0
    %255 = vmatpush1.msra.mxu0 0.0
    %256 = vmatprep.subr.mxu0 0.0
    %257 = vmatpush1.msra.mxu0 0.0
    %258 = vmatprep.subr.mxu0 0.0
    %259 = vmatpush1.msra.mxu0 0.0
    %260 = vmatprep.subr.mxu0 0.0
    %261 = vmatpush1.msra.mxu0 0.0
    %262 = vmatprep.subr.mxu0 0.0
    %263 = vmatpush1.msra.mxu0 0.0
    %264 = vmatprep.subr.mxu0 0.0
    %265 = vmatpush1.msra.mxu0 0.0
    %266 = vmatprep.subr.mxu0 0.0
    %267 = vmatpush1.msra.mxu0 0.0
    %268 = vmatprep.mubr.f32.mxu0 0.0
    %269 = vmatmul.mubr.f32.gmra.mrb[0].mxu0 %v202
    %v270 = vpop.f32.mrb[0].mxu0
    %v271 = vadd.f32 %v198, %v270
    %v272 = vpop.f32.mrb[0].mxu0
    %273 = vdwg.mxu0
    %v275 = vlaneseq
    %v276 = vshrl.u32 %v275, 7
    %v277 = vsub.s32 0, %v276
    %v278 = vrot.slane %v123, %v277
    %v280 = vadd.f32 %v271, %v278
    %v281 = vsub.f32 0.0, %v280
    %v282 = vmul.f32 %v281, 1.442695
    %v283 = vpow.pop %v282
    %v284 = vadd.f32 %v283, 1.0
    %v285 = vrcp.pop %v284
    %v286 = vmul.f32 1.0, %v285
    %v287 = vtanh.pop %v280
    %289 = vrot.lane.b32.xlu0 %v125, 32
    %v290 = vpop.permute.xlu0 %289
    %v292 = vmul.f32 %v286, %v290
    %294 = vrot.lane.b32.xlu0 %v287, 64
    %v295 = vpop.permute.xlu0 %294
    %v297 = vmul.f32 %v286, %v295
    %299 = vrot.lane.b32.xlu0 %v297, 32
    %v300 = vpop.permute.xlu0 %299
    %v302 = vadd.f32 %v292, %v300
    %v303 = vtanh.pop %v302
    %305 = vrot.lane.b32.xlu0 %v303, 64
    %v306 = vpop.permute.xlu0 %305
    %v308 = vmul.f32 %v286, %v306
    %v309 = vstv %s113
    %vm310 = vcmp.lt.s32.totalorder %v309, %v114
    %v311 = vsel %vm310, 1, 0
    %312 = vset.pattern.permute.xlu0 0
    %313 = vperm.xlu0 %312, %v311
    %v314 = vpop.permute.xlu0 %313
    %vm315 = vcmp.eq.s32.totalorder %v314, 1
    %316 = vrot.lane.b32.xlu0 %v124, 96
    %v317 = vpop.permute.xlu0 %316
    %v319 = vsel %vm315, %v308, %v317
    %v320 = vsel %vm315, %v302, %v290
    %s321 = scalar_lea.vmem [#allocation6], 2
    %v322 = vld [vmem:[%s321] sm:$0x3]
    %324 = vrot.lane.b32.xlu0 %v319, 32
    %v325 = vpop.permute.xlu0 %324
    %v326 = vsel %vm127, %v325, 0
    %328 = vmatprep.subr.mxu0 0.0
    %329 = vmatpush1.msra.mxu0 %v119
    %330 = vmatprep.subr.mxu0 0.0
    %331 = vmatpush1.msra.mxu0 %v120
    %332 = vmatprep.subr.mxu0 0.0
    %333 = vmatpush1.msra.mxu0 %v121
    %334 = vmatprep.subr.mxu0 0.0
    %335 = vmatpush1.msra.mxu0 %v122
    %336 = vmatprep.subr.mxu0 0.0
    %337 = vmatpush1.msra.mxu0 0.0
    %338 = vmatprep.subr.mxu0 0.0
    %339 = vmatpush1.msra.mxu0 0.0
    %340 = vmatprep.subr.mxu0 0.0
    %341 = vmatpush1.msra.mxu0 0.0
    %342 = vmatprep.subr.mxu0 0.0
    %343 = vmatpush1.msra.mxu0 0.0
    %344 = vmatprep.subr.mxu0 0.0
    %345 = vmatpush1.msra.mxu0 0.0
    %346 = vmatprep.subr.mxu0 0.0
    %347 = vmatpush1.msra.mxu0 0.0
    %348 = vmatprep.subr.mxu0 0.0
    %349 = vmatpush1.msra.mxu0 0.0
    %350 = vmatprep.subr.mxu0 0.0
    %351 = vmatpush1.msra.mxu0 0.0
    %352 = vmatprep.subr.mxu0 0.0
    %353 = vmatpush1.msra.mxu0 0.0
    %354 = vmatprep.subr.mxu0 0.0
    %355 = vmatpush1.msra.mxu0 0.0
    %356 = vmatprep.subr.mxu0 0.0
    %357 = vmatpush1.msra.mxu0 0.0
    %358 = vmatprep.subr.mxu0 0.0
    %359 = vmatpush1.msra.mxu0 0.0
    %360 = vmatprep.subr.mxu0 0.0
    %361 = vmatpush1.msra.mxu0 0.0
    %362 = vmatprep.subr.mxu0 0.0
    %363 = vmatpush1.msra.mxu0 0.0
    %364 = vmatprep.subr.mxu0 0.0
    %365 = vmatpush1.msra.mxu0 0.0
    %366 = vmatprep.subr.mxu0 0.0
    %367 = vmatpush1.msra.mxu0 0.0
    %368 = vmatprep.subr.mxu0 0.0
    %369 = vmatpush1.msra.mxu0 0.0
    %370 = vmatprep.subr.mxu0 0.0
    %371 = vmatpush1.msra.mxu0 0.0
    %372 = vmatprep.subr.mxu0 0.0
    %373 = vmatpush1.msra.mxu0 0.0
    %374 = vmatprep.subr.mxu0 0.0
    %375 = vmatpush1.msra.mxu0 0.0
    %376 = vmatprep.subr.mxu0 0.0
    %377 = vmatpush1.msra.mxu0 0.0
    %378 = vmatprep.subr.mxu0 0.0
    %379 = vmatpush1.msra.mxu0 0.0
    %380 = vmatprep.subr.mxu0 0.0
    %381 = vmatpush1.msra.mxu0 0.0
    %382 = vmatprep.subr.mxu0 0.0
    %383 = vmatpush1.msra.mxu0 0.0
    %384 = vmatprep.subr.mxu0 0.0
    %385 = vmatpush1.msra.mxu0 0.0
    %386 = vmatprep.subr.mxu0 0.0
    %387 = vmatpush1.msra.mxu0 0.0
    %388 = vmatprep.subr.mxu0 0.0
    %389 = vmatpush1.msra.mxu0 0.0
    %390 = vmatprep.subr.mxu0 0.0
    %391 = vmatpush1.msra.mxu0 0.0
    %392 = vmatprep.mubr.f32.mxu0 0.0
    %393 = vmatmul.mubr.f32.gmra.mrb[0].mxu0 %v326
    %v394 = vpop.f32.mrb[0].mxu0
    %v395 = vadd.f32 0.0, %v394
    %v396 = vpop.f32.mrb[0].mxu0
    %397 = vdwg.mxu0
    %v399 = vsel %vm127, %v322, 0
    %401 = vmatprep.subr.mxu0 0.0
    %402 = vmatpush1.msra.mxu0 %v115
    %403 = vmatprep.subr.mxu0 0.0
    %404 = vmatpush1.msra.mxu0 %v116
    %405 = vmatprep.subr.mxu0 0.0
    %406 = vmatpush1.msra.mxu0 %v117
    %407 = vmatprep.subr.mxu0 0.0
    %408 = vmatpush1.msra.mxu0 %v118
    %409 = vmatprep.subr.mxu0 0.0
    %410 = vmatpush1.msra.mxu0 0.0
    %411 = vmatprep.subr.mxu0 0.0
    %412 = vmatpush1.msra.mxu0 0.0
    %413 = vmatprep.subr.mxu0 0.0
    %414 = vmatpush1.msra.mxu0 0.0
    %415 = vmatprep.subr.mxu0 0.0
    %416 = vmatpush1.msra.mxu0 0.0
    %417 = vmatprep.subr.mxu0 0.0
    %418 = vmatpush1.msra.mxu0 0.0
    %419 = vmatprep.subr.mxu0 0.0
    %420 = vmatpush1.msra.mxu0 0.0
    %421 = vmatprep.subr.mxu0 0.0
    %422 = vmatpush1.msra.mxu0 0.0
    %423 = vmatprep.subr.mxu0 0.0
    %424 = vmatpush1.msra.mxu0 0.0
    %425 = vmatprep.subr.mxu0 0.0
    %426 = vmatpush1.msra.mxu0 0.0
    %427 = vmatprep.subr.mxu0 0.0
    %428 = vmatpush1.msra.mxu0 0.0
    %429 = vmatprep.subr.mxu0 0.0
    %430 = vmatpush1.msra.mxu0 0.0
    %431 = vmatprep.subr.mxu0 0.0
    %432 = vmatpush1.msra.mxu0 0.0
    %433 = vmatprep.subr.mxu0 0.0
    %434 = vmatpush1.msra.mxu0 0.0
    %435 = vmatprep.subr.mxu0 0.0
    %436 = vmatpush1.msra.mxu0 0.0
    %437 = vmatprep.subr.mxu0 0.0
    %438 = vmatpush1.msra.mxu0 0.0
    %439 = vmatprep.subr.mxu0 0.0
    %440 = vmatpush1.msra.mxu0 0.0
    %441 = vmatprep.subr.mxu0 0.0
    %442 = vmatpush1.msra.mxu0 0.0
    %443 = vmatprep.subr.mxu0 0.0
    %444 = vmatpush1.msra.mxu0 0.0
    %445 = vmatprep.subr.mxu0 0.0
    %446 = vmatpush1.msra.mxu0 0.0
    %447 = vmatprep.subr.mxu0 0.0
    %448 = vmatpush1.msra.mxu0 0.0
    %449 = vmatprep.subr.mxu0 0.0
    %450 = vmatpush1.msra.mxu0 0.0
    %451 = vmatprep.subr.mxu0 0.0
    %452 = vmatpush1.msra.mxu0 0.0
    %453 = vmatprep.subr.mxu0 0.0
    %454 = vmatpush1.msra.mxu0 0.0
    %455 = vmatprep.subr.mxu0 0.0
    %456 = vmatpush1.msra.mxu0 0.0
    %457 = vmatprep.subr.mxu0 0.0
    %458 = vmatpush1.msra.mxu0 0.0
    %459 = vmatprep.subr.mxu0 0.0
    %460 = vmatpush1.msra.mxu0 0.0
    %461 = vmatprep.subr.mxu0 0.0
    %462 = vmatpush1.msra.mxu0 0.0
    %463 = vmatprep.subr.mxu0 0.0
    %464 = vmatpush1.msra.mxu0 0.0
    %465 = vmatprep.mubr.f32.mxu0 0.0
    %466 = vmatmul.mubr.f32.gmra.mrb[0].mxu0 %v399
    %v467 = vpop.f32.mrb[0].mxu0
    %v468 = vadd.f32 %v395, %v467
    %v469 = vpop.f32.mrb[0].mxu0
    %470 = vdwg.mxu0
    %v471 = vadd.f32 %v468, %v278
    %v472 = vsub.f32 0.0, %v471
    %v473 = vmul.f32 %v472, 1.442695
    %v474 = vpow.pop %v473
    %v475 = vadd.f32 %v474, 1.0
    %v476 = vrcp.pop %v475
    %v477 = vmul.f32 1.0, %v476
    %v478 = vtanh.pop %v471
    %v479 = vmul.f32 %v477, %v320
    %481 = vrot.lane.b32.xlu0 %v478, 64
    %v482 = vpop.permute.xlu0 %481
    %v484 = vmul.f32 %v477, %v482
    %486 = vrot.lane.b32.xlu0 %v484, 32
    %v487 = vpop.permute.xlu0 %486
    %v489 = vadd.f32 %v479, %v487
    %v490 = vtanh.pop %v489
    %492 = vrot.lane.b32.xlu0 %v490, 64
    %v493 = vpop.permute.xlu0 %492
    %v495 = vmul.f32 %v477, %v493
    %s496 = sadd.s32 %s113, 1
    %v497 = vstv %s496
    %vm498 = vcmp.lt.s32.totalorder %v497, %v114
    %v499 = vsel %vm498, 1, 0
    %500 = vset.pattern.permute.xlu0 0
    %501 = vperm.xlu0 %500, %v499
    %v502 = vpop.permute.xlu0 %501
    %vm503 = vcmp.eq.s32.totalorder %v502, 1
    %v504 = vsel %vm503, %v495, %v319
    %v505 = vsel %vm503, %v489, %v320
    %s506 = scalar_lea.vmem [#allocation6], 4
    %v507 = vld [vmem:[%s506] sm:$0x3]
    %509 = vrot.lane.b32.xlu0 %v504, 32
    %v510 = vpop.permute.xlu0 %509
    %v511 = vsel %vm127, %v510, 0
    %513 = vmatprep.subr.mxu0 0.0
    %514 = vmatpush1.msra.mxu0 %v119
    %515 = vmatprep.subr.mxu0 0.0
    %516 = vmatpush1.msra.mxu0 %v120
    %517 = vmatprep.subr.mxu0 0.0
    %518 = vmatpush1.msra.mxu0 %v121
    %519 = vmatprep.subr.mxu0 0.0
    %520 = vmatpush1.msra.mxu0 %v122
    %521 = vmatprep.subr.mxu0 0.0
    %522 = vmatpush1.msra.mxu0 0.0
    %523 = vmatprep.subr.mxu0 0.0
    %524 = vmatpush1.msra.mxu0 0.0
    %525 = vmatprep.subr.mxu0 0.0
    %526 = vmatpush1.msra.mxu0 0.0
    %527 = vmatprep.subr.mxu0 0.0
    %528 = vmatpush1.msra.mxu0 0.0
    %529 = vmatprep.subr.mxu0 0.0
    %530 = vmatpush1.msra.mxu0 0.0
    %531 = vmatprep.subr.mxu0 0.0
    %532 = vmatpush1.msra.mxu0 0.0
    %533 = vmatprep.subr.mxu0 0.0
    %534 = vmatpush1.msra.mxu0 0.0
    %535 = vmatprep.subr.mxu0 0.0
    %536 = vmatpush1.msra.mxu0 0.0
    %537 = vmatprep.subr.mxu0 0.0
    %538 = vmatpush1.msra.mxu0 0.0
    %539 = vmatprep.subr.mxu0 0.0
    %540 = vmatpush1.msra.mxu0 0.0
    %541 = vmatprep.subr.mxu0 0.0
    %542 = vmatpush1.msra.mxu0 0.0
    %543 = vmatprep.subr.mxu0 0.0
    %544 = vmatpush1.msra.mxu0 0.0
    %545 = vmatprep.subr.mxu0 0.0
    %546 = vmatpush1.msra.mxu0 0.0
    %547 = vmatprep.subr.mxu0 0.0
    %548 = vmatpush1.msra.mxu0 0.0
    %549 = vmatprep.subr.mxu0 0.0
    %550 = vmatpush1.msra.mxu0 0.0
    %551 = vmatprep.subr.mxu0 0.0
    %552 = vmatpush1.msra.mxu0 0.0
    %553 = vmatprep.subr.mxu0 0.0
    %554 = vmatpush1.msra.mxu0 0.0
    %555 = vmatprep.subr.mxu0 0.0
    %556 = vmatpush1.msra.mxu0 0.0
    %557 = vmatprep.subr.mxu0 0.0
    %558 = vmatpush1.msra.mxu0 0.0
    %559 = vmatprep.subr.mxu0 0.0
    %560 = vmatpush1.msra.mxu0 0.0
    %561 = vmatprep.subr.mxu0 0.0
    %562 = vmatpush1.msra.mxu0 0.0
    %563 = vmatprep.subr.mxu0 0.0
    %564 = vmatpush1.msra.mxu0 0.0
    %565 = vmatprep.subr.mxu0 0.0
    %566 = vmatpush1.msra.mxu0 0.0
    %567 = vmatprep.subr.mxu0 0.0
    %568 = vmatpush1.msra.mxu0 0.0
    %569 = vmatprep.subr.mxu0 0.0
    %570 = vmatpush1.msra.mxu0 0.0
    %571 = vmatprep.subr.mxu0 0.0
    %572 = vmatpush1.msra.mxu0 0.0
    %573 = vmatprep.subr.mxu0 0.0
    %574 = vmatpush1.msra.mxu0 0.0
    %575 = vmatprep.subr.mxu0 0.0
    %576 = vmatpush1.msra.mxu0 0.0
    %577 = vmatprep.mubr.f32.mxu0 0.0
    %578 = vmatmul.mubr.f32.gmra.mrb[0].mxu0 %v511
    %v579 = vpop.f32.mrb[0].mxu0
    %v580 = vadd.f32 0.0, %v579
    %v581 = vpop.f32.mrb[0].mxu0
    %582 = vdwg.mxu0
    %v584 = vsel %vm127, %v507, 0
    %586 = vmatprep.subr.mxu0 0.0
    %587 = vmatpush1.msra.mxu0 %v115
    %588 = vmatprep.subr.mxu0 0.0
    %589 = vmatpush1.msra.mxu0 %v116
    %590 = vmatprep.subr.mxu0 0.0
    %591 = vmatpush1.msra.mxu0 %v117
    %592 = vmatprep.subr.mxu0 0.0
    %593 = vmatpush1.msra.mxu0 %v118
    %594 = vmatprep.subr.mxu0 0.0
    %595 = vmatpush1.msra.mxu0 0.0
    %596 = vmatprep.subr.mxu0 0.0
    %597 = vmatpush1.msra.mxu0 0.0
    %598 = vmatprep.subr.mxu0 0.0
    %599 = vmatpush1.msra.mxu0 0.0
    %600 = vmatprep.subr.mxu0 0.0
    %601 = vmatpush1.msra.mxu0 0.0
    %602 = vmatprep.subr.mxu0 0.0
    %603 = vmatpush1.msra.mxu0 0.0
    %604 = vmatprep.subr.mxu0 0.0
    %605 = vmatpush1.msra.mxu0 0.0
    %606 = vmatprep.subr.mxu0 0.0
    %607 = vmatpush1.msra.mxu0 0.0
    %608 = vmatprep.subr.mxu0 0.0
    %609 = vmatpush1.msra.mxu0 0.0
    %610 = vmatprep.subr.mxu0 0.0
    %611 = vmatpush1.msra.mxu0 0.0
    %612 = vmatprep.subr.mxu0 0.0
    %613 = vmatpush1.msra.mxu0 0.0
    %614 = vmatprep.subr.mxu0 0.0
    %615 = vmatpush1.msra.mxu0 0.0
    %616 = vmatprep.subr.mxu0 0.0
    %617 = vmatpush1.msra.mxu0 0.0
    %618 = vmatprep.subr.mxu0 0.0
    %619 = vmatpush1.msra.mxu0 0.0
    %620 = vmatprep.subr.mxu0 0.0
    %621 = vmatpush1.msra.mxu0 0.0
    %622 = vmatprep.subr.mxu0 0.0
    %623 = vmatpush1.msra.mxu0 0.0
    %624 = vmatprep.subr.mxu0 0.0
    %625 = vmatpush1.msra.mxu0 0.0
    %626 = vmatprep.subr.mxu0 0.0
    %627 = vmatpush1.msra.mxu0 0.0
    %628 = vmatprep.subr.mxu0 0.0
    %629 = vmatpush1.msra.mxu0 0.0
    %630 = vmatprep.subr.mxu0 0.0
    %631 = vmatpush1.msra.mxu0 0.0
    %632 = vmatprep.subr.mxu0 0.0
    %633 = vmatpush1.msra.mxu0 0.0
    %634 = vmatprep.subr.mxu0 0.0
    %635 = vmatpush1.msra.mxu0 0.0
    %636 = vmatprep.subr.mxu0 0.0
    %637 = vmatpush1.msra.mxu0 0.0
    %638 = vmatprep.subr.mxu0 0.0
    %639 = vmatpush1.msra.mxu0 0.0
    %640 = vmatprep.subr.mxu0 0.0
    %641 = vmatpush1.msra.mxu0 0.0
    %642 = vmatprep.subr.mxu0 0.0
    %643 = vmatpush1.msra.mxu0 0.0
    %644 = vmatprep.subr.mxu0 0.0
    %645 = vmatpush1.msra.mxu0 0.0
    %646 = vmatprep.subr.mxu0 0.0
    %647 = vmatpush1.msra.mxu0 0.0
    %648 = vmatprep.subr.mxu0 0.0
    %649 = vmatpush1.msra.mxu0 0.0
    %650 = vmatprep.mubr.f32.mxu0 0.0
    %651 = vmatmul.mubr.f32.gmra.mrb[0].mxu0 %v584
    %v652 = vpop.f32.mrb[0].mxu0
    %v653 = vadd.f32 %v580, %v652
    %v654 = vpop.f32.mrb[0].mxu0
    %655 = vdwg.mxu0
    %v656 = vadd.f32 %v653, %v278
    %v657 = vsub.f32 0.0, %v656
    %v658 = vmul.f32 %v657, 1.442695
    %v659 = vpow.pop %v658
    %v660 = vadd.f32 %v659, 1.0
    %v661 = vrcp.pop %v660
    %v662 = vmul.f32 1.0, %v661
    %v663 = vtanh.pop %v656
    %v664 = vmul.f32 %v662, %v505
    %666 = vrot.lane.b32.xlu0 %v663, 64
    %v667 = vpop.permute.xlu0 %666
    %v669 = vmul.f32 %v662, %v667
    %671 = vrot.lane.b32.xlu0 %v669, 32
    %v672 = vpop.permute.xlu0 %671
    %v674 = vadd.f32 %v664, %v672
    %v675 = vtanh.pop %v674
    %677 = vrot.lane.b32.xlu0 %v675, 64
    %v678 = vpop.permute.xlu0 %677
    %v680 = vmul.f32 %v662, %v678
    %s681 = sadd.s32 %s113, 2
    %v682 = vstv %s681
    %vm683 = vcmp.lt.s32.totalorder %v682, %v114
    %v684 = vsel %vm683, 1, 0
    %685 = vset.pattern.permute.xlu0 0
    %686 = vperm.xlu0 %685, %v684
    %v687 = vpop.permute.xlu0 %686
    %vm688 = vcmp.eq.s32.totalorder %v687, 1
    %v689 = vsel %vm688, %v680, %v504
    %v690 = vsel %vm688, %v674, %v505
    %s691 = scalar_lea.vmem [#allocation6], 6
    %v692 = vld [vmem:[%s691] sm:$0x3]
    %694 = vrot.lane.b32.xlu0 %v689, 32
    %v695 = vpop.permute.xlu0 %694
    %v696 = vsel %vm127, %v695, 0
    %698 = vmatprep.subr.mxu0 0.0
    %699 = vmatpush1.msra.mxu0 %v119
    %700 = vmatprep.subr.mxu0 0.0
    %701 = vmatpush1.msra.mxu0 %v120
    %702 = vmatprep.subr.mxu0 0.0
    %703 = vmatpush1.msra.mxu0 %v121
    %704 = vmatprep.subr.mxu0 0.0
    %705 = vmatpush1.msra.mxu0 %v122
    %706 = vmatprep.subr.mxu0 0.0
    %707 = vmatpush1.msra.mxu0 0.0
    %708 = vmatprep.subr.mxu0 0.0
    %709 = vmatpush1.msra.mxu0 0.0
    %710 = vmatprep.subr.mxu0 0.0
    %711 = vmatpush1.msra.mxu0 0.0
    %712 = vmatprep.subr.mxu0 0.0
    %713 = vmatpush1.msra.mxu0 0.0
    %714 = vmatprep.subr.mxu0 0.0
    %715 = vmatpush1.msra.mxu0 0.0
    %716 = vmatprep.subr.mxu0 0.0
    %717 = vmatpush1.msra.mxu0 0.0
    %718 = vmatprep.subr.mxu0 0.0
    %719 = vmatpush1.msra.mxu0 0.0
    %720 = vmatprep.subr.mxu0 0.0
    %721 = vmatpush1.msra.mxu0 0.0
    %722 = vmatprep.subr.mxu0 0.0
    %723 = vmatpush1.msra.mxu0 0.0
    %724 = vmatprep.subr.mxu0 0.0
    %725 = vmatpush1.msra.mxu0 0.0
    %726 = vmatprep.subr.mxu0 0.0
    %727 = vmatpush1.msra.mxu0 0.0
    %728 = vmatprep.subr.mxu0 0.0
    %729 = vmatpush1.msra.mxu0 0.0
    %730 = vmatprep.subr.mxu0 0.0
    %731 = vmatpush1.msra.mxu0 0.0
    %732 = vmatprep.subr.mxu0 0.0
    %733 = vmatpush1.msra.mxu0 0.0
    %734 = vmatprep.subr.mxu0 0.0
    %735 = vmatpush1.msra.mxu0 0.0
    %736 = vmatprep.subr.mxu0 0.0
    %737 = vmatpush1.msra.mxu0 0.0
    %738 = vmatprep.subr.mxu0 0.0
    %739 = vmatpush1.msra.mxu0 0.0
    %740 = vmatprep.subr.mxu0 0.0
    %741 = vmatpush1.msra.mxu0 0.0
    %742 = vmatprep.subr.mxu0 0.0
    %743 = vmatpush1.msra.mxu0 0.0
    %744 = vmatprep.subr.mxu0 0.0
    %745 = vmatpush1.msra.mxu0 0.0
    %746 = vmatprep.subr.mxu0 0.0
    %747 = vmatpush1.msra.mxu0 0.0
    %748 = vmatprep.subr.mxu0 0.0
    %749 = vmatpush1.msra.mxu0 0.0
    %750 = vmatprep.subr.mxu0 0.0
    %751 = vmatpush1.msra.mxu0 0.0
    %752 = vmatprep.subr.mxu0 0.0
    %753 = vmatpush1.msra.mxu0 0.0
    %754 = vmatprep.subr.mxu0 0.0
    %755 = vmatpush1.msra.mxu0 0.0
    %756 = vmatprep.subr.mxu0 0.0
    %757 = vmatpush1.msra.mxu0 0.0
    %758 = vmatprep.subr.mxu0 0.0
    %759 = vmatpush1.msra.mxu0 0.0
    %760 = vmatprep.subr.mxu0 0.0
    %761 = vmatpush1.msra.mxu0 0.0
    %762 = vmatprep.mubr.f32.mxu0 0.0
    %763 = vmatmul.mubr.f32.gmra.mrb[0].mxu0 %v696
    %v764 = vpop.f32.mrb[0].mxu0
    %v765 = vadd.f32 0.0, %v764
    %v766 = vpop.f32.mrb[0].mxu0
    %767 = vdwg.mxu0
    %v769 = vsel %vm127, %v692, 0
    %771 = vmatprep.subr.mxu0 0.0
    %772 = vmatpush1.msra.mxu0 %v115
    %773 = vmatprep.subr.mxu0 0.0
    %774 = vmatpush1.msra.mxu0 %v116
    %775 = vmatprep.subr.mxu0 0.0
    %776 = vmatpush1.msra.mxu0 %v117
    %777 = vmatprep.subr.mxu0 0.0
    %778 = vmatpush1.msra.mxu0 %v118
    %779 = vmatprep.subr.mxu0 0.0
    %780 = vmatpush1.msra.mxu0 0.0
    %781 = vmatprep.subr.mxu0 0.0
    %782 = vmatpush1.msra.mxu0 0.0
    %783 = vmatprep.subr.mxu0 0.0
    %784 = vmatpush1.msra.mxu0 0.0
    %785 = vmatprep.subr.mxu0 0.0
    %786 = vmatpush1.msra.mxu0 0.0
    %787 = vmatprep.subr.mxu0 0.0
    %788 = vmatpush1.msra.mxu0 0.0
    %789 = vmatprep.subr.mxu0 0.0
    %790 = vmatpush1.msra.mxu0 0.0
    %791 = vmatprep.subr.mxu0 0.0
    %792 = vmatpush1.msra.mxu0 0.0
    %793 = vmatprep.subr.mxu0 0.0
    %794 = vmatpush1.msra.mxu0 0.0
    %795 = vmatprep.subr.mxu0 0.0
    %796 = vmatpush1.msra.mxu0 0.0
    %797 = vmatprep.subr.mxu0 0.0
    %798 = vmatpush1.msra.mxu0 0.0
    %799 = vmatprep.subr.mxu0 0.0
    %800 = vmatpush1.msra.mxu0 0.0
    %801 = vmatprep.subr.mxu0 0.0
    %802 = vmatpush1.msra.mxu0 0.0
    %803 = vmatprep.subr.mxu0 0.0
    %804 = vmatpush1.msra.mxu0 0.0
    %805 = vmatprep.subr.mxu0 0.0
    %806 = vmatpush1.msra.mxu0 0.0
    %807 = vmatprep.subr.mxu0 0.0
    %808 = vmatpush1.msra.mxu0 0.0
    %809 = vmatprep.subr.mxu0 0.0
    %810 = vmatpush1.msra.mxu0 0.0
    %811 = vmatprep.subr.mxu0 0.0
    %812 = vmatpush1.msra.mxu0 0.0
    %813 = vmatprep.subr.mxu0 0.0
    %814 = vmatpush1.msra.mxu0 0.0
    %815 = vmatprep.subr.mxu0 0.0
    %816 = vmatpush1.msra.mxu0 0.0
    %817 = vmatprep.subr.mxu0 0.0
    %818 = vmatpush1.msra.mxu0 0.0
    %819 = vmatprep.subr.mxu0 0.0
    %820 = vmatpush1.msra.mxu0 0.0
    %821 = vmatprep.subr.mxu0 0.0
    %822 = vmatpush1.msra.mxu0 0.0
    %823 = vmatprep.subr.mxu0 0.0
    %824 = vmatpush1.msra.mxu0 0.0
    %825 = vmatprep.subr.mxu0 0.0
    %826 = vmatpush1.msra.mxu0 0.0
    %827 = vmatprep.subr.mxu0 0.0
    %828 = vmatpush1.msra.mxu0 0.0
    %829 = vmatprep.subr.mxu0 0.0
    %830 = vmatpush1.msra.mxu0 0.0
    %831 = vmatprep.subr.mxu0 0.0
    %832 = vmatpush1.msra.mxu0 0.0
    %833 = vmatprep.subr.mxu0 0.0
    %834 = vmatpush1.msra.mxu0 0.0
    %835 = vmatprep.mubr.f32.mxu0 0.0
    %836 = vmatmul.mubr.f32.gmra.mrb[0].mxu0 %v769
    %v837 = vpop.f32.mrb[0].mxu0
    %v838 = vadd.f32 %v765, %v837
    %v839 = vpop.f32.mrb[0].mxu0
    %840 = vdwg.mxu0
    %v841 = vadd.f32 %v838, %v278
    %v842 = vsub.f32 0.0, %v841
    %v843 = vmul.f32 %v842, 1.442695
    %v844 = vpow.pop %v843
    %v845 = vadd.f32 %v844, 1.0
    %v846 = vrcp.pop %v845
    %v847 = vmul.f32 1.0, %v846
    %v848 = vtanh.pop %v841
    %v849 = vmul.f32 %v847, %v690
    %851 = vrot.lane.b32.xlu0 %v848, 64
    %v852 = vpop.permute.xlu0 %851
    %v854 = vmul.f32 %v847, %v852
    %856 = vrot.lane.b32.xlu0 %v854, 32
    %v857 = vpop.permute.xlu0 %856
    %v859 = vadd.f32 %v849, %v857
    %v860 = vtanh.pop %v859
    %862 = vrot.lane.b32.xlu0 %v860, 64
    %v863 = vpop.permute.xlu0 %862
    %v865 = vmul.f32 %v847, %v863
    %s866 = sadd.s32 %s113, 3
    %v867 = vstv %s866
    %vm868 = vcmp.lt.s32.totalorder %v867, %v114
    %v869 = vsel %vm868, 1, 0
    %870 = vset.pattern.permute.xlu0 0
    %871 = vperm.xlu0 %870, %v869
    %v872 = vpop.permute.xlu0 %871
    %vm873 = vcmp.eq.s32.totalorder %v872, 1
    %v874 = vsel %vm873, %v865, %v689
    %v875 = vsel %vm873, %v859, %v690
    %s876 = scalar_lea.vmem [#allocation6], 8
    %v877 = vld [vmem:[%s876] sm:$0x3]
    %879 = vrot.lane.b32.xlu0 %v874, 32
    %v880 = vpop.permute.xlu0 %879
    %v881 = vsel %vm127, %v880, 0
    %883 = vmatprep.subr.mxu0 0.0
    %884 = vmatpush1.msra.mxu0 %v119
    %885 = vmatprep.subr.mxu0 0.0
    %886 = vmatpush1.msra.mxu0 %v120
    %887 = vmatprep.subr.mxu0 0.0
    %888 = vmatpush1.msra.mxu0 %v121
    %889 = vmatprep.subr.mxu0 0.0
    %890 = vmatpush1.msra.mxu0 %v122
    %891 = vmatprep.subr.mxu0 0.0
    %892 = vmatpush1.msra.mxu0 0.0
    %893 = vmatprep.subr.mxu0 0.0
    %894 = vmatpush1.msra.mxu0 0.0
    %895 = vmatprep.subr.mxu0 0.0
    %896 = vmatpush1.msra.mxu0 0.0
    %897 = vmatprep.subr.mxu0 0.0
    %898 = vmatpush1.msra.mxu0 0.0
    %899 = vmatprep.subr.mxu0 0.0
    %900 = vmatpush1.msra.mxu0 0.0
    %901 = vmatprep.subr.mxu0 0.0
    %902 = vmatpush1.msra.mxu0 0.0
    %903 = vmatprep.subr.mxu0 0.0
    %904 = vmatpush1.msra.mxu0 0.0
    %905 = vmatprep.subr.mxu0 0.0
    %906 = vmatpush1.msra.mxu0 0.0
    %907 = vmatprep.subr.mxu0 0.0
    %908 = vmatpush1.msra.mxu0 0.0
    %909 = vmatprep.subr.mxu0 0.0
    %910 = vmatpush1.msra.mxu0 0.0
    %911 = vmatprep.subr.mxu0 0.0
    %912 = vmatpush1.msra.mxu0 0.0
    %913 = vmatprep.subr.mxu0 0.0
    %914 = vmatpush1.msra.mxu0 0.0
    %915 = vmatprep.subr.mxu0 0.0
    %916 = vmatpush1.msra.mxu0 0.0
    %917 = vmatprep.subr.mxu0 0.0
    %918 = vmatpush1.msra.mxu0 0.0
    %919 = vmatprep.subr.mxu0 0.0
    %920 = vmatpush1.msra.mxu0 0.0
    %921 = vmatprep.subr.mxu0 0.0
    %922 = vmatpush1.msra.mxu0 0.0
    %923 = vmatprep.subr.mxu0 0.0
    %924 = vmatpush1.msra.mxu0 0.0
    %925 = vmatprep.subr.mxu0 0.0
    %926 = vmatpush1.msra.mxu0 0.0
    %927 = vmatprep.subr.mxu0 0.0
    %928 = vmatpush1.msra.mxu0 0.0
    %929 = vmatprep.subr.mxu0 0.0
    %930 = vmatpush1.msra.mxu0 0.0
    %931 = vmatprep.subr.mxu0 0.0
    %932 = vmatpush1.msra.mxu0 0.0
    %933 = vmatprep.subr.mxu0 0.0
    %934 = vmatpush1.msra.mxu0 0.0
    %935 = vmatprep.subr.mxu0 0.0
    %936 = vmatpush1.msra.mxu0 0.0
    %937 = vmatprep.subr.mxu0 0.0
    %938 = vmatpush1.msra.mxu0 0.0
    %939 = vmatprep.subr.mxu0 0.0
    %940 = vmatpush1.msra.mxu0 0.0
    %941 = vmatprep.subr.mxu0 0.0
    %942 = vmatpush1.msra.mxu0 0.0
    %943 = vmatprep.subr.mxu0 0.0
    %944 = vmatpush1.msra.mxu0 0.0
    %945 = vmatprep.subr.mxu0 0.0
    %946 = vmatpush1.msra.mxu0 0.0
    %947 = vmatprep.mubr.f32.mxu0 0.0
    %948 = vmatmul.mubr.f32.gmra.mrb[0].mxu0 %v881
    %v949 = vpop.f32.mrb[0].mxu0
    %v950 = vadd.f32 0.0, %v949
    %v951 = vpop.f32.mrb[0].mxu0
    %952 = vdwg.mxu0
    %v954 = vsel %vm127, %v877, 0
    %956 = vmatprep.subr.mxu0 0.0
    %957 = vmatpush1.msra.mxu0 %v115
    %958 = vmatprep.subr.mxu0 0.0
    %959 = vmatpush1.msra.mxu0 %v116
    %960 = vmatprep.subr.mxu0 0.0
    %961 = vmatpush1.msra.mxu0 %v117
    %962 = vmatprep.subr.mxu0 0.0
    %963 = vmatpush1.msra.mxu0 %v118
    %964 = vmatprep.subr.mxu0 0.0
    %965 = vmatpush1.msra.mxu0 0.0
    %966 = vmatprep.subr.mxu0 0.0
    %967 = vmatpush1.msra.mxu0 0.0
    %968 = vmatprep.subr.mxu0 0.0
    %969 = vmatpush1.msra.mxu0 0.0
    %970 = vmatprep.subr.mxu0 0.0
    %971 = vmatpush1.msra.mxu0 0.0
    %972 = vmatprep.subr.mxu0 0.0
    %973 = vmatpush1.msra.mxu0 0.0
    %974 = vmatprep.subr.mxu0 0.0
    %975 = vmatpush1.msra.mxu0 0.0
    %976 = vmatprep.subr.mxu0 0.0
    %977 = vmatpush1.msra.mxu0 0.0
    %978 = vmatprep.subr.mxu0 0.0
    %979 = vmatpush1.msra.mxu0 0.0
    %980 = vmatprep.subr.mxu0 0.0
    %981 = vmatpush1.msra.mxu0 0.0
    %982 = vmatprep.subr.mxu0 0.0
    %983 = vmatpush1.msra.mxu0 0.0
    %984 = vmatprep.subr.mxu0 0.0
    %985 = vmatpush1.msra.mxu0 0.0
    %986 = vmatprep.subr.mxu0 0.0
    %987 = vmatpush1.msra.mxu0 0.0
    %988 = vmatprep.subr.mxu0 0.0
    %989 = vmatpush1.msra.mxu0 0.0
    %990 = vmatprep.subr.mxu0 0.0
    %991 = vmatpush1.msra.mxu0 0.0
    %992 = vmatprep.subr.mxu0 0.0
    %993 = vmatpush1.msra.mxu0 0.0
    %994 = vmatprep.subr.mxu0 0.0
    %995 = vmatpush1.msra.mxu0 0.0
    %996 = vmatprep.subr.mxu0 0.0
    %997 = vmatpush1.msra.mxu0 0.0
    %998 = vmatprep.subr.mxu0 0.0
    %999 = vmatpush1.msra.mxu0 0.0
    %1000 = vmatprep.subr.mxu0 0.0
    %1001 = vmatpush1.msra.mxu0 0.0
    %1002 = vmatprep.subr.mxu0 0.0
    %1003 = vmatpush1.msra.mxu0 0.0
    %1004 = vmatprep.subr.mxu0 0.0
    %1005 = vmatpush1.msra.mxu0 0.0
    %1006 = vmatprep.subr.mxu0 0.0
    %1007 = vmatpush1.msra.mxu0 0.0
    %1008 = vmatprep.subr.mxu0 0.0
    %1009 = vmatpush1.msra.mxu0 0.0
    %1010 = vmatprep.subr.mxu0 0.0
    %1011 = vmatpush1.msra.mxu0 0.0
    %1012 = vmatprep.subr.mxu0 0.0
    %1013 = vmatpush1.msra.mxu0 0.0
    %1014 = vmatprep.subr.mxu0 0.0
    %1015 = vmatpush1.msra.mxu0 0.0
    %1016 = vmatprep.subr.mxu0 0.0
    %1017 = vmatpush1.msra.mxu0 0.0
    %1018 = vmatprep.subr.mxu0 0.0
    %1019 = vmatpush1.msra.mxu0 0.0
    %1020 = vmatprep.mubr.f32.mxu0 0.0
    %1021 = vmatmul.mubr.f32.gmra.mrb[0].mxu0 %v954
    %v1022 = vpop.f32.mrb[0].mxu0
    %v1023 = vadd.f32 %v950, %v1022
    %v1024 = vpop.f32.mrb[0].mxu0
    %1025 = vdwg.mxu0
    %v1026 = vadd.f32 %v1023, %v278
    %v1027 = vsub.f32 0.0, %v1026
    %v1028 = vmul.f32 %v1027, 1.442695
    %v1029 = vpow.pop %v1028
    %v1030 = vadd.f32 %v1029, 1.0
    %v1031 = vrcp.pop %v1030
    %v1032 = vmul.f32 1.0, %v1031
    %v1033 = vtanh.pop %v1026
    %v1034 = vmul.f32 %v1032, %v875
    %1036 = vrot.lane.b32.xlu0 %v1033, 64
    %v1037 = vpop.permute.xlu0 %1036
    %v1039 = vmul.f32 %v1032, %v1037
    %1041 = vrot.lane.b32.xlu0 %v1039, 32
    %v1042 = vpop.permute.xlu0 %1041
    %v1044 = vadd.f32 %v1034, %v1042
    %v1045 = vtanh.pop %v1044
    %1047 = vrot.lane.b32.xlu0 %v1045, 64
    %v1048 = vpop.permute.xlu0 %1047
    %v1050 = vmul.f32 %v1032, %v1048
    %s1051 = sadd.s32 %s113, 4
    %v1052 = vstv %s1051
    %vm1053 = vcmp.lt.s32.totalorder %v1052, %v114
    %v1054 = vsel %vm1053, 1, 0
    %1055 = vset.pattern.permute.xlu0 0
    %1056 = vperm.xlu0 %1055, %v1054
    %v1057 = vpop.permute.xlu0 %1056
    %vm1058 = vcmp.eq.s32.totalorder %v1057, 1
    %v1059 = vsel %vm1058, %v1050, %v874
    %v1060 = vsel %vm1058, %v1044, %v875
    %s1061 = scalar_lea.vmem [#allocation6], 10
    %v1062 = vld [vmem:[%s1061] sm:$0x3]
    %1064 = vrot.lane.b32.xlu0 %v1059, 32
    %v1065 = vpop.permute.xlu0 %1064
    %v1066 = vsel %vm127, %v1065, 0
    %1068 = vmatprep.subr.mxu0 0.0
    %1069 = vmatpush1.msra.mxu0 %v119
    %1070 = vmatprep.subr.mxu0 0.0
    %1071 = vmatpush1.msra.mxu0 %v120
    %1072 = vmatprep.subr.mxu0 0.0
    %1073 = vmatpush1.msra.mxu0 %v121
    %1074 = vmatprep.subr.mxu0 0.0
    %1075 = vmatpush1.msra.mxu0 %v122
    %1076 = vmatprep.subr.mxu0 0.0
    %1077 = vmatpush1.msra.mxu0 0.0
    %1078 = vmatprep.subr.mxu0 0.0
    %1079 = vmatpush1.msra.mxu0 0.0
    %1080 = vmatprep.subr.mxu0 0.0
    %1081 = vmatpush1.msra.mxu0 0.0
    %1082 = vmatprep.subr.mxu0 0.0
    %1083 = vmatpush1.msra.mxu0 0.0
    %1084 = vmatprep.subr.mxu0 0.0
    %1085 = vmatpush1.msra.mxu0 0.0
    %1086 = vmatprep.subr.mxu0 0.0
    %1087 = vmatpush1.msra.mxu0 0.0
    %1088 = vmatprep.subr.mxu0 0.0
    %1089 = vmatpush1.msra.mxu0 0.0
    %1090 = vmatprep.subr.mxu0 0.0
    %1091 = vmatpush1.msra.mxu0 0.0
    %1092 = vmatprep.subr.mxu0 0.0
    %1093 = vmatpush1.msra.mxu0 0.0
    %1094 = vmatprep.subr.mxu0 0.0
    %1095 = vmatpush1.msra.mxu0 0.0
    %1096 = vmatprep.subr.mxu0 0.0
    %1097 = vmatpush1.msra.mxu0 0.0
    %1098 = vmatprep.subr.mxu0 0.0
    %1099 = vmatpush1.msra.mxu0 0.0
    %1100 = vmatprep.subr.mxu0 0.0
    %1101 = vmatpush1.msra.mxu0 0.0
    %1102 = vmatprep.subr.mxu0 0.0
    %1103 = vmatpush1.msra.mxu0 0.0
    %1104 = vmatprep.subr.mxu0 0.0
    %1105 = vmatpush1.msra.mxu0 0.0
    %1106 = vmatprep.subr.mxu0 0.0
    %1107 = vmatpush1.msra.mxu0 0.0
    %1108 = vmatprep.subr.mxu0 0.0
    %1109 = vmatpush1.msra.mxu0 0.0
    %1110 = vmatprep.subr.mxu0 0.0
    %1111 = vmatpush1.msra.mxu0 0.0
    %1112 = vmatprep.subr.mxu0 0.0
    %1113 = vmatpush1.msra.mxu0 0.0
    %1114 = vmatprep.subr.mxu0 0.0
    %1115 = vmatpush1.msra.mxu0 0.0
    %1116 = vmatprep.subr.mxu0 0.0
    %1117 = vmatpush1.msra.mxu0 0.0
    %1118 = vmatprep.subr.mxu0 0.0
    %1119 = vmatpush1.msra.mxu0 0.0
    %1120 = vmatprep.subr.mxu0 0.0
    %1121 = vmatpush1.msra.mxu0 0.0
    %1122 = vmatprep.subr.mxu0 0.0
    %1123 = vmatpush1.msra.mxu0 0.0
    %1124 = vmatprep.subr.mxu0 0.0
    %1125 = vmatpush1.msra.mxu0 0.0
    %1126 = vmatprep.subr.mxu0 0.0
    %1127 = vmatpush1.msra.mxu0 0.0
    %1128 = vmatprep.subr.mxu0 0.0
    %1129 = vmatpush1.msra.mxu0 0.0
    %1130 = vmatprep.subr.mxu0 0.0
    %1131 = vmatpush1.msra.mxu0 0.0
    %1132 = vmatprep.mubr.f32.mxu0 0.0
    %1133 = vmatmul.mubr.f32.gmra.mrb[0].mxu0 %v1066
    %v1134 = vpop.f32.mrb[0].mxu0
    %v1135 = vadd.f32 0.0, %v1134
    %v1136 = vpop.f32.mrb[0].mxu0
    %1137 = vdwg.mxu0
    %v1139 = vsel %vm127, %v1062, 0
    %1141 = vmatprep.subr.mxu0 0.0
    %1142 = vmatpush1.msra.mxu0 %v115
    %1143 = vmatprep.subr.mxu0 0.0
    %1144 = vmatpush1.msra.mxu0 %v116
    %1145 = vmatprep.subr.mxu0 0.0
    %1146 = vmatpush1.msra.mxu0 %v117
    %1147 = vmatprep.subr.mxu0 0.0
    %1148 = vmatpush1.msra.mxu0 %v118
    %1149 = vmatprep.subr.mxu0 0.0
    %1150 = vmatpush1.msra.mxu0 0.0
    %1151 = vmatprep.subr.mxu0 0.0
    %1152 = vmatpush1.msra.mxu0 0.0
    %1153 = vmatprep.subr.mxu0 0.0
    %1154 = vmatpush1.msra.mxu0 0.0
    %1155 = vmatprep.subr.mxu0 0.0
    %1156 = vmatpush1.msra.mxu0 0.0
    %1157 = vmatprep.subr.mxu0 0.0
    %1158 = vmatpush1.msra.mxu0 0.0
    %1159 = vmatprep.subr.mxu0 0.0
    %1160 = vmatpush1.msra.mxu0 0.0
    %1161 = vmatprep.subr.mxu0 0.0
    %1162 = vmatpush1.msra.mxu0 0.0
    %1163 = vmatprep.subr.mxu0 0.0
    %1164 = vmatpush1.msra.mxu0 0.0
    %1165 = vmatprep.subr.mxu0 0.0
    %1166 = vmatpush1.msra.mxu0 0.0
    %1167 = vmatprep.subr.mxu0 0.0
    %1168 = vmatpush1.msra.mxu0 0.0
    %1169 = vmatprep.subr.mxu0 0.0
    %1170 = vmatpush1.msra.mxu0 0.0
    %1171 = vmatprep.subr.mxu0 0.0
    %1172 = vmatpush1.msra.mxu0 0.0
    %1173 = vmatprep.subr.mxu0 0.0
    %1174 = vmatpush1.msra.mxu0 0.0
    %1175 = vmatprep.subr.mxu0 0.0
    %1176 = vmatpush1.msra.mxu0 0.0
    %1177 = vmatprep.subr.mxu0 0.0
    %1178 = vmatpush1.msra.mxu0 0.0
    %1179 = vmatprep.subr.mxu0 0.0
    %1180 = vmatpush1.msra.mxu0 0.0
    %1181 = vmatprep.subr.mxu0 0.0
    %1182 = vmatpush1.msra.mxu0 0.0
    %1183 = vmatprep.subr.mxu0 0.0
    %1184 = vmatpush1.msra.mxu0 0.0
    %1185 = vmatprep.subr.mxu0 0.0
    %1186 = vmatpush1.msra.mxu0 0.0
    %1187 = vmatprep.subr.mxu0 0.0
    %1188 = vmatpush1.msra.mxu0 0.0
    %1189 = vmatprep.subr.mxu0 0.0
    %1190 = vmatpush1.msra.mxu0 0.0
    %1191 = vmatprep.subr.mxu0 0.0
    %1192 = vmatpush1.msra.mxu0 0.0
    %1193 = vmatprep.subr.mxu0 0.0
    %1194 = vmatpush1.msra.mxu0 0.0
    %1195 = vmatprep.subr.mxu0 0.0
    %1196 = vmatpush1.msra.mxu0 0.0
    %1197 = vmatprep.subr.mxu0 0.0
    %1198 = vmatpush1.msra.mxu0 0.0
    %1199 = vmatprep.subr.mxu0 0.0
    %1200 = vmatpush1.msra.mxu0 0.0
    %1201 = vmatprep.subr.mxu0 0.0
    %1202 = vmatpush1.msra.mxu0 0.0
    %1203 = vmatprep.subr.mxu0 0.0
    %1204 = vmatpush1.msra.mxu0 0.0
    %1205 = vmatprep.mubr.f32.mxu0 0.0
    %1206 = vmatmul.mubr.f32.gmra.mrb[0].mxu0 %v1139
    %v1207 = vpop.f32.mrb[0].mxu0
    %v1208 = vadd.f32 %v1135, %v1207
    %v1209 = vpop.f32.mrb[0].mxu0
    %1210 = vdwg.mxu0
    %v1211 = vadd.f32 %v1208, %v278
    %v1212 = vsub.f32 0.0, %v1211
    %v1213 = vmul.f32 %v1212, 1.442695
    %v1214 = vpow.pop %v1213
    %v1215 = vadd.f32 %v1214, 1.0
    %v1216 = vrcp.pop %v1215
    %v1217 = vmul.f32 1.0, %v1216
    %v1218 = vtanh.pop %v1211
    %v1219 = vmul.f32 %v1217, %v1060
    %1221 = vrot.lane.b32.xlu0 %v1218, 64
    %v1222 = vpop.permute.xlu0 %1221
    %v1224 = vmul.f32 %v1217, %v1222
    %1226 = vrot.lane.b32.xlu0 %v1224, 32
    %v1227 = vpop.permute.xlu0 %1226
    %v1229 = vadd.f32 %v1219, %v1227
    %v1230 = vtanh.pop %v1229
    %1232 = vrot.lane.b32.xlu0 %v1230, 64
    %v1233 = vpop.permute.xlu0 %1232
    %v1235 = vmul.f32 %v1217, %v1233
    %s1236 = sadd.s32 %s113, 5
    %v1237 = vstv %s1236
    %vm1238 = vcmp.lt.s32.totalorder %v1237, %v114
    %v1239 = vsel %vm1238, 1, 0
    %1240 = vset.pattern.permute.xlu0 0
    %1241 = vperm.xlu0 %1240, %v1239
    %v1242 = vpop.permute.xlu0 %1241
    %vm1243 = vcmp.eq.s32.totalorder %v1242, 1
    %v1244 = vsel %vm1243, %v1235, %v1059
    %v1245 = vsel %vm1243, %v1229, %v1060
    %s1246 = scalar_lea.vmem [#allocation6], 12
    %v1247 = vld [vmem:[%s1246] sm:$0x3]
    %1249 = vrot.lane.b32.xlu0 %v1244, 32
    %v1250 = vpop.permute.xlu0 %1249
    %v1251 = vsel %vm127, %v1250, 0
    %1253 = vmatprep.subr.mxu0 0.0
    %1254 = vmatpush1.msra.mxu0 %v119
    %1255 = vmatprep.subr.mxu0 0.0
    %1256 = vmatpush1.msra.mxu0 %v120
    %1257 = vmatprep.subr.mxu0 0.0
    %1258 = vmatpush1.msra.mxu0 %v121
    %1259 = vmatprep.subr.mxu0 0.0
    %1260 = vmatpush1.msra.mxu0 %v122
    %1261 = vmatprep.subr.mxu0 0.0
    %1262 = vmatpush1.msra.mxu0 0.0
    %1263 = vmatprep.subr.mxu0 0.0
    %1264 = vmatpush1.msra.mxu0 0.0
    %1265 = vmatprep.subr.mxu0 0.0
    %1266 = vmatpush1.msra.mxu0 0.0
    %1267 = vmatprep.subr.mxu0 0.0
    %1268 = vmatpush1.msra.mxu0 0.0
    %1269 = vmatprep.subr.mxu0 0.0
    %1270 = vmatpush1.msra.mxu0 0.0
    %1271 = vmatprep.subr.mxu0 0.0
    %1272 = vmatpush1.msra.mxu0 0.0
    %1273 = vmatprep.subr.mxu0 0.0
    %1274 = vmatpush1.msra.mxu0 0.0
    %1275 = vmatprep.subr.mxu0 0.0
    %1276 = vmatpush1.msra.mxu0 0.0
    %1277 = vmatprep.subr.mxu0 0.0
    %1278 = vmatpush1.msra.mxu0 0.0
    %1279 = vmatprep.subr.mxu0 0.0
    %1280 = vmatpush1.msra.mxu0 0.0
    %1281 = vmatprep.subr.mxu0 0.0
    %1282 = vmatpush1.msra.mxu0 0.0
    %1283 = vmatprep.subr.mxu0 0.0
    %1284 = vmatpush1.msra.mxu0 0.0
    %1285 = vmatprep.subr.mxu0 0.0
    %1286 = vmatpush1.msra.mxu0 0.0
    %1287 = vmatprep.subr.mxu0 0.0
    %1288 = vmatpush1.msra.mxu0 0.0
    %1289 = vmatprep.subr.mxu0 0.0
    %1290 = vmatpush1.msra.mxu0 0.0
    %1291 = vmatprep.subr.mxu0 0.0
    %1292 = vmatpush1.msra.mxu0 0.0
    %1293 = vmatprep.subr.mxu0 0.0
    %1294 = vmatpush1.msra.mxu0 0.0
    %1295 = vmatprep.subr.mxu0 0.0
    %1296 = vmatpush1.msra.mxu0 0.0
    %1297 = vmatprep.subr.mxu0 0.0
    %1298 = vmatpush1.msra.mxu0 0.0
    %1299 = vmatprep.subr.mxu0 0.0
    %1300 = vmatpush1.msra.mxu0 0.0
    %1301 = vmatprep.subr.mxu0 0.0
    %1302 = vmatpush1.msra.mxu0 0.0
    %1303 = vmatprep.subr.mxu0 0.0
    %1304 = vmatpush1.msra.mxu0 0.0
    %1305 = vmatprep.subr.mxu0 0.0
    %1306 = vmatpush1.msra.mxu0 0.0
    %1307 = vmatprep.subr.mxu0 0.0
    %1308 = vmatpush1.msra.mxu0 0.0
    %1309 = vmatprep.subr.mxu0 0.0
    %1310 = vmatpush1.msra.mxu0 0.0
    %1311 = vmatprep.subr.mxu0 0.0
    %1312 = vmatpush1.msra.mxu0 0.0
    %1313 = vmatprep.subr.mxu0 0.0
    %1314 = vmatpush1.msra.mxu0 0.0
    %1315 = vmatprep.subr.mxu0 0.0
    %1316 = vmatpush1.msra.mxu0 0.0
    %1317 = vmatprep.mubr.f32.mxu0 0.0
    %1318 = vmatmul.mubr.f32.gmra.mrb[0].mxu0 %v1251
    %v1319 = vpop.f32.mrb[0].mxu0
    %v1320 = vadd.f32 0.0, %v1319
    %v1321 = vpop.f32.mrb[0].mxu0
    %1322 = vdwg.mxu0
    %v1324 = vsel %vm127, %v1247, 0
    %1326 = vmatprep.subr.mxu0 0.0
    %1327 = vmatpush1.msra.mxu0 %v115
    %1328 = vmatprep.subr.mxu0 0.0
    %1329 = vmatpush1.msra.mxu0 %v116
    %1330 = vmatprep.subr.mxu0 0.0
    %1331 = vmatpush1.msra.mxu0 %v117
    %1332 = vmatprep.subr.mxu0 0.0
    %1333 = vmatpush1.msra.mxu0 %v118
    %1334 = vmatprep.subr.mxu0 0.0
    %1335 = vmatpush1.msra.mxu0 0.0
    %1336 = vmatprep.subr.mxu0 0.0
    %1337 = vmatpush1.msra.mxu0 0.0
    %1338 = vmatprep.subr.mxu0 0.0
    %1339 = vmatpush1.msra.mxu0 0.0
    %1340 = vmatprep.subr.mxu0 0.0
    %1341 = vmatpush1.msra.mxu0 0.0
    %1342 = vmatprep.subr.mxu0 0.0
    %1343 = vmatpush1.msra.mxu0 0.0
    %1344 = vmatprep.subr.mxu0 0.0
    %1345 = vmatpush1.msra.mxu0 0.0
    %1346 = vmatprep.subr.mxu0 0.0
    %1347 = vmatpush1.msra.mxu0 0.0
    %1348 = vmatprep.subr.mxu0 0.0
    %1349 = vmatpush1.msra.mxu0 0.0
    %1350 = vmatprep.subr.mxu0 0.0
    %1351 = vmatpush1.msra.mxu0 0.0
    %1352 = vmatprep.subr.mxu0 0.0
    %1353 = vmatpush1.msra.mxu0 0.0
    %1354 = vmatprep.subr.mxu0 0.0
    %1355 = vmatpush1.msra.mxu0 0.0
    %1356 = vmatprep.subr.mxu0 0.0
    %1357 = vmatpush1.msra.mxu0 0.0
    %1358 = vmatprep.subr.mxu0 0.0
    %1359 = vmatpush1.msra.mxu0 0.0
    %1360 = vmatprep.subr.mxu0 0.0
    %1361 = vmatpush1.msra.mxu0 0.0
    %1362 = vmatprep.subr.mxu0 0.0
    %1363 = vmatpush1.msra.mxu0 0.0
    %1364 = vmatprep.subr.mxu0 0.0
    %1365 = vmatpush1.msra.mxu0 0.0
    %1366 = vmatprep.subr.mxu0 0.0
    %1367 = vmatpush1.msra.mxu0 0.0
    %1368 = vmatprep.subr.mxu0 0.0
    %1369 = vmatpush1.msra.mxu0 0.0
    %1370 = vmatprep.subr.mxu0 0.0
    %1371 = vmatpush1.msra.mxu0 0.0
    %1372 = vmatprep.subr.mxu0 0.0
    %1373 = vmatpush1.msra.mxu0 0.0
    %1374 = vmatprep.subr.mxu0 0.0
    %1375 = vmatpush1.msra.mxu0 0.0
    %1376 = vmatprep.subr.mxu0 0.0
    %1377 = vmatpush1.msra.mxu0 0.0
    %1378 = vmatprep.subr.mxu0 0.0
    %1379 = vmatpush1.msra.mxu0 0.0
    %1380 = vmatprep.subr.mxu0 0.0
    %1381 = vmatpush1.msra.mxu0 0.0
    %1382 = vmatprep.subr.mxu0 0.0
    %1383 = vmatpush1.msra.mxu0 0.0
    %1384 = vmatprep.subr.mxu0 0.0
    %1385 = vmatpush1.msra.mxu0 0.0
    %1386 = vmatprep.subr.mxu0 0.0
    %1387 = vmatpush1.msra.mxu0 0.0
    %1388 = vmatprep.subr.mxu0 0.0
    %1389 = vmatpush1.msra.mxu0 0.0
    %1390 = vmatprep.mubr.f32.mxu0 0.0
    %1391 = vmatmul.mubr.f32.gmra.mrb[0].mxu0 %v1324
    %v1392 = vpop.f32.mrb[0].mxu0
    %v1393 = vadd.f32 %v1320, %v1392
    %v1394 = vpop.f32.mrb[0].mxu0
    %1395 = vdwg.mxu0
    %v1396 = vadd.f32 %v1393, %v278
    %v1397 = vsub.f32 0.0, %v1396
    %v1398 = vmul.f32 %v1397, 1.442695
    %v1399 = vpow.pop %v1398
    %v1400 = vadd.f32 %v1399, 1.0
    %v1401 = vrcp.pop %v1400
    %v1402 = vmul.f32 1.0, %v1401
    %v1403 = vtanh.pop %v1396
    %v1404 = vmul.f32 %v1402, %v1245
    %1406 = vrot.lane.b32.xlu0 %v1403, 64
    %v1407 = vpop.permute.xlu0 %1406
    %v1409 = vmul.f32 %v1402, %v1407
    %1411 = vrot.lane.b32.xlu0 %v1409, 32
    %v1412 = vpop.permute.xlu0 %1411
    %v1414 = vadd.f32 %v1404, %v1412
    %v1415 = vtanh.pop %v1414
    %1417 = vrot.lane.b32.xlu0 %v1415, 64
    %v1418 = vpop.permute.xlu0 %1417
    %v1420 = vmul.f32 %v1402, %v1418
    %s1421 = sadd.s32 %s113, 6
    %v1422 = vstv %s1421
    %vm1423 = vcmp.lt.s32.totalorder %v1422, %v114
    %v1424 = vsel %vm1423, 1, 0
    %1425 = vset.pattern.permute.xlu0 0
    %1426 = vperm.xlu0 %1425, %v1424
    %v1427 = vpop.permute.xlu0 %1426
    %vm1428 = vcmp.eq.s32.totalorder %v1427, 1
    %v1429 = vsel %vm1428, %v1420, %v1244
    %v1430 = vsel %vm1428, %v1414, %v1245
    %s1431 = scalar_lea.vmem [#allocation6], 14
    %v1432 = vld [vmem:[%s1431] sm:$0x3]
    %1434 = vrot.lane.b32.xlu0 %v1429, 32
    %v1435 = vpop.permute.xlu0 %1434
    %v1436 = vsel %vm127, %v1435, 0
    %1438 = vmatprep.subr.mxu0 0.0
    %1439 = vmatpush1.msra.mxu0 %v119
    %1440 = vmatprep.subr.mxu0 0.0
    %1441 = vmatpush1.msra.mxu0 %v120
    %1442 = vmatprep.subr.mxu0 0.0
    %1443 = vmatpush1.msra.mxu0 %v121
    %1444 = vmatprep.subr.mxu0 0.0
    %1445 = vmatpush1.msra.mxu0 %v122
    %1446 = vmatprep.subr.mxu0 0.0
    %1447 = vmatpush1.msra.mxu0 0.0
    %1448 = vmatprep.subr.mxu0 0.0
    %1449 = vmatpush1.msra.mxu0 0.0
    %1450 = vmatprep.subr.mxu0 0.0
    %1451 = vmatpush1.msra.mxu0 0.0
    %1452 = vmatprep.subr.mxu0 0.0
    %1453 = vmatpush1.msra.mxu0 0.0
    %1454 = vmatprep.subr.mxu0 0.0
    %1455 = vmatpush1.msra.mxu0 0.0
    %1456 = vmatprep.subr.mxu0 0.0
    %1457 = vmatpush1.msra.mxu0 0.0
    %1458 = vmatprep.subr.mxu0 0.0
    %1459 = vmatpush1.msra.mxu0 0.0
    %1460 = vmatprep.subr.mxu0 0.0
    %1461 = vmatpush1.msra.mxu0 0.0
    %1462 = vmatprep.subr.mxu0 0.0
    %1463 = vmatpush1.msra.mxu0 0.0
    %1464 = vmatprep.subr.mxu0 0.0
    %1465 = vmatpush1.msra.mxu0 0.0
    %1466 = vmatprep.subr.mxu0 0.0
    %1467 = vmatpush1.msra.mxu0 0.0
    %1468 = vmatprep.subr.mxu0 0.0
    %1469 = vmatpush1.msra.mxu0 0.0
    %1470 = vmatprep.subr.mxu0 0.0
    %1471 = vmatpush1.msra.mxu0 0.0
    %1472 = vmatprep.subr.mxu0 0.0
    %1473 = vmatpush1.msra.mxu0 0.0
    %1474 = vmatprep.subr.mxu0 0.0
    %1475 = vmatpush1.msra.mxu0 0.0
    %1476 = vmatprep.subr.mxu0 0.0
    %1477 = vmatpush1.msra.mxu0 0.0
    %1478 = vmatprep.subr.mxu0 0.0
    %1479 = vmatpush1.msra.mxu0 0.0
    %1480 = vmatprep.subr.mxu0 0.0
    %1481 = vmatpush1.msra.mxu0 0.0
    %1482 = vmatprep.subr.mxu0 0.0
    %1483 = vmatpush1.msra.mxu0 0.0
    %1484 = vmatprep.subr.mxu0 0.0
    %1485 = vmatpush1.msra.mxu0 0.0
    %1486 = vmatprep.subr.mxu0 0.0
    %1487 = vmatpush1.msra.mxu0 0.0
    %1488 = vmatprep.subr.mxu0 0.0
    %1489 = vmatpush1.msra.mxu0 0.0
    %1490 = vmatprep.subr.mxu0 0.0
    %1491 = vmatpush1.msra.mxu0 0.0
    %1492 = vmatprep.subr.mxu0 0.0
    %1493 = vmatpush1.msra.mxu0 0.0
    %1494 = vmatprep.subr.mxu0 0.0
    %1495 = vmatpush1.msra.mxu0 0.0
    %1496 = vmatprep.subr.mxu0 0.0
    %1497 = vmatpush1.msra.mxu0 0.0
    %1498 = vmatprep.subr.mxu0 0.0
    %1499 = vmatpush1.msra.mxu0 0.0
    %1500 = vmatprep.subr.mxu0 0.0
    %1501 = vmatpush1.msra.mxu0 0.0
    %1502 = vmatprep.mubr.f32.mxu0 0.0
    %1503 = vmatmul.mubr.f32.gmra.mrb[0].mxu0 %v1436
    %v1504 = vpop.f32.mrb[0].mxu0
    %v1505 = vadd.f32 0.0, %v1504
    %v1506 = vpop.f32.mrb[0].mxu0
    %1507 = vdwg.mxu0
    %v1509 = vsel %vm127, %v1432, 0
    %1511 = vmatprep.subr.mxu0 0.0
    %1512 = vmatpush1.msra.mxu0 %v115
    %1513 = vmatprep.subr.mxu0 0.0
    %1514 = vmatpush1.msra.mxu0 %v116
    %1515 = vmatprep.subr.mxu0 0.0
    %1516 = vmatpush1.msra.mxu0 %v117
    %1517 = vmatprep.subr.mxu0 0.0
    %1518 = vmatpush1.msra.mxu0 %v118
    %1519 = vmatprep.subr.mxu0 0.0
    %1520 = vmatpush1.msra.mxu0 0.0
    %1521 = vmatprep.subr.mxu0 0.0
    %1522 = vmatpush1.msra.mxu0 0.0
    %1523 = vmatprep.subr.mxu0 0.0
    %1524 = vmatpush1.msra.mxu0 0.0
    %1525 = vmatprep.subr.mxu0 0.0
    %1526 = vmatpush1.msra.mxu0 0.0
    %1527 = vmatprep.subr.mxu0 0.0
    %1528 = vmatpush1.msra.mxu0 0.0
    %1529 = vmatprep.subr.mxu0 0.0
    %1530 = vmatpush1.msra.mxu0 0.0
    %1531 = vmatprep.subr.mxu0 0.0
    %1532 = vmatpush1.msra.mxu0 0.0
    %1533 = vmatprep.subr.mxu0 0.0
    %1534 = vmatpush1.msra.mxu0 0.0
    %1535 = vmatprep.subr.mxu0 0.0
    %1536 = vmatpush1.msra.mxu0 0.0
    %1537 = vmatprep.subr.mxu0 0.0
    %1538 = vmatpush1.msra.mxu0 0.0
    %1539 = vmatprep.subr.mxu0 0.0
    %1540 = vmatpush1.msra.mxu0 0.0
    %1541 = vmatprep.subr.mxu0 0.0
    %1542 = vmatpush1.msra.mxu0 0.0
    %1543 = vmatprep.subr.mxu0 0.0
    %1544 = vmatpush1.msra.mxu0 0.0
    %1545 = vmatprep.subr.mxu0 0.0
    %1546 = vmatpush1.msra.mxu0 0.0
    %1547 = vmatprep.subr.mxu0 0.0
    %1548 = vmatpush1.msra.mxu0 0.0
    %1549 = vmatprep.subr.mxu0 0.0
    %1550 = vmatpush1.msra.mxu0 0.0
    %1551 = vmatprep.subr.mxu0 0.0
    %1552 = vmatpush1.msra.mxu0 0.0
    %1553 = vmatprep.subr.mxu0 0.0
    %1554 = vmatpush1.msra.mxu0 0.0
    %1555 = vmatprep.subr.mxu0 0.0
    %1556 = vmatpush1.msra.mxu0 0.0
    %1557 = vmatprep.subr.mxu0 0.0
    %1558 = vmatpush1.msra.mxu0 0.0
    %1559 = vmatprep.subr.mxu0 0.0
    %1560 = vmatpush1.msra.mxu0 0.0
    %1561 = vmatprep.subr.mxu0 0.0
    %1562 = vmatpush1.msra.mxu0 0.0
    %1563 = vmatprep.subr.mxu0 0.0
    %1564 = vmatpush1.msra.mxu0 0.0
    %1565 = vmatprep.subr.mxu0 0.0
    %1566 = vmatpush1.msra.mxu0 0.0
    %1567 = vmatprep.subr.mxu0 0.0
    %1568 = vmatpush1.msra.mxu0 0.0
    %1569 = vmatprep.subr.mxu0 0.0
    %1570 = vmatpush1.msra.mxu0 0.0
    %1571 = vmatprep.subr.mxu0 0.0
    %1572 = vmatpush1.msra.mxu0 0.0
    %1573 = vmatprep.subr.mxu0 0.0
    %1574 = vmatpush1.msra.mxu0 0.0
    %1575 = vmatprep.mubr.f32.mxu0 0.0
    %1576 = vmatmul.mubr.f32.gmra.mrb[0].mxu0 %v1509
    %v1577 = vpop.f32.mrb[0].mxu0
    %v1578 = vadd.f32 %v1505, %v1577
    %v1579 = vpop.f32.mrb[0].mxu0
    %1580 = vdwg.mxu0
    %v1581 = vadd.f32 %v1578, %v278
    %v1582 = vsub.f32 0.0, %v1581
    %v1583 = vmul.f32 %v1582, 1.442695
    %v1584 = vpow.pop %v1583
    %v1585 = vadd.f32 %v1584, 1.0
    %v1586 = vrcp.pop %v1585
    %v1587 = vmul.f32 1.0, %v1586
    %v1588 = vtanh.pop %v1581
    %v1589 = vmul.f32 %v1587, %v1430
    %1591 = vrot.lane.b32.xlu0 %v1588, 64
    %v1592 = vpop.permute.xlu0 %1591
    %v1594 = vmul.f32 %v1587, %v1592
    %1596 = vrot.lane.b32.xlu0 %v1594, 32
    %v1597 = vpop.permute.xlu0 %1596
    %v1599 = vadd.f32 %v1589, %v1597
    %v1600 = vtanh.pop %v1599
    %1602 = vrot.lane.b32.xlu0 %v1600, 64
    %v1603 = vpop.permute.xlu0 %1602
    %v1605 = vmul.f32 %v1587, %v1603
    %s1606 = sadd.s32 %s113, 7
    %v1607 = vstv %s1606
    %vm1608 = vcmp.lt.s32.totalorder %v1607, %v114
    %v1609 = vsel %vm1608, 1, 0
    %1610 = vset.pattern.permute.xlu0 0
    %1611 = vperm.xlu0 %1610, %v1609
    %v1612 = vpop.permute.xlu0 %1611
    %vm1613 = vcmp.eq.s32.totalorder %v1612, 1
    %v1614 = vsel %vm1613, %v1605, %v1429
    %v1615 = vsel %vm1613, %v1599, %v1430
    %1617 = vrot.lane.b32.xlu0 %v1614, 32
    %v1618 = vpop.permute.xlu0 %1617
    %vm1620 = vcmask 254976
    %1621 = vst.msk [vmem:[#allocation2] sm:$0x3] %vm1620, %v1618
    %1623 = vrot.lane.b32.xlu0 %v1615, 96
    %v1624 = vpop.permute.xlu0 %1623
    %1626 = vst.msk [vmem:[#allocation3] sm:$0x3] %vm1620, %v1624
    // Predicated region
    $region62: #{tpu_custom_call.1} parent=1 // pred_check
      %p1627 = pneg %p106
    $region63: #{tpu_custom_call.1} parent=1 // pred_check_branch
      %1629 = sbr.rel (%p1627) target = $region65
    $region64: #{tpu_custom_call.1} parent=1 // pred_region
      %v1630 = vld [vmem:[#allocation14] sm:$0xff]
      %v1631 = vld [vmem:[#allocation14 + $0x8] sm:$0xff]
      %v1632 = vld [vmem:[#allocation14 + $0x10] sm:$0xff]
      %v1633 = vld [vmem:[#allocation14 + $0x18] sm:$0xff]
      %v1634 = vld [vmem:[%s8] sm:$0xff]
      %v1635 = vld [vmem:[%s8 + $0x8] sm:$0xff]
      %v1636 = vld [vmem:[%s8 + $0x10] sm:$0xff]
      %v1637 = vld [vmem:[%s8 + $0x18] sm:$0xff]
      %v1638 = vld [vmem:[%s9] sm:$0x1]
      %v1639 = vlaneseq
      %v1640 = vshrl.u32 %v1639, 7
      %v1641 = vld [vmem:[%s3] sm:$0x1]
      loop: start=0, step=1, limit=2
      $region66: #{tpu_custom_call.1} parent=64 // loop_pre_header
        _
      $region67: #{tpu_custom_call.1} parent=64 // loop_header
        %s1643 = sphi 0, %s1647
        %p1644 = scmp.ge.s32.totalorder %s1643, 2
        %v1648 = vphi %v1641, %v3204
        %v1649 = vphi 0.0, %v3201
      $region68: #{tpu_custom_call.1} parent=64 // loop_header_branch
        %1646 = sbr.rel (%p1644) target = $region72
      $region69: #{tpu_custom_call.1} parent=64 // loop_body
        %s1650 = sld [smem:[#allocation5 + %s1643]]
        %v1651 = vstv %s1643
        %vm1652 = vcmp.eq.s32.totalorder %v1640, %v1651
        %v1653 = vsel %vm1652, 1, 0
        %vm1654 = vcmp.eq.s32.totalorder %v1653, 1
        %v1655 = vsel %vm1654, %v1614, 0.0
        %vm1656 = vcmask 1042176
        %v1657 = vsel %vm1656, %v1655, 0.0
        %v1658 = vrot.slane %v1657, 4
        %v1659 = vadd.f32 %v1657, %v1658
        %v1660 = vrot.slane %v1659, 2
        %v1661 = vadd.f32 %v1659, %v1660
        %v1662 = vrot.slane %v1661, 1
        %v1663 = vadd.f32 %v1661, %v1662
        %v1664 = vsel %vm1654, %v1615, 0.0
        %vm1665 = vcmask 517376
        %v1666 = vsel %vm1665, %v1664, 0.0
        %v1667 = vrot.slane %v1666, 4
        %v1668 = vadd.f32 %v1666, %v1667
        %v1669 = vrot.slane %v1668, 2
        %v1670 = vadd.f32 %v1668, %v1669
        %v1671 = vrot.slane %v1670, 1
        %v1672 = vadd.f32 %v1670, %v1671
        %1674 = vrot.lane.b32.xlu0 %v1663, 32
        %v1675 = vpop.permute.xlu0 %1674
        %v1676 = vsel %vm127, %v1675, 0
        %1678 = vmatprep.subr.mxu0 0.0
        %1679 = vmatpush1.msra.mxu0 %v1634
        %1680 = vmatprep.subr.mxu0 0.0
        %1681 = vmatpush1.msra.mxu0 %v1635
        %1682 = vmatprep.subr.mxu0 0.0
        %1683 = vmatpush1.msra.mxu0 %v1636
        %1684 = vmatprep.subr.mxu0 0.0
        %1685 = vmatpush1.msra.mxu0 %v1637
        %1686 = vmatprep.subr.mxu0 0.0
        %1687 = vmatpush1.msra.mxu0 0.0
        %1688 = vmatprep.subr.mxu0 0.0
        %1689 = vmatpush1.msra.mxu0 0.0
        %1690 = vmatprep.subr.mxu0 0.0
        %1691 = vmatpush1.msra.mxu0 0.0
        %1692 = vmatprep.subr.mxu0 0.0
        %1693 = vmatpush1.msra.mxu0 0.0
        %1694 = vmatprep.subr.mxu0 0.0
        %1695 = vmatpush1.msra.mxu0 0.0
        %1696 = vmatprep.subr.mxu0 0.0
        %1697 = vmatpush1.msra.mxu0 0.0
        %1698 = vmatprep.subr.mxu0 0.0
        %1699 = vmatpush1.msra.mxu0 0.0
        %1700 = vmatprep.subr.mxu0 0.0
        %1701 = vmatpush1.msra.mxu0 0.0
        %1702 = vmatprep.subr.mxu0 0.0
        %1703 = vmatpush1.msra.mxu0 0.0
        %1704 = vmatprep.subr.mxu0 0.0
        %1705 = vmatpush1.msra.mxu0 0.0
        %1706 = vmatprep.subr.mxu0 0.0
        %1707 = vmatpush1.msra.mxu0 0.0
        %1708 = vmatprep.subr.mxu0 0.0
        %1709 = vmatpush1.msra.mxu0 0.0
        %1710 = vmatprep.subr.mxu0 0.0
        %1711 = vmatpush1.msra.mxu0 0.0
        %1712 = vmatprep.subr.mxu0 0.0
        %1713 = vmatpush1.msra.mxu0 0.0
        %1714 = vmatprep.subr.mxu0 0.0
        %1715 = vmatpush1.msra.mxu0 0.0
        %1716 = vmatprep.subr.mxu0 0.0
        %1717 = vmatpush1.msra.mxu0 0.0
        %1718 = vmatprep.subr.mxu0 0.0
        %1719 = vmatpush1.msra.mxu0 0.0
        %1720 = vmatprep.subr.mxu0 0.0
        %1721 = vmatpush1.msra.mxu0 0.0
        %1722 = vmatprep.subr.mxu0 0.0
        %1723 = vmatpush1.msra.mxu0 0.0
        %1724 = vmatprep.subr.mxu0 0.0
        %1725 = vmatpush1.msra.mxu0 0.0
        %1726 = vmatprep.subr.mxu0 0.0
        %1727 = vmatpush1.msra.mxu0 0.0
        %1728 = vmatprep.subr.mxu0 0.0
        %1729 = vmatpush1.msra.mxu0 0.0
        %1730 = vmatprep.subr.mxu0 0.0
        %1731 = vmatpush1.msra.mxu0 0.0
        %1732 = vmatprep.subr.mxu0 0.0
        %1733 = vmatpush1.msra.mxu0 0.0
        %1734 = vmatprep.subr.mxu0 0.0
        %1735 = vmatpush1.msra.mxu0 0.0
        %1736 = vmatprep.subr.mxu0 0.0
        %1737 = vmatpush1.msra.mxu0 0.0
        %1738 = vmatprep.subr.mxu0 0.0
        %1739 = vmatpush1.msra.mxu0 0.0
        %1740 = vmatprep.subr.mxu0 0.0
        %1741 = vmatpush1.msra.mxu0 0.0
        %1742 = vmatprep.mubr.f32.mxu0 0.0
        %1743 = vmatmul.mubr.f32.gmra.mrb[0].mxu0 %v1676
        %v1744 = vpop.f32.mrb[0].mxu0
        %v1745 = vadd.f32 0.0, %v1744
        %v1746 = vpop.f32.mrb[0].mxu0
        %1747 = vdwg.mxu0
        %v1749 = vsel %vm127, %v1648, 0
        %1751 = vmatprep.subr.mxu0 0.0
        %1752 = vmatpush1.msra.mxu0 %v1630
        %1753 = vmatprep.subr.mxu0 0.0
        %1754 = vmatpush1.msra.mxu0 %v1631
        %1755 = vmatprep.subr.mxu0 0.0
        %1756 = vmatpush1.msra.mxu0 %v1632
        %1757 = vmatprep.subr.mxu0 0.0
        %1758 = vmatpush1.msra.mxu0 %v1633
        %1759 = vmatprep.subr.mxu0 0.0
        %1760 = vmatpush1.msra.mxu0 0.0
        %1761 = vmatprep.subr.mxu0 0.0
        %1762 = vmatpush1.msra.mxu0 0.0
        %1763 = vmatprep.subr.mxu0 0.0
        %1764 = vmatpush1.msra.mxu0 0.0
        %1765 = vmatprep.subr.mxu0 0.0
        %1766 = vmatpush1.msra.mxu0 0.0
        %1767 = vmatprep.subr.mxu0 0.0
        %1768 = vmatpush1.msra.mxu0 0.0
        %1769 = vmatprep.subr.mxu0 0.0
        %1770 = vmatpush1.msra.mxu0 0.0
        %1771 = vmatprep.subr.mxu0 0.0
        %1772 = vmatpush1.msra.mxu0 0.0
        %1773 = vmatprep.subr.mxu0 0.0
        %1774 = vmatpush1.msra.mxu0 0.0
        %1775 = vmatprep.subr.mxu0 0.0
        %1776 = vmatpush1.msra.mxu0 0.0
        %1777 = vmatprep.subr.mxu0 0.0
        %1778 = vmatpush1.msra.mxu0 0.0
        %1779 = vmatprep.subr.mxu0 0.0
        %1780 = vmatpush1.msra.mxu0 0.0
        %1781 = vmatprep.subr.mxu0 0.0
        %1782 = vmatpush1.msra.mxu0 0.0
        %1783 = vmatprep.subr.mxu0 0.0
        %1784 = vmatpush1.msra.mxu0 0.0
        %1785 = vmatprep.subr.mxu0 0.0
        %1786 = vmatpush1.msra.mxu0 0.0
        %1787 = vmatprep.subr.mxu0 0.0
        %1788 = vmatpush1.msra.mxu0 0.0
        %1789 = vmatprep.subr.mxu0 0.0
        %1790 = vmatpush1.msra.mxu0 0.0
        %1791 = vmatprep.subr.mxu0 0.0
        %1792 = vmatpush1.msra.mxu0 0.0
        %1793 = vmatprep.subr.mxu0 0.0
        %1794 = vmatpush1.msra.mxu0 0.0
        %1795 = vmatprep.subr.mxu0 0.0
        %1796 = vmatpush1.msra.mxu0 0.0
        %1797 = vmatprep.subr.mxu0 0.0
        %1798 = vmatpush1.msra.mxu0 0.0
        %1799 = vmatprep.subr.mxu0 0.0
        %1800 = vmatpush1.msra.mxu0 0.0
        %1801 = vmatprep.subr.mxu0 0.0
        %1802 = vmatpush1.msra.mxu0 0.0
        %1803 = vmatprep.subr.mxu0 0.0
        %1804 = vmatpush1.msra.mxu0 0.0
        %1805 = vmatprep.subr.mxu0 0.0
        %1806 = vmatpush1.msra.mxu0 0.0
        %1807 = vmatprep.subr.mxu0 0.0
        %1808 = vmatpush1.msra.mxu0 0.0
        %1809 = vmatprep.subr.mxu0 0.0
        %1810 = vmatpush1.msra.mxu0 0.0
        %1811 = vmatprep.subr.mxu0 0.0
        %1812 = vmatpush1.msra.mxu0 0.0
        %1813 = vmatprep.subr.mxu0 0.0
        %1814 = vmatpush1.msra.mxu0 0.0
        %1815 = vmatprep.mubr.f32.mxu0 0.0
        %1816 = vmatmul.mubr.f32.gmra.mrb[0].mxu0 %v1749
        %v1817 = vpop.f32.mrb[0].mxu0
        %v1818 = vadd.f32 %v1745, %v1817
        %v1819 = vpop.f32.mrb[0].mxu0
        %1820 = vdwg.mxu0
        %v1821 = vadd.f32 %v1818, %v1638
        %v1822 = vsub.f32 0.0, %v1821
        %v1823 = vmul.f32 %v1822, 1.442695
        %v1824 = vpow.pop %v1823
        %v1825 = vadd.f32 %v1824, 1.0
        %v1826 = vrcp.pop %v1825
        %v1827 = vmul.f32 1.0, %v1826
        %v1828 = vtanh.pop %v1821
        %v1829 = vmul.f32 %v1827, %v1672
        %1831 = vrot.lane.b32.xlu0 %v1828, 64
        %v1832 = vpop.permute.xlu0 %1831
        %v1834 = vmul.f32 %v1827, %v1832
        %1836 = vrot.lane.b32.xlu0 %v1834, 32
        %v1837 = vpop.permute.xlu0 %1836
        %v1839 = vadd.f32 %v1829, %v1837
        %v1840 = vtanh.pop %v1839
        %1842 = vrot.lane.b32.xlu0 %v1840, 64
        %v1843 = vpop.permute.xlu0 %1842
        %v1845 = vmul.f32 %v1827, %v1843
        %p1846 = scmp.gt.s32.totalorder %s1650, 0
        %s1847 = ssub.s32 %s1650, 1
        %p1848 = scmp.eq.s32.totalorder %s1847, 0
        %p1849 = scmp.gt.s32.totalorder %s1847, 0
        %s1850 = scalar_select %p1846, 1, 0
        %v1851 = vstv %s1850
        %vm1852 = vcmp.eq.s32.totalorder %v1851, 1
        %v1853 = vsel %vm1852, %v1845, %v1663
        %v1854 = vsel %vm1852, %v1839, %v1672
        %s1855 = scalar_select %p1848, 1, 0
        %v1856 = vstv %s1855
        %vm1857 = vcmp.eq.s32.totalorder %v1856, 1
        %v1858 = vsel %vm1857, %v1845, 0.0
        %s1859 = scalar_select %p1849, 1, 0
        %v1860 = vstv %s1859
        %vm1861 = vcmp.eq.s32.totalorder %v1860, 1
        %1862 = vrot.lane.b32.xlu0 %v1648, 96
        %v1863 = vpop.permute.xlu0 %1862
        %v1865 = vsel %vm1861, %v1845, %v1863
        %1867 = vrot.lane.b32.xlu0 %v1853, 32
        %v1868 = vpop.permute.xlu0 %1867
        %v1869 = vsel %vm127, %v1868, 0
        %1871 = vmatprep.subr.mxu0 0.0
        %1872 = vmatpush1.msra.mxu0 %v1634
        %1873 = vmatprep.subr.mxu0 0.0
        %1874 = vmatpush1.msra.mxu0 %v1635
        %1875 = vmatprep.subr.mxu0 0.0
        %1876 = vmatpush1.msra.mxu0 %v1636
        %1877 = vmatprep.subr.mxu0 0.0
        %1878 = vmatpush1.msra.mxu0 %v1637
        %1879 = vmatprep.subr.mxu0 0.0
        %1880 = vmatpush1.msra.mxu0 0.0
        %1881 = vmatprep.subr.mxu0 0.0
        %1882 = vmatpush1.msra.mxu0 0.0
        %1883 = vmatprep.subr.mxu0 0.0
        %1884 = vmatpush1.msra.mxu0 0.0
        %1885 = vmatprep.subr.mxu0 0.0
        %1886 = vmatpush1.msra.mxu0 0.0
        %1887 = vmatprep.subr.mxu0 0.0
        %1888 = vmatpush1.msra.mxu0 0.0
        %1889 = vmatprep.subr.mxu0 0.0
        %1890 = vmatpush1.msra.mxu0 0.0
        %1891 = vmatprep.subr.mxu0 0.0
        %1892 = vmatpush1.msra.mxu0 0.0
        %1893 = vmatprep.subr.mxu0 0.0
        %1894 = vmatpush1.msra.mxu0 0.0
        %1895 = vmatprep.subr.mxu0 0.0
        %1896 = vmatpush1.msra.mxu0 0.0
        %1897 = vmatprep.subr.mxu0 0.0
        %1898 = vmatpush1.msra.mxu0 0.0
        %1899 = vmatprep.subr.mxu0 0.0
        %1900 = vmatpush1.msra.mxu0 0.0
        %1901 = vmatprep.subr.mxu0 0.0
        %1902 = vmatpush1.msra.mxu0 0.0
        %1903 = vmatprep.subr.mxu0 0.0
        %1904 = vmatpush1.msra.mxu0 0.0
        %1905 = vmatprep.subr.mxu0 0.0
        %1906 = vmatpush1.msra.mxu0 0.0
        %1907 = vmatprep.subr.mxu0 0.0
        %1908 = vmatpush1.msra.mxu0 0.0
        %1909 = vmatprep.subr.mxu0 0.0
        %1910 = vmatpush1.msra.mxu0 0.0
        %1911 = vmatprep.subr.mxu0 0.0
        %1912 = vmatpush1.msra.mxu0 0.0
        %1913 = vmatprep.subr.mxu0 0.0
        %1914 = vmatpush1.msra.mxu0 0.0
        %1915 = vmatprep.subr.mxu0 0.0
        %1916 = vmatpush1.msra.mxu0 0.0
        %1917 = vmatprep.subr.mxu0 0.0
        %1918 = vmatpush1.msra.mxu0 0.0
        %1919 = vmatprep.subr.mxu0 0.0
        %1920 = vmatpush1.msra.mxu0 0.0
        %1921 = vmatprep.subr.mxu0 0.0
        %1922 = vmatpush1.msra.mxu0 0.0
        %1923 = vmatprep.subr.mxu0 0.0
        %1924 = vmatpush1.msra.mxu0 0.0
        %1925 = vmatprep.subr.mxu0 0.0
        %1926 = vmatpush1.msra.mxu0 0.0
        %1927 = vmatprep.subr.mxu0 0.0
        %1928 = vmatpush1.msra.mxu0 0.0
        %1929 = vmatprep.subr.mxu0 0.0
        %1930 = vmatpush1.msra.mxu0 0.0
        %1931 = vmatprep.subr.mxu0 0.0
        %1932 = vmatpush1.msra.mxu0 0.0
        %1933 = vmatprep.subr.mxu0 0.0
        %1934 = vmatpush1.msra.mxu0 0.0
        %1935 = vmatprep.mubr.f32.mxu0 0.0
        %1936 = vmatmul.mubr.f32.gmra.mrb[0].mxu0 %v1869
        %v1937 = vpop.f32.mrb[0].mxu0
        %v1938 = vadd.f32 0.0, %v1937
        %v1939 = vpop.f32.mrb[0].mxu0
        %1940 = vdwg.mxu0
        %1942 = vrot.lane.b32.xlu0 %v1865, 32
        %v1943 = vpop.permute.xlu0 %1942
        %v1944 = vsel %vm127, %v1943, 0
        %1946 = vmatprep.subr.mxu0 0.0
        %1947 = vmatpush1.msra.mxu0 %v1630
        %1948 = vmatprep.subr.mxu0 0.0
        %1949 = vmatpush1.msra.mxu0 %v1631
        %1950 = vmatprep.subr.mxu0 0.0
        %1951 = vmatpush1.msra.mxu0 %v1632
        %1952 = vmatprep.subr.mxu0 0.0
        %1953 = vmatpush1.msra.mxu0 %v1633
        %1954 = vmatprep.subr.mxu0 0.0
        %1955 = vmatpush1.msra.mxu0 0.0
        %1956 = vmatprep.subr.mxu0 0.0
        %1957 = vmatpush1.msra.mxu0 0.0
        %1958 = vmatprep.subr.mxu0 0.0
        %1959 = vmatpush1.msra.mxu0 0.0
        %1960 = vmatprep.subr.mxu0 0.0
        %1961 = vmatpush1.msra.mxu0 0.0
        %1962 = vmatprep.subr.mxu0 0.0
        %1963 = vmatpush1.msra.mxu0 0.0
        %1964 = vmatprep.subr.mxu0 0.0
        %1965 = vmatpush1.msra.mxu0 0.0
        %1966 = vmatprep.subr.mxu0 0.0
        %1967 = vmatpush1.msra.mxu0 0.0
        %1968 = vmatprep.subr.mxu0 0.0
        %1969 = vmatpush1.msra.mxu0 0.0
        %1970 = vmatprep.subr.mxu0 0.0
        %1971 = vmatpush1.msra.mxu0 0.0
        %1972 = vmatprep.subr.mxu0 0.0
        %1973 = vmatpush1.msra.mxu0 0.0
        %1974 = vmatprep.subr.mxu0 0.0
        %1975 = vmatpush1.msra.mxu0 0.0
        %1976 = vmatprep.subr.mxu0 0.0
        %1977 = vmatpush1.msra.mxu0 0.0
        %1978 = vmatprep.subr.mxu0 0.0
        %1979 = vmatpush1.msra.mxu0 0.0
        %1980 = vmatprep.subr.mxu0 0.0
        %1981 = vmatpush1.msra.mxu0 0.0
        %1982 = vmatprep.subr.mxu0 0.0
        %1983 = vmatpush1.msra.mxu0 0.0
        %1984 = vmatprep.subr.mxu0 0.0
        %1985 = vmatpush1.msra.mxu0 0.0
        %1986 = vmatprep.subr.mxu0 0.0
        %1987 = vmatpush1.msra.mxu0 0.0
        %1988 = vmatprep.subr.mxu0 0.0
        %1989 = vmatpush1.msra.mxu0 0.0
        %1990 = vmatprep.subr.mxu0 0.0
        %1991 = vmatpush1.msra.mxu0 0.0
        %1992 = vmatprep.subr.mxu0 0.0
        %1993 = vmatpush1.msra.mxu0 0.0
        %1994 = vmatprep.subr.mxu0 0.0
        %1995 = vmatpush1.msra.mxu0 0.0
        %1996 = vmatprep.subr.mxu0 0.0
        %1997 = vmatpush1.msra.mxu0 0.0
        %1998 = vmatprep.subr.mxu0 0.0
        %1999 = vmatpush1.msra.mxu0 0.0
        %2000 = vmatprep.subr.mxu0 0.0
        %2001 = vmatpush1.msra.mxu0 0.0
        %2002 = vmatprep.subr.mxu0 0.0
        %2003 = vmatpush1.msra.mxu0 0.0
        %2004 = vmatprep.subr.mxu0 0.0
        %2005 = vmatpush1.msra.mxu0 0.0
        %2006 = vmatprep.subr.mxu0 0.0
        %2007 = vmatpush1.msra.mxu0 0.0
        %2008 = vmatprep.subr.mxu0 0.0
        %2009 = vmatpush1.msra.mxu0 0.0
        %2010 = vmatprep.mubr.f32.mxu0 0.0
        %2011 = vmatmul.mubr.f32.gmra.mrb[0].mxu0 %v1944
        %v2012 = vpop.f32.mrb[0].mxu0
        %v2013 = vadd.f32 %v1938, %v2012
        %v2014 = vpop.f32.mrb[0].mxu0
        %2015 = vdwg.mxu0
        %v2016 = vadd.f32 %v2013, %v1638
        %v2017 = vsub.f32 0.0, %v2016
        %v2018 = vmul.f32 %v2017, 1.442695
        %v2019 = vpow.pop %v2018
        %v2020 = vadd.f32 %v2019, 1.0
        %v2021 = vrcp.pop %v2020
        %v2022 = vmul.f32 1.0, %v2021
        %v2023 = vtanh.pop %v2016
        %v2024 = vmul.f32 %v2022, %v1854
        %2026 = vrot.lane.b32.xlu0 %v2023, 64
        %v2027 = vpop.permute.xlu0 %2026
        %v2029 = vmul.f32 %v2022, %v2027
        %2031 = vrot.lane.b32.xlu0 %v2029, 32
        %v2032 = vpop.permute.xlu0 %2031
        %v2034 = vadd.f32 %v2024, %v2032
        %v2035 = vtanh.pop %v2034
        %2037 = vrot.lane.b32.xlu0 %v2035, 64
        %v2038 = vpop.permute.xlu0 %2037
        %v2040 = vmul.f32 %v2022, %v2038
        %p2041 = scmp.gt.s32.totalorder %s1650, 1
        %p2042 = scmp.eq.s32.totalorder %s1847, 1
        %p2043 = scmp.gt.s32.totalorder %s1847, 1
        %s2044 = scalar_select %p2041, 1, 0
        %v2045 = vstv %s2044
        %vm2046 = vcmp.eq.s32.totalorder %v2045, 1
        %v2047 = vsel %vm2046, %v2040, %v1853
        %v2048 = vsel %vm2046, %v2034, %v1854
        %s2049 = scalar_select %p2042, 1, 0
        %v2050 = vstv %s2049
        %vm2051 = vcmp.eq.s32.totalorder %v2050, 1
        %v2052 = vsel %vm2051, %v2040, %v1858
        %s2053 = scalar_select %p2043, 1, 0
        %v2054 = vstv %s2053
        %vm2055 = vcmp.eq.s32.totalorder %v2054, 1
        %v2056 = vsel %vm2055, %v2040, %v1865
        %2058 = vrot.lane.b32.xlu0 %v2047, 32
        %v2059 = vpop.permute.xlu0 %2058
        %v2060 = vsel %vm127, %v2059, 0
        %2062 = vmatprep.subr.mxu0 0.0
        %2063 = vmatpush1.msra.mxu0 %v1634
        %2064 = vmatprep.subr.mxu0 0.0
        %2065 = vmatpush1.msra.mxu0 %v1635
        %2066 = vmatprep.subr.mxu0 0.0
        %2067 = vmatpush1.msra.mxu0 %v1636
        %2068 = vmatprep.subr.mxu0 0.0
        %2069 = vmatpush1.msra.mxu0 %v1637
        %2070 = vmatprep.subr.mxu0 0.0
        %2071 = vmatpush1.msra.mxu0 0.0
        %2072 = vmatprep.subr.mxu0 0.0
        %2073 = vmatpush1.msra.mxu0 0.0
        %2074 = vmatprep.subr.mxu0 0.0
        %2075 = vmatpush1.msra.mxu0 0.0
        %2076 = vmatprep.subr.mxu0 0.0
        %2077 = vmatpush1.msra.mxu0 0.0
        %2078 = vmatprep.subr.mxu0 0.0
        %2079 = vmatpush1.msra.mxu0 0.0
        %2080 = vmatprep.subr.mxu0 0.0
        %2081 = vmatpush1.msra.mxu0 0.0
        %2082 = vmatprep.subr.mxu0 0.0
        %2083 = vmatpush1.msra.mxu0 0.0
        %2084 = vmatprep.subr.mxu0 0.0
        %2085 = vmatpush1.msra.mxu0 0.0
        %2086 = vmatprep.subr.mxu0 0.0
        %2087 = vmatpush1.msra.mxu0 0.0
        %2088 = vmatprep.subr.mxu0 0.0
        %2089 = vmatpush1.msra.mxu0 0.0
        %2090 = vmatprep.subr.mxu0 0.0
        %2091 = vmatpush1.msra.mxu0 0.0
        %2092 = vmatprep.subr.mxu0 0.0
        %2093 = vmatpush1.msra.mxu0 0.0
        %2094 = vmatprep.subr.mxu0 0.0
        %2095 = vmatpush1.msra.mxu0 0.0
        %2096 = vmatprep.subr.mxu0 0.0
        %2097 = vmatpush1.msra.mxu0 0.0
        %2098 = vmatprep.subr.mxu0 0.0
        %2099 = vmatpush1.msra.mxu0 0.0
        %2100 = vmatprep.subr.mxu0 0.0
        %2101 = vmatpush1.msra.mxu0 0.0
        %2102 = vmatprep.subr.mxu0 0.0
        %2103 = vmatpush1.msra.mxu0 0.0
        %2104 = vmatprep.subr.mxu0 0.0
        %2105 = vmatpush1.msra.mxu0 0.0
        %2106 = vmatprep.subr.mxu0 0.0
        %2107 = vmatpush1.msra.mxu0 0.0
        %2108 = vmatprep.subr.mxu0 0.0
        %2109 = vmatpush1.msra.mxu0 0.0
        %2110 = vmatprep.subr.mxu0 0.0
        %2111 = vmatpush1.msra.mxu0 0.0
        %2112 = vmatprep.subr.mxu0 0.0
        %2113 = vmatpush1.msra.mxu0 0.0
        %2114 = vmatprep.subr.mxu0 0.0
        %2115 = vmatpush1.msra.mxu0 0.0
        %2116 = vmatprep.subr.mxu0 0.0
        %2117 = vmatpush1.msra.mxu0 0.0
        %2118 = vmatprep.subr.mxu0 0.0
        %2119 = vmatpush1.msra.mxu0 0.0
        %2120 = vmatprep.subr.mxu0 0.0
        %2121 = vmatpush1.msra.mxu0 0.0
        %2122 = vmatprep.subr.mxu0 0.0
        %2123 = vmatpush1.msra.mxu0 0.0
        %2124 = vmatprep.subr.mxu0 0.0
        %2125 = vmatpush1.msra.mxu0 0.0
        %2126 = vmatprep.mubr.f32.mxu0 0.0
        %2127 = vmatmul.mubr.f32.gmra.mrb[0].mxu0 %v2060
        %v2128 = vpop.f32.mrb[0].mxu0
        %v2129 = vadd.f32 0.0, %v2128
        %v2130 = vpop.f32.mrb[0].mxu0
        %2131 = vdwg.mxu0
        %2133 = vrot.lane.b32.xlu0 %v2056, 32
        %v2134 = vpop.permute.xlu0 %2133
        %v2135 = vsel %vm127, %v2134, 0
        %2137 = vmatprep.subr.mxu0 0.0
        %2138 = vmatpush1.msra.mxu0 %v1630
        %2139 = vmatprep.subr.mxu0 0.0
        %2140 = vmatpush1.msra.mxu0 %v1631
        %2141 = vmatprep.subr.mxu0 0.0
        %2142 = vmatpush1.msra.mxu0 %v1632
        %2143 = vmatprep.subr.mxu0 0.0
        %2144 = vmatpush1.msra.mxu0 %v1633
        %2145 = vmatprep.subr.mxu0 0.0
        %2146 = vmatpush1.msra.mxu0 0.0
        %2147 = vmatprep.subr.mxu0 0.0
        %2148 = vmatpush1.msra.mxu0 0.0
        %2149 = vmatprep.subr.mxu0 0.0
        %2150 = vmatpush1.msra.mxu0 0.0
        %2151 = vmatprep.subr.mxu0 0.0
        %2152 = vmatpush1.msra.mxu0 0.0
        %2153 = vmatprep.subr.mxu0 0.0
        %2154 = vmatpush1.msra.mxu0 0.0
        %2155 = vmatprep.subr.mxu0 0.0
        %2156 = vmatpush1.msra.mxu0 0.0
        %2157 = vmatprep.subr.mxu0 0.0
        %2158 = vmatpush1.msra.mxu0 0.0
        %2159 = vmatprep.subr.mxu0 0.0
        %2160 = vmatpush1.msra.mxu0 0.0
        %2161 = vmatprep.subr.mxu0 0.0
        %2162 = vmatpush1.msra.mxu0 0.0
        %2163 = vmatprep.subr.mxu0 0.0
        %2164 = vmatpush1.msra.mxu0 0.0
        %2165 = vmatprep.subr.mxu0 0.0
        %2166 = vmatpush1.msra.mxu0 0.0
        %2167 = vmatprep.subr.mxu0 0.0
        %2168 = vmatpush1.msra.mxu0 0.0
        %2169 = vmatprep.subr.mxu0 0.0
        %2170 = vmatpush1.msra.mxu0 0.0
        %2171 = vmatprep.subr.mxu0 0.0
        %2172 = vmatpush1.msra.mxu0 0.0
        %2173 = vmatprep.subr.mxu0 0.0
        %2174 = vmatpush1.msra.mxu0 0.0
        %2175 = vmatprep.subr.mxu0 0.0
        %2176 = vmatpush1.msra.mxu0 0.0
        %2177 = vmatprep.subr.mxu0 0.0
        %2178 = vmatpush1.msra.mxu0 0.0
        %2179 = vmatprep.subr.mxu0 0.0
        %2180 = vmatpush1.msra.mxu0 0.0
        %2181 = vmatprep.subr.mxu0 0.0
        %2182 = vmatpush1.msra.mxu0 0.0
        %2183 = vmatprep.subr.mxu0 0.0
        %2184 = vmatpush1.msra.mxu0 0.0
        %2185 = vmatprep.subr.mxu0 0.0
        %2186 = vmatpush1.msra.mxu0 0.0
        %2187 = vmatprep.subr.mxu0 0.0
        %2188 = vmatpush1.msra.mxu0 0.0
        %2189 = vmatprep.subr.mxu0 0.0
        %2190 = vmatpush1.msra.mxu0 0.0
        %2191 = vmatprep.subr.mxu0 0.0
        %2192 = vmatpush1.msra.mxu0 0.0
        %2193 = vmatprep.subr.mxu0 0.0
        %2194 = vmatpush1.msra.mxu0 0.0
        %2195 = vmatprep.subr.mxu0 0.0
        %2196 = vmatpush1.msra.mxu0 0.0
        %2197 = vmatprep.subr.mxu0 0.0
        %2198 = vmatpush1.msra.mxu0 0.0
        %2199 = vmatprep.subr.mxu0 0.0
        %2200 = vmatpush1.msra.mxu0 0.0
        %2201 = vmatprep.mubr.f32.mxu0 0.0
        %2202 = vmatmul.mubr.f32.gmra.mrb[0].mxu0 %v2135
        %v2203 = vpop.f32.mrb[0].mxu0
        %v2204 = vadd.f32 %v2129, %v2203
        %v2205 = vpop.f32.mrb[0].mxu0
        %2206 = vdwg.mxu0
        %v2207 = vadd.f32 %v2204, %v1638
        %v2208 = vsub.f32 0.0, %v2207
        %v2209 = vmul.f32 %v2208, 1.442695
        %v2210 = vpow.pop %v2209
        %v2211 = vadd.f32 %v2210, 1.0
        %v2212 = vrcp.pop %v2211
        %v2213 = vmul.f32 1.0, %v2212
        %v2214 = vtanh.pop %v2207
        %v2215 = vmul.f32 %v2213, %v2048
        %2217 = vrot.lane.b32.xlu0 %v2214, 64
        %v2218 = vpop.permute.xlu0 %2217
        %v2220 = vmul.f32 %v2213, %v2218
        %2222 = vrot.lane.b32.xlu0 %v2220, 32
        %v2223 = vpop.permute.xlu0 %2222
        %v2225 = vadd.f32 %v2215, %v2223
        %v2226 = vtanh.pop %v2225
        %2228 = vrot.lane.b32.xlu0 %v2226, 64
        %v2229 = vpop.permute.xlu0 %2228
        %v2231 = vmul.f32 %v2213, %v2229
        %p2232 = scmp.gt.s32.totalorder %s1650, 2
        %p2233 = scmp.eq.s32.totalorder %s1847, 2
        %p2234 = scmp.gt.s32.totalorder %s1847, 2
        %s2235 = scalar_select %p2232, 1, 0
        %v2236 = vstv %s2235
        %vm2237 = vcmp.eq.s32.totalorder %v2236, 1
        %v2238 = vsel %vm2237, %v2231, %v2047
        %v2239 = vsel %vm2237, %v2225, %v2048
        %s2240 = scalar_select %p2233, 1, 0
        %v2241 = vstv %s2240
        %vm2242 = vcmp.eq.s32.totalorder %v2241, 1
        %v2243 = vsel %vm2242, %v2231, %v2052
        %s2244 = scalar_select %p2234, 1, 0
        %v2245 = vstv %s2244
        %vm2246 = vcmp.eq.s32.totalorder %v2245, 1
        %v2247 = vsel %vm2246, %v2231, %v2056
        %2249 = vrot.lane.b32.xlu0 %v2238, 32
        %v2250 = vpop.permute.xlu0 %2249
        %v2251 = vsel %vm127, %v2250, 0
        %2253 = vmatprep.subr.mxu0 0.0
        %2254 = vmatpush1.msra.mxu0 %v1634
        %2255 = vmatprep.subr.mxu0 0.0
        %2256 = vmatpush1.msra.mxu0 %v1635
        %2257 = vmatprep.subr.mxu0 0.0
        %2258 = vmatpush1.msra.mxu0 %v1636
        %2259 = vmatprep.subr.mxu0 0.0
        %2260 = vmatpush1.msra.mxu0 %v1637
        %2261 = vmatprep.subr.mxu0 0.0
        %2262 = vmatpush1.msra.mxu0 0.0
        %2263 = vmatprep.subr.mxu0 0.0
        %2264 = vmatpush1.msra.mxu0 0.0
        %2265 = vmatprep.subr.mxu0 0.0
        %2266 = vmatpush1.msra.mxu0 0.0
        %2267 = vmatprep.subr.mxu0 0.0
        %2268 = vmatpush1.msra.mxu0 0.0
        %2269 = vmatprep.subr.mxu0 0.0
        %2270 = vmatpush1.msra.mxu0 0.0
        %2271 = vmatprep.subr.mxu0 0.0
        %2272 = vmatpush1.msra.mxu0 0.0
        %2273 = vmatprep.subr.mxu0 0.0
        %2274 = vmatpush1.msra.mxu0 0.0
        %2275 = vmatprep.subr.mxu0 0.0
        %2276 = vmatpush1.msra.mxu0 0.0
        %2277 = vmatprep.subr.mxu0 0.0
        %2278 = vmatpush1.msra.mxu0 0.0
        %2279 = vmatprep.subr.mxu0 0.0
        %2280 = vmatpush1.msra.mxu0 0.0
        %2281 = vmatprep.subr.mxu0 0.0
        %2282 = vmatpush1.msra.mxu0 0.0
        %2283 = vmatprep.subr.mxu0 0.0
        %2284 = vmatpush1.msra.mxu0 0.0
        %2285 = vmatprep.subr.mxu0 0.0
        %2286 = vmatpush1.msra.mxu0 0.0
        %2287 = vmatprep.subr.mxu0 0.0
        %2288 = vmatpush1.msra.mxu0 0.0
        %2289 = vmatprep.subr.mxu0 0.0
        %2290 = vmatpush1.msra.mxu0 0.0
        %2291 = vmatprep.subr.mxu0 0.0
        %2292 = vmatpush1.msra.mxu0 0.0
        %2293 = vmatprep.subr.mxu0 0.0
        %2294 = vmatpush1.msra.mxu0 0.0
        %2295 = vmatprep.subr.mxu0 0.0
        %2296 = vmatpush1.msra.mxu0 0.0
        %2297 = vmatprep.subr.mxu0 0.0
        %2298 = vmatpush1.msra.mxu0 0.0
        %2299 = vmatprep.subr.mxu0 0.0
        %2300 = vmatpush1.msra.mxu0 0.0
        %2301 = vmatprep.subr.mxu0 0.0
        %2302 = vmatpush1.msra.mxu0 0.0
        %2303 = vmatprep.subr.mxu0 0.0
        %2304 = vmatpush1.msra.mxu0 0.0
        %2305 = vmatprep.subr.mxu0 0.0
        %2306 = vmatpush1.msra.mxu0 0.0
        %2307 = vmatprep.subr.mxu0 0.0
        %2308 = vmatpush1.msra.mxu0 0.0
        %2309 = vmatprep.subr.mxu0 0.0
        %2310 = vmatpush1.msra.mxu0 0.0
        %2311 = vmatprep.subr.mxu0 0.0
        %2312 = vmatpush1.msra.mxu0 0.0
        %2313 = vmatprep.subr.mxu0 0.0
        %2314 = vmatpush1.msra.mxu0 0.0
        %2315 = vmatprep.subr.mxu0 0.0
        %2316 = vmatpush1.msra.mxu0 0.0
        %2317 = vmatprep.mubr.f32.mxu0 0.0
        %2318 = vmatmul.mubr.f32.gmra.mrb[0].mxu0 %v2251
        %v2319 = vpop.f32.mrb[0].mxu0
        %v2320 = vadd.f32 0.0, %v2319
        %v2321 = vpop.f32.mrb[0].mxu0
        %2322 = vdwg.mxu0
        %2324 = vrot.lane.b32.xlu0 %v2247, 32
        %v2325 = vpop.permute.xlu0 %2324
        %v2326 = vsel %vm127, %v2325, 0
        %2328 = vmatprep.subr.mxu0 0.0
        %2329 = vmatpush1.msra.mxu0 %v1630
        %2330 = vmatprep.subr.mxu0 0.0
        %2331 = vmatpush1.msra.mxu0 %v1631
        %2332 = vmatprep.subr.mxu0 0.0
        %2333 = vmatpush1.msra.mxu0 %v1632
        %2334 = vmatprep.subr.mxu0 0.0
        %2335 = vmatpush1.msra.mxu0 %v1633
        %2336 = vmatprep.subr.mxu0 0.0
        %2337 = vmatpush1.msra.mxu0 0.0
        %2338 = vmatprep.subr.mxu0 0.0
        %2339 = vmatpush1.msra.mxu0 0.0
        %2340 = vmatprep.subr.mxu0 0.0
        %2341 = vmatpush1.msra.mxu0 0.0
        %2342 = vmatprep.subr.mxu0 0.0
        %2343 = vmatpush1.msra.mxu0 0.0
        %2344 = vmatprep.subr.mxu0 0.0
        %2345 = vmatpush1.msra.mxu0 0.0
        %2346 = vmatprep.subr.mxu0 0.0
        %2347 = vmatpush1.msra.mxu0 0.0
        %2348 = vmatprep.subr.mxu0 0.0
        %2349 = vmatpush1.msra.mxu0 0.0
        %2350 = vmatprep.subr.mxu0 0.0
        %2351 = vmatpush1.msra.mxu0 0.0
        %2352 = vmatprep.subr.mxu0 0.0
        %2353 = vmatpush1.msra.mxu0 0.0
        %2354 = vmatprep.subr.mxu0 0.0
        %2355 = vmatpush1.msra.mxu0 0.0
        %2356 = vmatprep.subr.mxu0 0.0
        %2357 = vmatpush1.msra.mxu0 0.0
        %2358 = vmatprep.subr.mxu0 0.0
        %2359 = vmatpush1.msra.mxu0 0.0
        %2360 = vmatprep.subr.mxu0 0.0
        %2361 = vmatpush1.msra.mxu0 0.0
        %2362 = vmatprep.subr.mxu0 0.0
        %2363 = vmatpush1.msra.mxu0 0.0
        %2364 = vmatprep.subr.mxu0 0.0
        %2365 = vmatpush1.msra.mxu0 0.0
        %2366 = vmatprep.subr.mxu0 0.0
        %2367 = vmatpush1.msra.mxu0 0.0
        %2368 = vmatprep.subr.mxu0 0.0
        %2369 = vmatpush1.msra.mxu0 0.0
        %2370 = vmatprep.subr.mxu0 0.0
        %2371 = vmatpush1.msra.mxu0 0.0
        %2372 = vmatprep.subr.mxu0 0.0
        %2373 = vmatpush1.msra.mxu0 0.0
        %2374 = vmatprep.subr.mxu0 0.0
        %2375 = vmatpush1.msra.mxu0 0.0
        %2376 = vmatprep.subr.mxu0 0.0
        %2377 = vmatpush1.msra.mxu0 0.0
        %2378 = vmatprep.subr.mxu0 0.0
        %2379 = vmatpush1.msra.mxu0 0.0
        %2380 = vmatprep.subr.mxu0 0.0
        %2381 = vmatpush1.msra.mxu0 0.0
        %2382 = vmatprep.subr.mxu0 0.0
        %2383 = vmatpush1.msra.mxu0 0.0
        %2384 = vmatprep.subr.mxu0 0.0
        %2385 = vmatpush1.msra.mxu0 0.0
        %2386 = vmatprep.subr.mxu0 0.0
        %2387 = vmatpush1.msra.mxu0 0.0
        %2388 = vmatprep.subr.mxu0 0.0
        %2389 = vmatpush1.msra.mxu0 0.0
        %2390 = vmatprep.subr.mxu0 0.0
        %2391 = vmatpush1.msra.mxu0 0.0
        %2392 = vmatprep.mubr.f32.mxu0 0.0
        %2393 = vmatmul.mubr.f32.gmra.mrb[0].mxu0 %v2326
        %v2394 = vpop.f32.mrb[0].mxu0
        %v2395 = vadd.f32 %v2320, %v2394
        %v2396 = vpop.f32.mrb[0].mxu0
        %2397 = vdwg.mxu0
        %v2398 = vadd.f32 %v2395, %v1638
        %v2399 = vsub.f32 0.0, %v2398
        %v2400 = vmul.f32 %v2399, 1.442695
        %v2401 = vpow.pop %v2400
        %v2402 = vadd.f32 %v2401, 1.0
        %v2403 = vrcp.pop %v2402
        %v2404 = vmul.f32 1.0, %v2403
        %v2405 = vtanh.pop %v2398
        %v2406 = vmul.f32 %v2404, %v2239
        %2408 = vrot.lane.b32.xlu0 %v2405, 64
        %v2409 = vpop.permute.xlu0 %2408
        %v2411 = vmul.f32 %v2404, %v2409
        %2413 = vrot.lane.b32.xlu0 %v2411, 32
        %v2414 = vpop.permute.xlu0 %2413
        %v2416 = vadd.f32 %v2406, %v2414
        %v2417 = vtanh.pop %v2416
        %2419 = vrot.lane.b32.xlu0 %v2417, 64
        %v2420 = vpop.permute.xlu0 %2419
        %v2422 = vmul.f32 %v2404, %v2420
        %p2423 = scmp.gt.s32.totalorder %s1650, 3
        %p2424 = scmp.eq.s32.totalorder %s1847, 3
        %p2425 = scmp.gt.s32.totalorder %s1847, 3
        %s2426 = scalar_select %p2423, 1, 0
        %v2427 = vstv %s2426
        %vm2428 = vcmp.eq.s32.totalorder %v2427, 1
        %v2429 = vsel %vm2428, %v2422, %v2238
        %v2430 = vsel %vm2428, %v2416, %v2239
        %s2431 = scalar_select %p2424, 1, 0
        %v2432 = vstv %s2431
        %vm2433 = vcmp.eq.s32.totalorder %v2432, 1
        %v2434 = vsel %vm2433, %v2422, %v2243
        %s2435 = scalar_select %p2425, 1, 0
        %v2436 = vstv %s2435
        %vm2437 = vcmp.eq.s32.totalorder %v2436, 1
        %v2438 = vsel %vm2437, %v2422, %v2247
        %2440 = vrot.lane.b32.xlu0 %v2429, 32
        %v2441 = vpop.permute.xlu0 %2440
        %v2442 = vsel %vm127, %v2441, 0
        %2444 = vmatprep.subr.mxu0 0.0
        %2445 = vmatpush1.msra.mxu0 %v1634
        %2446 = vmatprep.subr.mxu0 0.0
        %2447 = vmatpush1.msra.mxu0 %v1635
        %2448 = vmatprep.subr.mxu0 0.0
        %2449 = vmatpush1.msra.mxu0 %v1636
        %2450 = vmatprep.subr.mxu0 0.0
        %2451 = vmatpush1.msra.mxu0 %v1637
        %2452 = vmatprep.subr.mxu0 0.0
        %2453 = vmatpush1.msra.mxu0 0.0
        %2454 = vmatprep.subr.mxu0 0.0
        %2455 = vmatpush1.msra.mxu0 0.0
        %2456 = vmatprep.subr.mxu0 0.0
        %2457 = vmatpush1.msra.mxu0 0.0
        %2458 = vmatprep.subr.mxu0 0.0
        %2459 = vmatpush1.msra.mxu0 0.0
        %2460 = vmatprep.subr.mxu0 0.0
        %2461 = vmatpush1.msra.mxu0 0.0
        %2462 = vmatprep.subr.mxu0 0.0
        %2463 = vmatpush1.msra.mxu0 0.0
        %2464 = vmatprep.subr.mxu0 0.0
        %2465 = vmatpush1.msra.mxu0 0.0
        %2466 = vmatprep.subr.mxu0 0.0
        %2467 = vmatpush1.msra.mxu0 0.0
        %2468 = vmatprep.subr.mxu0 0.0
        %2469 = vmatpush1.msra.mxu0 0.0
        %2470 = vmatprep.subr.mxu0 0.0
        %2471 = vmatpush1.msra.mxu0 0.0
        %2472 = vmatprep.subr.mxu0 0.0
        %2473 = vmatpush1.msra.mxu0 0.0
        %2474 = vmatprep.subr.mxu0 0.0
        %2475 = vmatpush1.msra.mxu0 0.0
        %2476 = vmatprep.subr.mxu0 0.0
        %2477 = vmatpush1.msra.mxu0 0.0
        %2478 = vmatprep.subr.mxu0 0.0
        %2479 = vmatpush1.msra.mxu0 0.0
        %2480 = vmatprep.subr.mxu0 0.0
        %2481 = vmatpush1.msra.mxu0 0.0
        %2482 = vmatprep.subr.mxu0 0.0
        %2483 = vmatpush1.msra.mxu0 0.0
        %2484 = vmatprep.subr.mxu0 0.0
        %2485 = vmatpush1.msra.mxu0 0.0
        %2486 = vmatprep.subr.mxu0 0.0
        %2487 = vmatpush1.msra.mxu0 0.0
        %2488 = vmatprep.subr.mxu0 0.0
        %2489 = vmatpush1.msra.mxu0 0.0
        %2490 = vmatprep.subr.mxu0 0.0
        %2491 = vmatpush1.msra.mxu0 0.0
        %2492 = vmatprep.subr.mxu0 0.0
        %2493 = vmatpush1.msra.mxu0 0.0
        %2494 = vmatprep.subr.mxu0 0.0
        %2495 = vmatpush1.msra.mxu0 0.0
        %2496 = vmatprep.subr.mxu0 0.0
        %2497 = vmatpush1.msra.mxu0 0.0
        %2498 = vmatprep.subr.mxu0 0.0
        %2499 = vmatpush1.msra.mxu0 0.0
        %2500 = vmatprep.subr.mxu0 0.0
        %2501 = vmatpush1.msra.mxu0 0.0
        %2502 = vmatprep.subr.mxu0 0.0
        %2503 = vmatpush1.msra.mxu0 0.0
        %2504 = vmatprep.subr.mxu0 0.0
        %2505 = vmatpush1.msra.mxu0 0.0
        %2506 = vmatprep.subr.mxu0 0.0
        %2507 = vmatpush1.msra.mxu0 0.0
        %2508 = vmatprep.mubr.f32.mxu0 0.0
        %2509 = vmatmul.mubr.f32.gmra.mrb[0].mxu0 %v2442
        %v2510 = vpop.f32.mrb[0].mxu0
        %v2511 = vadd.f32 0.0, %v2510
        %v2512 = vpop.f32.mrb[0].mxu0
        %2513 = vdwg.mxu0
        %2515 = vrot.lane.b32.xlu0 %v2438, 32
        %v2516 = vpop.permute.xlu0 %2515
        %v2517 = vsel %vm127, %v2516, 0
        %2519 = vmatprep.subr.mxu0 0.0
        %2520 = vmatpush1.msra.mxu0 %v1630
        %2521 = vmatprep.subr.mxu0 0.0
        %2522 = vmatpush1.msra.mxu0 %v1631
        %2523 = vmatprep.subr.mxu0 0.0
        %2524 = vmatpush1.msra.mxu0 %v1632
        %2525 = vmatprep.subr.mxu0 0.0
        %2526 = vmatpush1.msra.mxu0 %v1633
        %2527 = vmatprep.subr.mxu0 0.0
        %2528 = vmatpush1.msra.mxu0 0.0
        %2529 = vmatprep.subr.mxu0 0.0
        %2530 = vmatpush1.msra.mxu0 0.0
        %2531 = vmatprep.subr.mxu0 0.0
        %2532 = vmatpush1.msra.mxu0 0.0
        %2533 = vmatprep.subr.mxu0 0.0
        %2534 = vmatpush1.msra.mxu0 0.0
        %2535 = vmatprep.subr.mxu0 0.0
        %2536 = vmatpush1.msra.mxu0 0.0
        %2537 = vmatprep.subr.mxu0 0.0
        %2538 = vmatpush1.msra.mxu0 0.0
        %2539 = vmatprep.subr.mxu0 0.0
        %2540 = vmatpush1.msra.mxu0 0.0
        %2541 = vmatprep.subr.mxu0 0.0
        %2542 = vmatpush1.msra.mxu0 0.0
        %2543 = vmatprep.subr.mxu0 0.0
        %2544 = vmatpush1.msra.mxu0 0.0
        %2545 = vmatprep.subr.mxu0 0.0
        %2546 = vmatpush1.msra.mxu0 0.0
        %2547 = vmatprep.subr.mxu0 0.0
        %2548 = vmatpush1.msra.mxu0 0.0
        %2549 = vmatprep.subr.mxu0 0.0
        %2550 = vmatpush1.msra.mxu0 0.0
        %2551 = vmatprep.subr.mxu0 0.0
        %2552 = vmatpush1.msra.mxu0 0.0
        %2553 = vmatprep.subr.mxu0 0.0
        %2554 = vmatpush1.msra.mxu0 0.0
        %2555 = vmatprep.subr.mxu0 0.0
        %2556 = vmatpush1.msra.mxu0 0.0
        %2557 = vmatprep.subr.mxu0 0.0
        %2558 = vmatpush1.msra.mxu0 0.0
        %2559 = vmatprep.subr.mxu0 0.0
        %2560 = vmatpush1.msra.mxu0 0.0
        %2561 = vmatprep.subr.mxu0 0.0
        %2562 = vmatpush1.msra.mxu0 0.0
        %2563 = vmatprep.subr.mxu0 0.0
        %2564 = vmatpush1.msra.mxu0 0.0
        %2565 = vmatprep.subr.mxu0 0.0
        %2566 = vmatpush1.msra.mxu0 0.0
        %2567 = vmatprep.subr.mxu0 0.0
        %2568 = vmatpush1.msra.mxu0 0.0
        %2569 = vmatprep.subr.mxu0 0.0
        %2570 = vmatpush1.msra.mxu0 0.0
        %2571 = vmatprep.subr.mxu0 0.0
        %2572 = vmatpush1.msra.mxu0 0.0
        %2573 = vmatprep.subr.mxu0 0.0
        %2574 = vmatpush1.msra.mxu0 0.0
        %2575 = vmatprep.subr.mxu0 0.0
        %2576 = vmatpush1.msra.mxu0 0.0
        %2577 = vmatprep.subr.mxu0 0.0
        %2578 = vmatpush1.msra.mxu0 0.0
        %2579 = vmatprep.subr.mxu0 0.0
        %2580 = vmatpush1.msra.mxu0 0.0
        %2581 = vmatprep.subr.mxu0 0.0
        %2582 = vmatpush1.msra.mxu0 0.0
        %2583 = vmatprep.mubr.f32.mxu0 0.0
        %2584 = vmatmul.mubr.f32.gmra.mrb[0].mxu0 %v2517
        %v2585 = vpop.f32.mrb[0].mxu0
        %v2586 = vadd.f32 %v2511, %v2585
        %v2587 = vpop.f32.mrb[0].mxu0
        %2588 = vdwg.mxu0
        %v2589 = vadd.f32 %v2586, %v1638
        %v2590 = vsub.f32 0.0, %v2589
        %v2591 = vmul.f32 %v2590, 1.442695
        %v2592 = vpow.pop %v2591
        %v2593 = vadd.f32 %v2592, 1.0
        %v2594 = vrcp.pop %v2593
        %v2595 = vmul.f32 1.0, %v2594
        %v2596 = vtanh.pop %v2589
        %v2597 = vmul.f32 %v2595, %v2430
        %2599 = vrot.lane.b32.xlu0 %v2596, 64
        %v2600 = vpop.permute.xlu0 %2599
        %v2602 = vmul.f32 %v2595, %v2600
        %2604 = vrot.lane.b32.xlu0 %v2602, 32
        %v2605 = vpop.permute.xlu0 %2604
        %v2607 = vadd.f32 %v2597, %v2605
        %v2608 = vtanh.pop %v2607
        %2610 = vrot.lane.b32.xlu0 %v2608, 64
        %v2611 = vpop.permute.xlu0 %2610
        %v2613 = vmul.f32 %v2595, %v2611
        %p2614 = scmp.gt.s32.totalorder %s1650, 4
        %p2615 = scmp.eq.s32.totalorder %s1847, 4
        %p2616 = scmp.gt.s32.totalorder %s1847, 4
        %s2617 = scalar_select %p2614, 1, 0
        %v2618 = vstv %s2617
        %vm2619 = vcmp.eq.s32.totalorder %v2618, 1
        %v2620 = vsel %vm2619, %v2613, %v2429
        %v2621 = vsel %vm2619, %v2607, %v2430
        %s2622 = scalar_select %p2615, 1, 0
        %v2623 = vstv %s2622
        %vm2624 = vcmp.eq.s32.totalorder %v2623, 1
        %v2625 = vsel %vm2624, %v2613, %v2434
        %s2626 = scalar_select %p2616, 1, 0
        %v2627 = vstv %s2626
        %vm2628 = vcmp.eq.s32.totalorder %v2627, 1
        %v2629 = vsel %vm2628, %v2613, %v2438
        %2631 = vrot.lane.b32.xlu0 %v2620, 32
        %v2632 = vpop.permute.xlu0 %2631
        %v2633 = vsel %vm127, %v2632, 0
        %2635 = vmatprep.subr.mxu0 0.0
        %2636 = vmatpush1.msra.mxu0 %v1634
        %2637 = vmatprep.subr.mxu0 0.0
        %2638 = vmatpush1.msra.mxu0 %v1635
        %2639 = vmatprep.subr.mxu0 0.0
        %2640 = vmatpush1.msra.mxu0 %v1636
        %2641 = vmatprep.subr.mxu0 0.0
        %2642 = vmatpush1.msra.mxu0 %v1637
        %2643 = vmatprep.subr.mxu0 0.0
        %2644 = vmatpush1.msra.mxu0 0.0
        %2645 = vmatprep.subr.mxu0 0.0
        %2646 = vmatpush1.msra.mxu0 0.0
        %2647 = vmatprep.subr.mxu0 0.0
        %2648 = vmatpush1.msra.mxu0 0.0
        %2649 = vmatprep.subr.mxu0 0.0
        %2650 = vmatpush1.msra.mxu0 0.0
        %2651 = vmatprep.subr.mxu0 0.0
        %2652 = vmatpush1.msra.mxu0 0.0
        %2653 = vmatprep.subr.mxu0 0.0
        %2654 = vmatpush1.msra.mxu0 0.0
        %2655 = vmatprep.subr.mxu0 0.0
        %2656 = vmatpush1.msra.mxu0 0.0
        %2657 = vmatprep.subr.mxu0 0.0
        %2658 = vmatpush1.msra.mxu0 0.0
        %2659 = vmatprep.subr.mxu0 0.0
        %2660 = vmatpush1.msra.mxu0 0.0
        %2661 = vmatprep.subr.mxu0 0.0
        %2662 = vmatpush1.msra.mxu0 0.0
        %2663 = vmatprep.subr.mxu0 0.0
        %2664 = vmatpush1.msra.mxu0 0.0
        %2665 = vmatprep.subr.mxu0 0.0
        %2666 = vmatpush1.msra.mxu0 0.0
        %2667 = vmatprep.subr.mxu0 0.0
        %2668 = vmatpush1.msra.mxu0 0.0
        %2669 = vmatprep.subr.mxu0 0.0
        %2670 = vmatpush1.msra.mxu0 0.0
        %2671 = vmatprep.subr.mxu0 0.0
        %2672 = vmatpush1.msra.mxu0 0.0
        %2673 = vmatprep.subr.mxu0 0.0
        %2674 = vmatpush1.msra.mxu0 0.0
        %2675 = vmatprep.subr.mxu0 0.0
        %2676 = vmatpush1.msra.mxu0 0.0
        %2677 = vmatprep.subr.mxu0 0.0
        %2678 = vmatpush1.msra.mxu0 0.0
        %2679 = vmatprep.subr.mxu0 0.0
        %2680 = vmatpush1.msra.mxu0 0.0
        %2681 = vmatprep.subr.mxu0 0.0
        %2682 = vmatpush1.msra.mxu0 0.0
        %2683 = vmatprep.subr.mxu0 0.0
        %2684 = vmatpush1.msra.mxu0 0.0
        %2685 = vmatprep.subr.mxu0 0.0
        %2686 = vmatpush1.msra.mxu0 0.0
        %2687 = vmatprep.subr.mxu0 0.0
        %2688 = vmatpush1.msra.mxu0 0.0
        %2689 = vmatprep.subr.mxu0 0.0
        %2690 = vmatpush1.msra.mxu0 0.0
        %2691 = vmatprep.subr.mxu0 0.0
        %2692 = vmatpush1.msra.mxu0 0.0
        %2693 = vmatprep.subr.mxu0 0.0
        %2694 = vmatpush1.msra.mxu0 0.0
        %2695 = vmatprep.subr.mxu0 0.0
        %2696 = vmatpush1.msra.mxu0 0.0
        %2697 = vmatprep.subr.mxu0 0.0
        %2698 = vmatpush1.msra.mxu0 0.0
        %2699 = vmatprep.mubr.f32.mxu0 0.0
        %2700 = vmatmul.mubr.f32.gmra.mrb[0].mxu0 %v2633
        %v2701 = vpop.f32.mrb[0].mxu0
        %v2702 = vadd.f32 0.0, %v2701
        %v2703 = vpop.f32.mrb[0].mxu0
        %2704 = vdwg.mxu0
        %2706 = vrot.lane.b32.xlu0 %v2629, 32
        %v2707 = vpop.permute.xlu0 %2706
        %v2708 = vsel %vm127, %v2707, 0
        %2710 = vmatprep.subr.mxu0 0.0
        %2711 = vmatpush1.msra.mxu0 %v1630
        %2712 = vmatprep.subr.mxu0 0.0
        %2713 = vmatpush1.msra.mxu0 %v1631
        %2714 = vmatprep.subr.mxu0 0.0
        %2715 = vmatpush1.msra.mxu0 %v1632
        %2716 = vmatprep.subr.mxu0 0.0
        %2717 = vmatpush1.msra.mxu0 %v1633
        %2718 = vmatprep.subr.mxu0 0.0
        %2719 = vmatpush1.msra.mxu0 0.0
        %2720 = vmatprep.subr.mxu0 0.0
        %2721 = vmatpush1.msra.mxu0 0.0
        %2722 = vmatprep.subr.mxu0 0.0
        %2723 = vmatpush1.msra.mxu0 0.0
        %2724 = vmatprep.subr.mxu0 0.0
        %2725 = vmatpush1.msra.mxu0 0.0
        %2726 = vmatprep.subr.mxu0 0.0
        %2727 = vmatpush1.msra.mxu0 0.0
        %2728 = vmatprep.subr.mxu0 0.0
        %2729 = vmatpush1.msra.mxu0 0.0
        %2730 = vmatprep.subr.mxu0 0.0
        %2731 = vmatpush1.msra.mxu0 0.0
        %2732 = vmatprep.subr.mxu0 0.0
        %2733 = vmatpush1.msra.mxu0 0.0
        %2734 = vmatprep.subr.mxu0 0.0
        %2735 = vmatpush1.msra.mxu0 0.0
        %2736 = vmatprep.subr.mxu0 0.0
        %2737 = vmatpush1.msra.mxu0 0.0
        %2738 = vmatprep.subr.mxu0 0.0
        %2739 = vmatpush1.msra.mxu0 0.0
        %2740 = vmatprep.subr.mxu0 0.0
        %2741 = vmatpush1.msra.mxu0 0.0
        %2742 = vmatprep.subr.mxu0 0.0
        %2743 = vmatpush1.msra.mxu0 0.0
        %2744 = vmatprep.subr.mxu0 0.0
        %2745 = vmatpush1.msra.mxu0 0.0
        %2746 = vmatprep.subr.mxu0 0.0
        %2747 = vmatpush1.msra.mxu0 0.0
        %2748 = vmatprep.subr.mxu0 0.0
        %2749 = vmatpush1.msra.mxu0 0.0
        %2750 = vmatprep.subr.mxu0 0.0
        %2751 = vmatpush1.msra.mxu0 0.0
        %2752 = vmatprep.subr.mxu0 0.0
        %2753 = vmatpush1.msra.mxu0 0.0
        %2754 = vmatprep.subr.mxu0 0.0
        %2755 = vmatpush1.msra.mxu0 0.0
        %2756 = vmatprep.subr.mxu0 0.0
        %2757 = vmatpush1.msra.mxu0 0.0
        %2758 = vmatprep.subr.mxu0 0.0
        %2759 = vmatpush1.msra.mxu0 0.0
        %2760 = vmatprep.subr.mxu0 0.0
        %2761 = vmatpush1.msra.mxu0 0.0
        %2762 = vmatprep.subr.mxu0 0.0
        %2763 = vmatpush1.msra.mxu0 0.0
        %2764 = vmatprep.subr.mxu0 0.0
        %2765 = vmatpush1.msra.mxu0 0.0
        %2766 = vmatprep.subr.mxu0 0.0
        %2767 = vmatpush1.msra.mxu0 0.0
        %2768 = vmatprep.subr.mxu0 0.0
        %2769 = vmatpush1.msra.mxu0 0.0
        %2770 = vmatprep.subr.mxu0 0.0
        %2771 = vmatpush1.msra.mxu0 0.0
        %2772 = vmatprep.subr.mxu0 0.0
        %2773 = vmatpush1.msra.mxu0 0.0
        %2774 = vmatprep.mubr.f32.mxu0 0.0
        %2775 = vmatmul.mubr.f32.gmra.mrb[0].mxu0 %v2708
        %v2776 = vpop.f32.mrb[0].mxu0
        %v2777 = vadd.f32 %v2702, %v2776
        %v2778 = vpop.f32.mrb[0].mxu0
        %2779 = vdwg.mxu0
        %v2780 = vadd.f32 %v2777, %v1638
        %v2781 = vsub.f32 0.0, %v2780
        %v2782 = vmul.f32 %v2781, 1.442695
        %v2783 = vpow.pop %v2782
        %v2784 = vadd.f32 %v2783, 1.0
        %v2785 = vrcp.pop %v2784
        %v2786 = vmul.f32 1.0, %v2785
        %v2787 = vtanh.pop %v2780
        %v2788 = vmul.f32 %v2786, %v2621
        %2790 = vrot.lane.b32.xlu0 %v2787, 64
        %v2791 = vpop.permute.xlu0 %2790
        %v2793 = vmul.f32 %v2786, %v2791
        %2795 = vrot.lane.b32.xlu0 %v2793, 32
        %v2796 = vpop.permute.xlu0 %2795
        %v2798 = vadd.f32 %v2788, %v2796
        %v2799 = vtanh.pop %v2798
        %2801 = vrot.lane.b32.xlu0 %v2799, 64
        %v2802 = vpop.permute.xlu0 %2801
        %v2804 = vmul.f32 %v2786, %v2802
        %p2805 = scmp.gt.s32.totalorder %s1650, 5
        %p2806 = scmp.eq.s32.totalorder %s1847, 5
        %p2807 = scmp.gt.s32.totalorder %s1847, 5
        %s2808 = scalar_select %p2805, 1, 0
        %v2809 = vstv %s2808
        %vm2810 = vcmp.eq.s32.totalorder %v2809, 1
        %v2811 = vsel %vm2810, %v2804, %v2620
        %v2812 = vsel %vm2810, %v2798, %v2621
        %s2813 = scalar_select %p2806, 1, 0
        %v2814 = vstv %s2813
        %vm2815 = vcmp.eq.s32.totalorder %v2814, 1
        %v2816 = vsel %vm2815, %v2804, %v2625
        %s2817 = scalar_select %p2807, 1, 0
        %v2818 = vstv %s2817
        %vm2819 = vcmp.eq.s32.totalorder %v2818, 1
        %v2820 = vsel %vm2819, %v2804, %v2629
        %2822 = vrot.lane.b32.xlu0 %v2811, 32
        %v2823 = vpop.permute.xlu0 %2822
        %v2824 = vsel %vm127, %v2823, 0
        %2826 = vmatprep.subr.mxu0 0.0
        %2827 = vmatpush1.msra.mxu0 %v1634
        %2828 = vmatprep.subr.mxu0 0.0
        %2829 = vmatpush1.msra.mxu0 %v1635
        %2830 = vmatprep.subr.mxu0 0.0
        %2831 = vmatpush1.msra.mxu0 %v1636
        %2832 = vmatprep.subr.mxu0 0.0
        %2833 = vmatpush1.msra.mxu0 %v1637
        %2834 = vmatprep.subr.mxu0 0.0
        %2835 = vmatpush1.msra.mxu0 0.0
        %2836 = vmatprep.subr.mxu0 0.0
        %2837 = vmatpush1.msra.mxu0 0.0
        %2838 = vmatprep.subr.mxu0 0.0
        %2839 = vmatpush1.msra.mxu0 0.0
        %2840 = vmatprep.subr.mxu0 0.0
        %2841 = vmatpush1.msra.mxu0 0.0
        %2842 = vmatprep.subr.mxu0 0.0
        %2843 = vmatpush1.msra.mxu0 0.0
        %2844 = vmatprep.subr.mxu0 0.0
        %2845 = vmatpush1.msra.mxu0 0.0
        %2846 = vmatprep.subr.mxu0 0.0
        %2847 = vmatpush1.msra.mxu0 0.0
        %2848 = vmatprep.subr.mxu0 0.0
        %2849 = vmatpush1.msra.mxu0 0.0
        %2850 = vmatprep.subr.mxu0 0.0
        %2851 = vmatpush1.msra.mxu0 0.0
        %2852 = vmatprep.subr.mxu0 0.0
        %2853 = vmatpush1.msra.mxu0 0.0
        %2854 = vmatprep.subr.mxu0 0.0
        %2855 = vmatpush1.msra.mxu0 0.0
        %2856 = vmatprep.subr.mxu0 0.0
        %2857 = vmatpush1.msra.mxu0 0.0
        %2858 = vmatprep.subr.mxu0 0.0
        %2859 = vmatpush1.msra.mxu0 0.0
        %2860 = vmatprep.subr.mxu0 0.0
        %2861 = vmatpush1.msra.mxu0 0.0
        %2862 = vmatprep.subr.mxu0 0.0
        %2863 = vmatpush1.msra.mxu0 0.0
        %2864 = vmatprep.subr.mxu0 0.0
        %2865 = vmatpush1.msra.mxu0 0.0
        %2866 = vmatprep.subr.mxu0 0.0
        %2867 = vmatpush1.msra.mxu0 0.0
        %2868 = vmatprep.subr.mxu0 0.0
        %2869 = vmatpush1.msra.mxu0 0.0
        %2870 = vmatprep.subr.mxu0 0.0
        %2871 = vmatpush1.msra.mxu0 0.0
        %2872 = vmatprep.subr.mxu0 0.0
        %2873 = vmatpush1.msra.mxu0 0.0
        %2874 = vmatprep.subr.mxu0 0.0
        %2875 = vmatpush1.msra.mxu0 0.0
        %2876 = vmatprep.subr.mxu0 0.0
        %2877 = vmatpush1.msra.mxu0 0.0
        %2878 = vmatprep.subr.mxu0 0.0
        %2879 = vmatpush1.msra.mxu0 0.0
        %2880 = vmatprep.subr.mxu0 0.0
        %2881 = vmatpush1.msra.mxu0 0.0
        %2882 = vmatprep.subr.mxu0 0.0
        %2883 = vmatpush1.msra.mxu0 0.0
        %2884 = vmatprep.subr.mxu0 0.0
        %2885 = vmatpush1.msra.mxu0 0.0
        %2886 = vmatprep.subr.mxu0 0.0
        %2887 = vmatpush1.msra.mxu0 0.0
        %2888 = vmatprep.subr.mxu0 0.0
        %2889 = vmatpush1.msra.mxu0 0.0
        %2890 = vmatprep.mubr.f32.mxu0 0.0
        %2891 = vmatmul.mubr.f32.gmra.mrb[0].mxu0 %v2824
        %v2892 = vpop.f32.mrb[0].mxu0
        %v2893 = vadd.f32 0.0, %v2892
        %v2894 = vpop.f32.mrb[0].mxu0
        %2895 = vdwg.mxu0
        %2897 = vrot.lane.b32.xlu0 %v2820, 32
        %v2898 = vpop.permute.xlu0 %2897
        %v2899 = vsel %vm127, %v2898, 0
        %2901 = vmatprep.subr.mxu0 0.0
        %2902 = vmatpush1.msra.mxu0 %v1630
        %2903 = vmatprep.subr.mxu0 0.0
        %2904 = vmatpush1.msra.mxu0 %v1631
        %2905 = vmatprep.subr.mxu0 0.0
        %2906 = vmatpush1.msra.mxu0 %v1632
        %2907 = vmatprep.subr.mxu0 0.0
        %2908 = vmatpush1.msra.mxu0 %v1633
        %2909 = vmatprep.subr.mxu0 0.0
        %2910 = vmatpush1.msra.mxu0 0.0
        %2911 = vmatprep.subr.mxu0 0.0
        %2912 = vmatpush1.msra.mxu0 0.0
        %2913 = vmatprep.subr.mxu0 0.0
        %2914 = vmatpush1.msra.mxu0 0.0
        %2915 = vmatprep.subr.mxu0 0.0
        %2916 = vmatpush1.msra.mxu0 0.0
        %2917 = vmatprep.subr.mxu0 0.0
        %2918 = vmatpush1.msra.mxu0 0.0
        %2919 = vmatprep.subr.mxu0 0.0
        %2920 = vmatpush1.msra.mxu0 0.0
        %2921 = vmatprep.subr.mxu0 0.0
        %2922 = vmatpush1.msra.mxu0 0.0
        %2923 = vmatprep.subr.mxu0 0.0
        %2924 = vmatpush1.msra.mxu0 0.0
        %2925 = vmatprep.subr.mxu0 0.0
        %2926 = vmatpush1.msra.mxu0 0.0
        %2927 = vmatprep.subr.mxu0 0.0
        %2928 = vmatpush1.msra.mxu0 0.0
        %2929 = vmatprep.subr.mxu0 0.0
        %2930 = vmatpush1.msra.mxu0 0.0
        %2931 = vmatprep.subr.mxu0 0.0
        %2932 = vmatpush1.msra.mxu0 0.0
        %2933 = vmatprep.subr.mxu0 0.0
        %2934 = vmatpush1.msra.mxu0 0.0
        %2935 = vmatprep.subr.mxu0 0.0
        %2936 = vmatpush1.msra.mxu0 0.0
        %2937 = vmatprep.subr.mxu0 0.0
        %2938 = vmatpush1.msra.mxu0 0.0
        %2939 = vmatprep.subr.mxu0 0.0
        %2940 = vmatpush1.msra.mxu0 0.0
        %2941 = vmatprep.subr.mxu0 0.0
        %2942 = vmatpush1.msra.mxu0 0.0
        %2943 = vmatprep.subr.mxu0 0.0
        %2944 = vmatpush1.msra.mxu0 0.0
        %2945 = vmatprep.subr.mxu0 0.0
        %2946 = vmatpush1.msra.mxu0 0.0
        %2947 = vmatprep.subr.mxu0 0.0
        %2948 = vmatpush1.msra.mxu0 0.0
        %2949 = vmatprep.subr.mxu0 0.0
        %2950 = vmatpush1.msra.mxu0 0.0
        %2951 = vmatprep.subr.mxu0 0.0
        %2952 = vmatpush1.msra.mxu0 0.0
        %2953 = vmatprep.subr.mxu0 0.0
        %2954 = vmatpush1.msra.mxu0 0.0
        %2955 = vmatprep.subr.mxu0 0.0
        %2956 = vmatpush1.msra.mxu0 0.0
        %2957 = vmatprep.subr.mxu0 0.0
        %2958 = vmatpush1.msra.mxu0 0.0
        %2959 = vmatprep.subr.mxu0 0.0
        %2960 = vmatpush1.msra.mxu0 0.0
        %2961 = vmatprep.subr.mxu0 0.0
        %2962 = vmatpush1.msra.mxu0 0.0
        %2963 = vmatprep.subr.mxu0 0.0
        %2964 = vmatpush1.msra.mxu0 0.0
        %2965 = vmatprep.mubr.f32.mxu0 0.0
        %2966 = vmatmul.mubr.f32.gmra.mrb[0].mxu0 %v2899
        %v2967 = vpop.f32.mrb[0].mxu0
        %v2968 = vadd.f32 %v2893, %v2967
        %v2969 = vpop.f32.mrb[0].mxu0
        %2970 = vdwg.mxu0
        %v2971 = vadd.f32 %v2968, %v1638
        %v2972 = vsub.f32 0.0, %v2971
        %v2973 = vmul.f32 %v2972, 1.442695
        %v2974 = vpow.pop %v2973
        %v2975 = vadd.f32 %v2974, 1.0
        %v2976 = vrcp.pop %v2975
        %v2977 = vmul.f32 1.0, %v2976
        %v2978 = vtanh.pop %v2971
        %v2979 = vmul.f32 %v2977, %v2812
        %2981 = vrot.lane.b32.xlu0 %v2978, 64
        %v2982 = vpop.permute.xlu0 %2981
        %v2984 = vmul.f32 %v2977, %v2982
        %2986 = vrot.lane.b32.xlu0 %v2984, 32
        %v2987 = vpop.permute.xlu0 %2986
        %v2989 = vadd.f32 %v2979, %v2987
        %v2990 = vtanh.pop %v2989
        %2992 = vrot.lane.b32.xlu0 %v2990, 64
        %v2993 = vpop.permute.xlu0 %2992
        %v2995 = vmul.f32 %v2977, %v2993
        %p2996 = scmp.gt.s32.totalorder %s1650, 6
        %p2997 = scmp.eq.s32.totalorder %s1847, 6
        %p2998 = scmp.gt.s32.totalorder %s1847, 6
        %s2999 = scalar_select %p2996, 1, 0
        %v3000 = vstv %s2999
        %vm3001 = vcmp.eq.s32.totalorder %v3000, 1
        %v3002 = vsel %vm3001, %v2995, %v2811
        %v3003 = vsel %vm3001, %v2989, %v2812
        %s3004 = scalar_select %p2997, 1, 0
        %v3005 = vstv %s3004
        %vm3006 = vcmp.eq.s32.totalorder %v3005, 1
        %v3007 = vsel %vm3006, %v2995, %v2816
        %s3008 = scalar_select %p2998, 1, 0
        %v3009 = vstv %s3008
        %vm3010 = vcmp.eq.s32.totalorder %v3009, 1
        %v3011 = vsel %vm3010, %v2995, %v2820
        %3013 = vrot.lane.b32.xlu0 %v3002, 32
        %v3014 = vpop.permute.xlu0 %3013
        %v3015 = vsel %vm127, %v3014, 0
        %3017 = vmatprep.subr.mxu0 0.0
        %3018 = vmatpush1.msra.mxu0 %v1634
        %3019 = vmatprep.subr.mxu0 0.0
        %3020 = vmatpush1.msra.mxu0 %v1635
        %3021 = vmatprep.subr.mxu0 0.0
        %3022 = vmatpush1.msra.mxu0 %v1636
        %3023 = vmatprep.subr.mxu0 0.0
        %3024 = vmatpush1.msra.mxu0 %v1637
        %3025 = vmatprep.subr.mxu0 0.0
        %3026 = vmatpush1.msra.mxu0 0.0
        %3027 = vmatprep.subr.mxu0 0.0
        %3028 = vmatpush1.msra.mxu0 0.0
        %3029 = vmatprep.subr.mxu0 0.0
        %3030 = vmatpush1.msra.mxu0 0.0
        %3031 = vmatprep.subr.mxu0 0.0
        %3032 = vmatpush1.msra.mxu0 0.0
        %3033 = vmatprep.subr.mxu0 0.0
        %3034 = vmatpush1.msra.mxu0 0.0
        %3035 = vmatprep.subr.mxu0 0.0
        %3036 = vmatpush1.msra.mxu0 0.0
        %3037 = vmatprep.subr.mxu0 0.0
        %3038 = vmatpush1.msra.mxu0 0.0
        %3039 = vmatprep.subr.mxu0 0.0
        %3040 = vmatpush1.msra.mxu0 0.0
        %3041 = vmatprep.subr.mxu0 0.0
        %3042 = vmatpush1.msra.mxu0 0.0
        %3043 = vmatprep.subr.mxu0 0.0
        %3044 = vmatpush1.msra.mxu0 0.0
        %3045 = vmatprep.subr.mxu0 0.0
        %3046 = vmatpush1.msra.mxu0 0.0
        %3047 = vmatprep.subr.mxu0 0.0
        %3048 = vmatpush1.msra.mxu0 0.0
        %3049 = vmatprep.subr.mxu0 0.0
        %3050 = vmatpush1.msra.mxu0 0.0
        %3051 = vmatprep.subr.mxu0 0.0
        %3052 = vmatpush1.msra.mxu0 0.0
        %3053 = vmatprep.subr.mxu0 0.0
        %3054 = vmatpush1.msra.mxu0 0.0
        %3055 = vmatprep.subr.mxu0 0.0
        %3056 = vmatpush1.msra.mxu0 0.0
        %3057 = vmatprep.subr.mxu0 0.0
        %3058 = vmatpush1.msra.mxu0 0.0
        %3059 = vmatprep.subr.mxu0 0.0
        %3060 = vmatpush1.msra.mxu0 0.0
        %3061 = vmatprep.subr.mxu0 0.0
        %3062 = vmatpush1.msra.mxu0 0.0
        %3063 = vmatprep.subr.mxu0 0.0
        %3064 = vmatpush1.msra.mxu0 0.0
        %3065 = vmatprep.subr.mxu0 0.0
        %3066 = vmatpush1.msra.mxu0 0.0
        %3067 = vmatprep.subr.mxu0 0.0
        %3068 = vmatpush1.msra.mxu0 0.0
        %3069 = vmatprep.subr.mxu0 0.0
        %3070 = vmatpush1.msra.mxu0 0.0
        %3071 = vmatprep.subr.mxu0 0.0
        %3072 = vmatpush1.msra.mxu0 0.0
        %3073 = vmatprep.subr.mxu0 0.0
        %3074 = vmatpush1.msra.mxu0 0.0
        %3075 = vmatprep.subr.mxu0 0.0
        %3076 = vmatpush1.msra.mxu0 0.0
        %3077 = vmatprep.subr.mxu0 0.0
        %3078 = vmatpush1.msra.mxu0 0.0
        %3079 = vmatprep.subr.mxu0 0.0
        %3080 = vmatpush1.msra.mxu0 0.0
        %3081 = vmatprep.mubr.f32.mxu0 0.0
        %3082 = vmatmul.mubr.f32.gmra.mrb[0].mxu0 %v3015
        %v3083 = vpop.f32.mrb[0].mxu0
        %v3084 = vadd.f32 0.0, %v3083
        %v3085 = vpop.f32.mrb[0].mxu0
        %3086 = vdwg.mxu0
        %3088 = vrot.lane.b32.xlu0 %v3011, 32
        %v3089 = vpop.permute.xlu0 %3088
        %v3090 = vsel %vm127, %v3089, 0
        %3092 = vmatprep.subr.mxu0 0.0
        %3093 = vmatpush1.msra.mxu0 %v1630
        %3094 = vmatprep.subr.mxu0 0.0
        %3095 = vmatpush1.msra.mxu0 %v1631
        %3096 = vmatprep.subr.mxu0 0.0
        %3097 = vmatpush1.msra.mxu0 %v1632
        %3098 = vmatprep.subr.mxu0 0.0
        %3099 = vmatpush1.msra.mxu0 %v1633
        %3100 = vmatprep.subr.mxu0 0.0
        %3101 = vmatpush1.msra.mxu0 0.0
        %3102 = vmatprep.subr.mxu0 0.0
        %3103 = vmatpush1.msra.mxu0 0.0
        %3104 = vmatprep.subr.mxu0 0.0
        %3105 = vmatpush1.msra.mxu0 0.0
        %3106 = vmatprep.subr.mxu0 0.0
        %3107 = vmatpush1.msra.mxu0 0.0
        %3108 = vmatprep.subr.mxu0 0.0
        %3109 = vmatpush1.msra.mxu0 0.0
        %3110 = vmatprep.subr.mxu0 0.0
        %3111 = vmatpush1.msra.mxu0 0.0
        %3112 = vmatprep.subr.mxu0 0.0
        %3113 = vmatpush1.msra.mxu0 0.0
        %3114 = vmatprep.subr.mxu0 0.0
        %3115 = vmatpush1.msra.mxu0 0.0
        %3116 = vmatprep.subr.mxu0 0.0
        %3117 = vmatpush1.msra.mxu0 0.0
        %3118 = vmatprep.subr.mxu0 0.0
        %3119 = vmatpush1.msra.mxu0 0.0
        %3120 = vmatprep.subr.mxu0 0.0
        %3121 = vmatpush1.msra.mxu0 0.0
        %3122 = vmatprep.subr.mxu0 0.0
        %3123 = vmatpush1.msra.mxu0 0.0
        %3124 = vmatprep.subr.mxu0 0.0
        %3125 = vmatpush1.msra.mxu0 0.0
        %3126 = vmatprep.subr.mxu0 0.0
        %3127 = vmatpush1.msra.mxu0 0.0
        %3128 = vmatprep.subr.mxu0 0.0
        %3129 = vmatpush1.msra.mxu0 0.0
        %3130 = vmatprep.subr.mxu0 0.0
        %3131 = vmatpush1.msra.mxu0 0.0
        %3132 = vmatprep.subr.mxu0 0.0
        %3133 = vmatpush1.msra.mxu0 0.0
        %3134 = vmatprep.subr.mxu0 0.0
        %3135 = vmatpush1.msra.mxu0 0.0
        %3136 = vmatprep.subr.mxu0 0.0
        %3137 = vmatpush1.msra.mxu0 0.0
        %3138 = vmatprep.subr.mxu0 0.0
        %3139 = vmatpush1.msra.mxu0 0.0
        %3140 = vmatprep.subr.mxu0 0.0
        %3141 = vmatpush1.msra.mxu0 0.0
        %3142 = vmatprep.subr.mxu0 0.0
        %3143 = vmatpush1.msra.mxu0 0.0
        %3144 = vmatprep.subr.mxu0 0.0
        %3145 = vmatpush1.msra.mxu0 0.0
        %3146 = vmatprep.subr.mxu0 0.0
        %3147 = vmatpush1.msra.mxu0 0.0
        %3148 = vmatprep.subr.mxu0 0.0
        %3149 = vmatpush1.msra.mxu0 0.0
        %3150 = vmatprep.subr.mxu0 0.0
        %3151 = vmatpush1.msra.mxu0 0.0
        %3152 = vmatprep.subr.mxu0 0.0
        %3153 = vmatpush1.msra.mxu0 0.0
        %3154 = vmatprep.subr.mxu0 0.0
        %3155 = vmatpush1.msra.mxu0 0.0
        %3156 = vmatprep.mubr.f32.mxu0 0.0
        %3157 = vmatmul.mubr.f32.gmra.mrb[0].mxu0 %v3090
        %v3158 = vpop.f32.mrb[0].mxu0
        %v3159 = vadd.f32 %v3084, %v3158
        %v3160 = vpop.f32.mrb[0].mxu0
        %3161 = vdwg.mxu0
        %v3162 = vadd.f32 %v3159, %v1638
        %v3163 = vsub.f32 0.0, %v3162
        %v3164 = vmul.f32 %v3163, 1.442695
        %v3165 = vpow.pop %v3164
        %v3166 = vadd.f32 %v3165, 1.0
        %v3167 = vrcp.pop %v3166
        %v3168 = vmul.f32 1.0, %v3167
        %v3169 = vtanh.pop %v3162
        %v3170 = vmul.f32 %v3168, %v3003
        %3172 = vrot.lane.b32.xlu0 %v3169, 64
        %v3173 = vpop.permute.xlu0 %3172
        %v3175 = vmul.f32 %v3168, %v3173
        %3177 = vrot.lane.b32.xlu0 %v3175, 32
        %v3178 = vpop.permute.xlu0 %3177
        %v3180 = vadd.f32 %v3170, %v3178
        %v3181 = vtanh.pop %v3180
        %3183 = vrot.lane.b32.xlu0 %v3181, 64
        %v3184 = vpop.permute.xlu0 %3183
        %v3186 = vmul.f32 %v3168, %v3184
        %p3187 = scmp.eq.s32.totalorder %s1847, 7
        %p3188 = scmp.gt.s32.totalorder %s1847, 7
        %s3189 = scalar_select %p3187, 1, 0
        %v3190 = vstv %s3189
        %vm3191 = vcmp.eq.s32.totalorder %v3190, 1
        %v3192 = vsel %vm3191, %v3186, %v3007
        %s3193 = scalar_select %p3188, 1, 0
        %v3194 = vstv %s3193
        %vm3195 = vcmp.eq.s32.totalorder %v3194, 1
        %v3196 = vsel %vm3195, %v3186, %v3011
        %v3197 = vlaneseq
        %v3198 = vshrl.u32 %v3197, 7
        %v3199 = vsub.s32 0, %v3198
        %v3200 = vrot.slane %v3192, %v3199
        %v3201 = vsel %vm1654, %v3200, %v1649
        %3203 = vrot.lane.b32.xlu0 %v3196, 32
        %v3204 = vpop.permute.xlu0 %3203
      $region70: #{tpu_custom_call.1} parent=64 // loop_footer
        %s1647 = sadd.s32 1, %s1643
      $region71: #{tpu_custom_call.1} parent=64 // loop_footer_branch
        %1642 = sbr.rel target = $region67
      $region72: #{tpu_custom_call.1} parent=64 // loop_exit
        _
      %3207 = vrot.lane.b32.xlu0 %v1649, 32
      %v3208 = vpop.permute.xlu0 %3207
      %3210 = vst.msk [vmem:[#allocation15] sm:$0x3] %vm1620, %v3208
    $region65: #{tpu_custom_call.1} parent=1 // pred_fallthru
      _
    // Predicated region
    $region73: #{tpu_custom_call.1} parent=1 // pred_check
      _
    $region74: #{tpu_custom_call.1} parent=1 // pred_check_branch
      %3212 = sbr.rel (0) target = $region76
    $region75: #{tpu_custom_call.1} parent=1 // pred_region
      %s3214 = ssub.s32 32, 32
      %3215 = vsyncadd [#allocation8], %s3214
      %s3217 = sshll.u32 [#allocation15], 4
      %s3218 = int_to_ptr.vmem [resolvable:$true] %s3217
      %3220 = dma.vmem_to_hbm [thread:$0]  %s3218, 32, %s10, [#allocation8]
    $region76: #{tpu_custom_call.1} parent=1 // pred_fallthru
      _
    // Predicated region
    $region77: #{tpu_custom_call.1} parent=1 // pred_check
      _
    $region78: #{tpu_custom_call.1} parent=1 // pred_check_branch
      %3222 = sbr.rel (0) target = $region80
    $region79: #{tpu_custom_call.1} parent=1 // pred_region
      %3223 = dma.done [#allocation8], 32
    $region80: #{tpu_custom_call.1} parent=1 // pred_fallthru
      _
    %3224 = vsyncpa [#allocation7], 1
    %3225 = vsyncpa [#allocation10], 1
    %3226 = vsyncpa [#allocation13], 1
    %3227 = vsyncpa [#allocation8], 1

</llo_original>
